<compile_context>
chip_gen: v7x
topology: tpu7x:2x2x1
jax: 0.10.0
libtpu: 0.0.40
codegen_flags: <defaults>
</compile_context>

<pallas_src>
import math
from functools import partial

import jax
import jax.numpy as jnp
from jax.experimental import pallas as pl
from jax.experimental.pallas import tpu as pltpu

EPS = 1e-6                       # LayerNorm eps from partial(nn.LayerNorm, eps=1e-6)
VMEM_LIMIT = 48 * 1024 * 1024    # fits v5e/v6e (128 MiB) and v7x (64 MiB physical)


# ----------------------------------------------------------------------------
# in-kernel helpers
# ----------------------------------------------------------------------------
def _ln(x, g, b):
    # two-pass (centered) variance: robust against cancellation at depth; LN is
    # a negligible fraction of the block cost next to the matmuls.
    mu = jnp.mean(x, axis=-1, keepdims=True)
    xc = x - mu
    var = jnp.mean(xc * xc, axis=-1, keepdims=True)
    return xc * jax.lax.rsqrt(var + EPS) * g + b


def _gelu_tanh(x):
    # tanh-approximation GELU (EUP slot, co-issues with MXU/VPU work).
    # TODO(synk): torch.nn.GELU() default is exact erf; max approx error ~4e-4.
    c = 0.7978845608028654  # sqrt(2/pi)
    return 0.5 * x * (1.0 + jnp.tanh(c * (x + 0.044715 * x * x * x)))


# ----------------------------------------------------------------------------
# Fused ViT kernel: embed (d==0) -> transformer block (every d) -> head (d==last)
# ----------------------------------------------------------------------------
def vit_fused_kernel(p_ref, pw_ref, pb_ref, cls_ref, pos_ref,
                     g1_ref, b1_ref, wq_ref, bq_ref, wk_ref, bk_ref,
                     wv_ref, bv_ref, wp_ref, bp_ref, g2_ref, b2_ref,
                     w1_ref, bm1_ref, w2_ref, bm2_ref,
                     ng_ref, nb_ref, hw_ref, hb_ref,
                     o_ref, resid_ref, *, s_real):
    d = pl.program_id(1)
    depth = pl.num_programs(1)
    S_pad, E = resid_ref.shape
    N = p_ref.shape[1]                  # number of image patches
    num_heads = wq_ref.shape[1]

    # ---- d == 0: patch embedding + cls token + pos embed (init residual) ----
    @pl.when(d == 0)
    def _embed():
        tok = (jnp.dot(p_ref[0], pw_ref[...],
                       preferred_element_type=jnp.float32) + pb_ref[...])   # (N, E)
        resid_ref[0:1, :] = cls_ref[...] + pos_ref[0, 0:1, :]
        resid_ref[1:1 + N, :] = tok + pos_ref[0, 1:1 + N, :]
        if S_pad > s_real:   # zero the sublane-padding rows so they stay finite
            resid_ref[s_real:S_pad, :] = jnp.zeros((S_pad - s_real, E),
                                                   jnp.float32)

    x = resid_ref[...]                                   # (S_pad, E) f32

    # ---- attention branch (pre-LN) ----
    xn = _ln(x, g1_ref[0], b1_ref[0]).astype(jnp.bfloat16)
    if S_pad > s_real:
        kcol = jax.lax.broadcasted_iota(jnp.int32, (1, S_pad), 1)
        kbias = jnp.where(kcol < s_real, 0.0, -1e30).astype(jnp.float32)
    else:
        kbias = None

    attn = jnp.zeros((S_pad, E), jnp.float32)
    for h in range(num_heads):          # static unroll; per-head weights, no lane slicing
        qh = (jnp.dot(xn, wq_ref[0, h], preferred_element_type=jnp.float32)
              + bq_ref[0, h]).astype(jnp.bfloat16)        # 1/sqrt(hd) pre-folded
        kh = (jnp.dot(xn, wk_ref[0, h], preferred_element_type=jnp.float32)
              + bk_ref[0, h]).astype(jnp.bfloat16)
        vh = (jnp.dot(xn, wv_ref[0, h], preferred_element_type=jnp.float32)
              + bv_ref[0, h]).astype(jnp.bfloat16)
        s = jax.lax.dot_general(qh, kh, (((1,), (1,)), ((), ())),
                                preferred_element_type=jnp.float32)  # (S_pad, S_pad)
        if kbias is not None:
            s = s + kbias                                  # mask padded keys
        s = s - jnp.max(s, axis=-1, keepdims=True)
        p = jnp.exp(s)
        p = p * pl.reciprocal(jnp.sum(p, axis=-1, keepdims=True), approx=True)
        oh = jnp.dot(p.astype(jnp.bfloat16), vh,
                     preferred_element_type=jnp.float32)             # (S_pad, hd)
        # accumulate through this head's (hd, E) projection slice (no concat)
        attn = attn + jnp.dot(oh.astype(jnp.bfloat16), wp_ref[0, h],
                              preferred_element_type=jnp.float32)
    x = x + attn + bp_ref[0]

    # ---- MLP branch (pre-LN) ----
    xn2 = _ln(x, g2_ref[0], b2_ref[0]).astype(jnp.bfloat16)
    h1 = (jnp.dot(xn2, w1_ref[0], preferred_element_type=jnp.float32)
          + bm1_ref[0])
    h1 = _gelu_tanh(h1)
    x = x + (jnp.dot(h1.astype(jnp.bfloat16), w2_ref[0],
                     preferred_element_type=jnp.float32) + bm2_ref[0])
    resid_ref[...] = x

    # ---- d == depth-1: final LN on the CLS row + classifier head ----
    @pl.when(d == depth - 1)
    def _head():
        xh = _ln(x[0:1, :], ng_ref[...], nb_ref[...]).astype(jnp.bfloat16)
        o_ref[0] = (jnp.dot(xh, hw_ref[...],
                            preferred_element_type=jnp.float32) + hb_ref[...])


# ----------------------------------------------------------------------------
# JAX glue: patch extraction + the single pallas_call
# ----------------------------------------------------------------------------
def extract_patches(x_img, patch):
    B, C, H, W = x_img.shape
    nH, nW = H // patch, W // patch
    xp = x_img.reshape(B, C, nH, patch, nW, patch).transpose(0, 2, 4, 1, 3, 5)
    # (c, i, j) flattening order matches Conv2d weight.reshape(E, C*p*p)
    return xp.reshape(B, nH * nW, C * patch * patch)


def vit_forward(x_img, prep, *, patch, num_classes):
    B, _, Him, Wim = x_img.shape
    N = (Him // patch) * (Wim // patch)
    s_real = N + 1

    patches = extract_patches(x_img, patch).astype(jnp.bfloat16)   # (B, N, K)
    K = patches.shape[2]

    D, num_heads, E, hd = prep['wq'].shape
    S_pad = prep['pos'].shape[1]
    Hm = prep['w1'].shape[2]
    Cp = prep['head_w'].shape[1]

    def const(shape):
        n = len(shape)
        return pl.BlockSpec(shape, lambda b, d, _n=n: (0,) * _n)

    def per_depth(shape):
        n = len(shape)
        return pl.BlockSpec((1,) + shape, lambda b, d, _n=n: (d,) + (0,) * _n)

    in_specs = [
        pl.BlockSpec((1, N, K), lambda b, d: (b, 0, 0)),             # patches
        const((K, E)), const((1, E)),                                # patch_w, patch_b
        const((1, E)), const((1, S_pad, E)),                         # cls, pos
        per_depth((1, E)), per_depth((1, E)),                        # g1, b1
        per_depth((num_heads, E, hd)), per_depth((num_heads, 1, hd)),  # wq, bq
        per_depth((num_heads, E, hd)), per_depth((num_heads, 1, hd)),  # wk, bk
        per_depth((num_heads, E, hd)), per_depth((num_heads, 1, hd)),  # wv, bv
        per_depth((num_heads, hd, E)), per_depth((1, E)),              # wp, bp
        per_depth((1, E)), per_depth((1, E)),                        # g2, b2
        per_depth((E, Hm)), per_depth((1, Hm)),                      # w1, bm1
        per_depth((Hm, E)), per_depth((1, E)),                       # w2, bm2
        const((1, E)), const((1, E)),                                # norm_g, norm_b
        const((E, Cp)), const((1, Cp)),                              # head_w, head_b
    ]
    out_spec = pl.BlockSpec((1, 1, Cp), lambda b, d: (b, 0, 0))

    def nbytes(a):
        return a.size * a.dtype.itemsize

    flops_block = (6 * S_pad * E * E            # q/k/v projections
                   + 4 * S_pad * S_pad * E      # scores + PV over all heads
                   + 2 * S_pad * E * E          # output projection
                   + 4 * S_pad * E * Hm)        # MLP
    cost = pl.CostEstimate(
        flops=B * (2 * N * K * E + D * flops_block + 2 * E * Cp),
        transcendentals=B * D * (num_heads * S_pad * S_pad + S_pad * Hm),
        bytes_accessed=B * sum(nbytes(v) for v in prep.values())
                       + nbytes(patches) + B * Cp * 4)

    logits = pl.pallas_call(
        partial(vit_fused_kernel, s_real=s_real),
        out_shape=jax.ShapeDtypeStruct((B, 1, Cp), jnp.float32),
        grid=(B, D),
        in_specs=in_specs,
        out_specs=out_spec,
        scratch_shapes=[pltpu.VMEM((S_pad, E), jnp.float32)],   # resident residual
        compiler_params=pltpu.CompilerParams(
            dimension_semantics=("parallel", "arbitrary"),
            vmem_limit_bytes=VMEM_LIMIT),
        cost_estimate=cost,
    )(patches, prep['patch_w'], prep['patch_b'], prep['cls'], prep['pos'],
      prep['g1'], prep['b1'], prep['wq'], prep['bq'], prep['wk'], prep['bk'],
      prep['wv'], prep['bv'], prep['wp'], prep['bp'], prep['g2'], prep['b2'],
      prep['w1'], prep['bm1'], prep['w2'], prep['bm2'],
      prep['norm_g'], prep['norm_b'], prep['head_w'], prep['head_b'])

    return logits.reshape(B, Cp)[:, :num_classes]


# ----------------------------------------------------------------------------
# One-time parameter preparation: stack per-block weights along depth, split
# heads head-major, fold the attention scale into q, pad pos/classifier, and
# cast every matmul weight to bf16 (done ONCE, not per forward).
# ----------------------------------------------------------------------------
def prepare_params(params, *, num_heads, s_pad):
    E = params['patch_w'].shape[1]
    hd = E // num_heads
    scale = 1.0 / math.sqrt(hd)
    C = params['head_w'].shape[1]
    Cp = ((C + 127) // 128) * 128
    s_real = params['pos_embed'].shape[1]
    bf16 = jnp.bfloat16

    def w_heads(w):      # (E, E) -> (H, E, hd)
        return jnp.transpose(w.reshape(E, num_heads, hd), (1, 0, 2))

    def b_heads(b):      # (1, E) -> (H, 1, hd)
        return b.reshape(num_heads, hd)[:, None, :]

    keys = ('g1', 'b1', 'wq', 'bq', 'wk', 'bk', 'wv', 'bv', 'wp', 'bp',
            'g2', 'b2', 'w1', 'bm1', 'w2', 'bm2')
    stacks = {k: [] for k in keys}
    for blk in params['blocks']:
        wqkv, bqkv = blk['wqkv'], blk['bqkv']
        stacks['g1'].append(blk['g1']);   stacks['b1'].append(blk['b1'])
        stacks['wq'].append(w_heads(wqkv[:, 0 * E:1 * E]) * scale)   # scale folded
        stacks['bq'].append(b_heads(bqkv[:, 0 * E:1 * E]) * scale)
        stacks['wk'].append(w_heads(wqkv[:, 1 * E:2 * E]))
        stacks['bk'].append(b_heads(bqkv[:, 1 * E:2 * E]))
        stacks['wv'].append(w_heads(wqkv[:, 2 * E:3 * E]))
        stacks['bv'].append(b_heads(bqkv[:, 2 * E:3 * E]))
        stacks['wp'].append(blk['wproj'].reshape(num_heads, hd, E))
        stacks['bp'].append(blk['bproj'])
        stacks['g2'].append(blk['g2']);   stacks['b2'].append(blk['b2'])
        stacks['w1'].append(blk['w1']);   stacks['bm1'].append(blk['bm1'])
        stacks['w2'].append(blk['w2']);   stacks['bm2'].append(blk['bm2'])

    def stk(name, dtype=jnp.float32):
        return jnp.stack(stacks[name]).astype(dtype)

    return dict(
        patch_w=params['patch_w'].astype(bf16),
        patch_b=params['patch_b'],
        cls=params['cls_token'].reshape(1, E),
        pos=jnp.pad(params['pos_embed'], ((0, 0), (0, s_pad - s_real), (0, 0))),
        g1=stk('g1'), b1=stk('b1'),
        wq=stk('wq', bf16), bq=stk('bq'),
        wk=stk('wk', bf16), bk=stk('bk'),
        wv=stk('wv', bf16), bv=stk('bv'),
        wp=stk('wp', bf16), bp=stk('bp'),
        g2=stk('g2'), b2=stk('b2'),
        w1=stk('w1', bf16), bm1=stk('bm1'),
        w2=stk('w2', bf16), bm2=stk('bm2'),
        norm_g=params['norm_g'], norm_b=params['norm_b'],
        head_w=jnp.pad(params['head_w'], ((0, 0), (0, Cp - C))).astype(bf16),
        head_b=jnp.pad(params['head_b'], ((0, 0), (0, Cp - C))),
    )


# ----------------------------------------------------------------------------
# Pure-JAX f32 reference (exact erf GELU, exact softmax) for validation
# ----------------------------------------------------------------------------
def _ln_ref(x, g, b):
    mu = jnp.mean(x, axis=-1, keepdims=True)
    var = jnp.mean((x - mu) ** 2, axis=-1, keepdims=True)
    return (x - mu) * jax.lax.rsqrt(var + EPS) * g + b


def _gelu_ref(x):
    return 0.5 * x * (1.0 + jax.lax.erf(x * 0.7071067811865475))


def vit_ref(x_img, params, *, patch, num_heads):
    B = x_img.shape[0]
    E = params['patch_w'].shape[1]
    hd = E // num_heads
    patches = extract_patches(x_img, patch).astype(jnp.float32)
    tok = patches @ params['patch_w'] + params['patch_b']
    cls = jnp.broadcast_to(params['cls_token'], (B, 1, E))
    x = jnp.concatenate([cls, tok], axis=1) + params['pos_embed']
    S = x.shape[1]
    for blk in params['blocks']:
        xn = _ln_ref(x, blk['g1'], blk['b1'])
        qkv = xn @ blk['wqkv'] + blk['bqkv']
        q, k, v = jnp.split(qkv, 3, axis=-1)
        q = q.reshape(B, S, num_heads, hd).transpose(0, 2, 1, 3)
        k = k.reshape(B, S, num_heads, hd).transpose(0, 2, 1, 3)
        v = v.reshape(B, S, num_heads, hd).transpose(0, 2, 1, 3)
        s = jnp.einsum('bhqd,bhkd->bhqk', q, k) / math.sqrt(hd)
        p = jax.nn.softmax(s, axis=-1)
        o = jnp.einsum('bhqk,bhkd->bhqd', p, v).transpose(0, 2, 1, 3).reshape(B, S, E)
        x = x + o @ blk['wproj'] + blk['bproj']
        xn2 = _ln_ref(x, blk['g2'], blk['b2'])
        h = _gelu_ref(xn2 @ blk['w1'] + blk['bm1'])
        x = x + h @ blk['w2'] + blk['bm2']
    x = _ln_ref(x, params['norm_g'], params['norm_b'])
    return x[:, 0] @ params['head_w'] + params['head_b']


# ----------------------------------------------------------------------------
# Deterministic parameter construction (shapes from the module's __init__)
# ----------------------------------------------------------------------------
def init_params(key, in_chans, patch, embed_dim, depth, num_heads, mlp_ratio,
                num_classes, num_patches):
    keys = iter(jax.random.split(key, 8 + 12 * depth))

    def nrm(shape, scale=0.02):
        return (scale * jax.random.normal(next(keys), shape)).astype(jnp.float32)

    E = embed_dim
    H = int(E * mlp_ratio)
    params = {
        'patch_w': nrm((in_chans * patch * patch, E)),   # Conv2d weight, flattened & transposed
        'patch_b': nrm((1, E)),
        'cls_token': nrm((1, 1, E)),
        'pos_embed': nrm((1, num_patches + 1, E)),
        'norm_g': 1.0 + nrm((1, E)),
        'norm_b': nrm((1, E)),
        'head_w': nrm((E, num_classes)),
        'head_b': nrm((1, num_classes)),
        'blocks': [],
    }
    for _ in range(depth):
        params['blocks'].append(dict(
            g1=1.0 + nrm((1, E)), b1=nrm((1, E)),
            wqkv=nrm((E, 3 * E)), bqkv=nrm((1, 3 * E)),
            wproj=nrm((E, E)), bproj=nrm((1, E)),
            g2=1.0 + nrm((1, E)), b2=nrm((1, E)),
            w1=nrm((E, H)), bm1=nrm((1, H)),
            w2=nrm((H, E)), bm2=nrm((1, E)),
        ))
    return params


if __name__ == "__main__":
    B, C, IMG, PATCH = 2, 3, 16, 4
    EMBED, DEPTH, HEADS, MLP_RATIO, NCLS = 32, 2, 4, 4.0, 10
    NUM_PATCHES = (IMG // PATCH) ** 2
    S_REAL = NUM_PATCHES + 1
    S_PAD = ((S_REAL + 7) // 8) * 8          # sublane-align the token count

    key = jax.random.PRNGKey(0)
    kx, kp = jax.random.split(key)
    x = jax.random.normal(kx, (B, C, IMG, IMG), dtype=jnp.float32)
    params = init_params(kp, C, PATCH, EMBED, DEPTH, HEADS, MLP_RATIO,
                         NCLS, NUM_PATCHES)
    prep = prepare_params(params, num_heads=HEADS, s_pad=S_PAD)   # one-time prep

    fwd = jax.jit(partial(vit_forward, patch=PATCH, num_classes=NCLS))
    out = fwd(x, prep)
    out = jax.block_until_ready(out)

    ref = vit_ref(x, params, patch=PATCH, num_heads=HEADS)
    assert out.shape == (B, NCLS), out.shape
    # bf16 matmul inputs + tanh-GELU + approx-reciprocal => relaxed tolerance vs
    # the exact f32/erf reference.
    assert jnp.allclose(out, ref, atol=2e-2, rtol=2e-2), (out, ref)
    print("KERNEL_OK")
</pallas_src>

<mosaic_0001>
module attributes {stable_mosaic.version = 11 : i64} {
  func.func @vit_fused_kernel(%arg0: i32, %arg1: i32, %arg2: memref<1x16x48xbf16, #tpu.memory_space<vmem>>, %arg3: memref<48x32xbf16, #tpu.memory_space<vmem>>, %arg4: memref<1x32xf32, #tpu.memory_space<vmem>>, %arg5: memref<1x32xf32, #tpu.memory_space<vmem>>, %arg6: memref<1x24x32xf32, #tpu.memory_space<vmem>>, %arg7: memref<1x1x32xf32, #tpu.memory_space<vmem>>, %arg8: memref<1x1x32xf32, #tpu.memory_space<vmem>>, %arg9: memref<1x4x32x8xbf16, #tpu.memory_space<vmem>>, %arg10: memref<1x4x1x8xf32, #tpu.memory_space<vmem>>, %arg11: memref<1x4x32x8xbf16, #tpu.memory_space<vmem>>, %arg12: memref<1x4x1x8xf32, #tpu.memory_space<vmem>>, %arg13: memref<1x4x32x8xbf16, #tpu.memory_space<vmem>>, %arg14: memref<1x4x1x8xf32, #tpu.memory_space<vmem>>, %arg15: memref<1x4x8x32xbf16, #tpu.memory_space<vmem>>, %arg16: memref<1x1x32xf32, #tpu.memory_space<vmem>>, %arg17: memref<1x1x32xf32, #tpu.memory_space<vmem>>, %arg18: memref<1x1x32xf32, #tpu.memory_space<vmem>>, %arg19: memref<1x32x128xbf16, #tpu.memory_space<vmem>>, %arg20: memref<1x1x128xf32, #tpu.memory_space<vmem>>, %arg21: memref<1x128x32xbf16, #tpu.memory_space<vmem>>, %arg22: memref<1x1x32xf32, #tpu.memory_space<vmem>>, %arg23: memref<1x32xf32, #tpu.memory_space<vmem>>, %arg24: memref<1x32xf32, #tpu.memory_space<vmem>>, %arg25: memref<32x128xbf16, #tpu.memory_space<vmem>>, %arg26: memref<1x128xf32, #tpu.memory_space<vmem>>, %arg27: memref<1x1x128xf32, #tpu.memory_space<vmem>>, %arg28: memref<24x32xf32, #tpu.memory_space<vmem>>) attributes {dimension_semantics = [#tpu.dimension_semantics<parallel>, #tpu.dimension_semantics<arbitrary>], iteration_bounds = array<i64: 2, 2>, scalar_prefetch = 0 : i64, scratch_operands = 1 : i64, tpu.core_type = #tpu.core_type<tc>, window_params = [{transform_indices = @transform_0, window_bounds = array<i64: 1, 16, 48>}, {pipeline_mode = #tpu.pipeline_mode<synchronous>, transform_indices = @transform_1, window_bounds = array<i64: 48, 32>}, {pipeline_mode = #tpu.pipeline_mode<synchronous>, transform_indices = @transform_2, window_bounds = array<i64: 1, 32>}, {pipeline_mode = #tpu.pipeline_mode<synchronous>, transform_indices = @transform_3, window_bounds = array<i64: 1, 32>}, {pipeline_mode = #tpu.pipeline_mode<synchronous>, transform_indices = @transform_4, window_bounds = array<i64: 1, 24, 32>}, {transform_indices = @transform_5, window_bounds = array<i64: 1, 1, 32>}, {transform_indices = @transform_6, window_bounds = array<i64: 1, 1, 32>}, {transform_indices = @transform_7, window_bounds = array<i64: 1, 4, 32, 8>}, {transform_indices = @transform_8, window_bounds = array<i64: 1, 4, 1, 8>}, {transform_indices = @transform_9, window_bounds = array<i64: 1, 4, 32, 8>}, {transform_indices = @transform_10, window_bounds = array<i64: 1, 4, 1, 8>}, {transform_indices = @transform_11, window_bounds = array<i64: 1, 4, 32, 8>}, {transform_indices = @transform_12, window_bounds = array<i64: 1, 4, 1, 8>}, {transform_indices = @transform_13, window_bounds = array<i64: 1, 4, 8, 32>}, {transform_indices = @transform_14, window_bounds = array<i64: 1, 1, 32>}, {transform_indices = @transform_15, window_bounds = array<i64: 1, 1, 32>}, {transform_indices = @transform_16, window_bounds = array<i64: 1, 1, 32>}, {transform_indices = @transform_17, window_bounds = array<i64: 1, 32, 128>}, {transform_indices = @transform_18, window_bounds = array<i64: 1, 1, 128>}, {transform_indices = @transform_19, window_bounds = array<i64: 1, 128, 32>}, {transform_indices = @transform_20, window_bounds = array<i64: 1, 1, 32>}, {pipeline_mode = #tpu.pipeline_mode<synchronous>, transform_indices = @transform_21, window_bounds = array<i64: 1, 32>}, {pipeline_mode = #tpu.pipeline_mode<synchronous>, transform_indices = @transform_22, window_bounds = array<i64: 1, 32>}, {pipeline_mode = #tpu.pipeline_mode<synchronous>, transform_indices = @transform_23, window_bounds = array<i64: 32, 128>}, {pipeline_mode = #tpu.pipeline_mode<synchronous>, transform_indices = @transform_24, window_bounds = array<i64: 1, 128>}, {transform_indices = @transform_25, window_bounds = array<i64: 1, 1, 128>}]} {
    %c0_i32 = arith.constant 0 : i32
    %0 = arith.cmpi eq, %arg1, %c0_i32 : i32
    %1 = arith.extui %0 : i1 to i32
    %c0_i32_0 = arith.constant 0 : i32
    %2 = arith.cmpi ne, %1, %c0_i32_0 : i32
    scf.if %2 {
      %c0_191 = arith.constant 0 : index
      %c0_192 = arith.constant 0 : index
      %c0_193 = arith.constant 0 : index
      %275 = vector.load %arg2[%c0_191, %c0_192, %c0_193] : memref<1x16x48xbf16, #tpu.memory_space<vmem>>, vector<1x16x48xbf16>
      %276 = vector.shape_cast %275 : vector<1x16x48xbf16> to vector<16x48xbf16>
      %c0_194 = arith.constant 0 : index
      %c0_195 = arith.constant 0 : index
      %277 = vector.load %arg3[%c0_194, %c0_195] : memref<48x32xbf16, #tpu.memory_space<vmem>>, vector<48x32xbf16>
      %cst_196 = arith.constant dense<0.000000e+00> : vector<16x32xf32>
      %278 = tpu.matmul %276, %277, %cst_196 {dimension_numbers = #tpu.dot_dimension_numbers<[1], [0], [0], [1], [0, 0, 1, 1], [], []>} : vector<16x48xbf16>, vector<48x32xbf16>, vector<16x32xf32> -> vector<16x32xf32>
      %c0_197 = arith.constant 0 : index
      %c0_198 = arith.constant 0 : index
      %279 = vector.load %arg4[%c0_197, %c0_198] : memref<1x32xf32, #tpu.memory_space<vmem>>, vector<1x32xf32>
      %280 = vector.broadcast %279 : vector<1x32xf32> to vector<16x32xf32>
      %281 = arith.addf %278, %280 : vector<16x32xf32>
      %c0_199 = arith.constant 0 : index
      %c0_200 = arith.constant 0 : index
      %282 = vector.load %arg5[%c0_199, %c0_200] : memref<1x32xf32, #tpu.memory_space<vmem>>, vector<1x32xf32>
      %c0_201 = arith.constant 0 : index
      %c0_202 = arith.constant 0 : index
      %c0_203 = arith.constant 0 : index
      %283 = vector.load %arg6[%c0_201, %c0_202, %c0_203] : memref<1x24x32xf32, #tpu.memory_space<vmem>>, vector<1x1x32xf32>
      %284 = vector.shape_cast %283 : vector<1x1x32xf32> to vector<1x32xf32>
      %285 = arith.addf %282, %284 : vector<1x32xf32>
      %c0_204 = arith.constant 0 : index
      %c0_205 = arith.constant 0 : index
      %286 = vector.load %arg28[%c0_204, %c0_205] : memref<24x32xf32, #tpu.memory_space<vmem>>, vector<1x32xf32>
      tpu.vector_store %arg28[%c0_204, %c0_205], %285 {strides = array<i32>} : memref<24x32xf32, #tpu.memory_space<vmem>>, vector<1x32xf32>,
      %c0_206 = arith.constant 0 : index
      %c1_207 = arith.constant 1 : index
      %c0_208 = arith.constant 0 : index
      %287 = vector.load %arg6[%c0_206, %c1_207, %c0_208] : memref<1x24x32xf32, #tpu.memory_space<vmem>>, vector<1x16x32xf32>
      %288 = vector.shape_cast %287 : vector<1x16x32xf32> to vector<16x32xf32>
      %289 = arith.addf %281, %288 : vector<16x32xf32>
      %c1_209 = arith.constant 1 : index
      %c0_210 = arith.constant 0 : index
      %290 = vector.load %arg28[%c1_209, %c0_210] : memref<24x32xf32, #tpu.memory_space<vmem>>, vector<16x32xf32>
      tpu.vector_store %arg28[%c1_209, %c0_210], %289 {strides = array<i32>} : memref<24x32xf32, #tpu.memory_space<vmem>>, vector<16x32xf32>,
      %cst_211 = arith.constant 0.000000e+00 : f32
      %291 = vector.broadcast %cst_211 : f32 to vector<7x32xf32>
      %c17 = arith.constant 17 : index
      %c0_212 = arith.constant 0 : index
      %292 = vector.load %arg28[%c17, %c0_212] : memref<24x32xf32, #tpu.memory_space<vmem>>, vector<7x32xf32>
      tpu.vector_store %arg28[%c17, %c0_212], %291 {strides = array<i32>} : memref<24x32xf32, #tpu.memory_space<vmem>>, vector<7x32xf32>,
    } else {
    }
    %c0 = arith.constant 0 : index
    %c0_1 = arith.constant 0 : index
    %3 = vector.load %arg28[%c0, %c0_1] : memref<24x32xf32, #tpu.memory_space<vmem>>, vector<24x32xf32>
    %c0_2 = arith.constant 0 : index
    %c0_3 = arith.constant 0 : index
    %c0_4 = arith.constant 0 : index
    %4 = vector.load %arg7[%c0_2, %c0_3, %c0_4] : memref<1x1x32xf32, #tpu.memory_space<vmem>>, vector<1x1x32xf32>
    %5 = vector.shape_cast %4 : vector<1x1x32xf32> to vector<1x32xf32>
    %c0_5 = arith.constant 0 : index
    %c0_6 = arith.constant 0 : index
    %c0_7 = arith.constant 0 : index
    %6 = vector.load %arg8[%c0_5, %c0_6, %c0_7] : memref<1x1x32xf32, #tpu.memory_space<vmem>>, vector<1x1x32xf32>
    %7 = vector.shape_cast %6 : vector<1x1x32xf32> to vector<1x32xf32>
    %cst = arith.constant dense<0.000000e+00> : vector<24xf32>
    %8 = vector.multi_reduction <add>, %3, %cst [1] : vector<24x32xf32> to vector<24xf32>
    %9 = vector.shape_cast %8 : vector<24xf32> to vector<24x1xf32>
    %cst_8 = arith.constant 3.200000e+01 : f32
    %10 = vector.broadcast %cst_8 : f32 to vector<24x1xf32>
    %11 = arith.divf %9, %10 : vector<24x1xf32>
    %12 = vector.broadcast %11 : vector<24x1xf32> to vector<24x32xf32>
    %13 = arith.subf %3, %12 : vector<24x32xf32>
    %14 = arith.mulf %13, %13 : vector<24x32xf32>
    %cst_9 = arith.constant dense<0.000000e+00> : vector<24xf32>
    %15 = vector.multi_reduction <add>, %14, %cst_9 [1] : vector<24x32xf32> to vector<24xf32>
    %16 = vector.shape_cast %15 : vector<24xf32> to vector<24x1xf32>
    %cst_10 = arith.constant 3.200000e+01 : f32
    %17 = vector.broadcast %cst_10 : f32 to vector<24x1xf32>
    %18 = arith.divf %16, %17 : vector<24x1xf32>
    %cst_11 = arith.constant 9.99999997E-7 : f32
    %19 = vector.broadcast %cst_11 : f32 to vector<24x1xf32>
    %20 = arith.addf %18, %19 : vector<24x1xf32>
    %21 = math.rsqrt %20 : vector<24x1xf32>
    %22 = vector.broadcast %21 : vector<24x1xf32> to vector<24x32xf32>
    %23 = arith.mulf %13, %22 : vector<24x32xf32>
    %24 = vector.broadcast %5 : vector<1x32xf32> to vector<24x32xf32>
    %25 = arith.mulf %23, %24 : vector<24x32xf32>
    %26 = vector.broadcast %7 : vector<1x32xf32> to vector<24x32xf32>
    %27 = arith.addf %25, %26 : vector<24x32xf32>
    %28 = arith.truncf %27 : vector<24x32xf32> to vector<24x32xbf16>
    %29 = tpu.iota {dimensions = array<i32: 1>} : vector<1x24xi32>
    %c17_i32 = arith.constant 17 : i32
    %30 = vector.broadcast %c17_i32 : i32 to vector<1x24xi32>
    %31 = arith.cmpi slt, %29, %30 : vector<1x24xi32>
    %cst_12 = arith.constant 0.000000e+00 : f32
    %cst_13 = arith.constant -1.000000e+30 : f32
    %32 = vector.broadcast %cst_12 : f32 to vector<1x24xf32>
    %33 = vector.broadcast %cst_13 : f32 to vector<1x24xf32>
    %34 = arith.select %31, %32, %33 : vector<1x24xi1>, vector<1x24xf32>
    %cst_14 = arith.constant 0.000000e+00 : f32
    %35 = vector.broadcast %cst_14 : f32 to vector<24x32xf32>
    %c0_15 = arith.constant 0 : index
    %c0_16 = arith.constant 0 : index
    %c0_17 = arith.constant 0 : index
    %c0_18 = arith.constant 0 : index
    %36 = vector.load %arg9[%c0_15, %c0_16, %c0_17, %c0_18] : memref<1x4x32x8xbf16, #tpu.memory_space<vmem>>, vector<1x1x32x8xbf16>
    %37 = vector.shape_cast %36 : vector<1x1x32x8xbf16> to vector<32x8xbf16>
    %cst_19 = arith.constant dense<0.000000e+00> : vector<24x8xf32>
    %38 = tpu.matmul %28, %37, %cst_19 {dimension_numbers = #tpu.dot_dimension_numbers<[1], [0], [0], [1], [0, 0, 1, 1], [], []>} : vector<24x32xbf16>, vector<32x8xbf16>, vector<24x8xf32> -> vector<24x8xf32>
    %c0_20 = arith.constant 0 : index
    %c0_21 = arith.constant 0 : index
    %c0_22 = arith.constant 0 : index
    %c0_23 = arith.constant 0 : index
    %39 = vector.load %arg10[%c0_20, %c0_21, %c0_22, %c0_23] : memref<1x4x1x8xf32, #tpu.memory_space<vmem>>, vector<1x1x1x8xf32>
    %40 = vector.shape_cast %39 : vector<1x1x1x8xf32> to vector<1x8xf32>
    %41 = vector.broadcast %40 : vector<1x8xf32> to vector<24x8xf32>
    %42 = arith.addf %38, %41 : vector<24x8xf32>
    %43 = arith.truncf %42 : vector<24x8xf32> to vector<24x8xbf16>
    %c0_24 = arith.constant 0 : index
    %c0_25 = arith.constant 0 : index
    %c0_26 = arith.constant 0 : index
    %c0_27 = arith.constant 0 : index
    %44 = vector.load %arg11[%c0_24, %c0_25, %c0_26, %c0_27] : memref<1x4x32x8xbf16, #tpu.memory_space<vmem>>, vector<1x1x32x8xbf16>
    %45 = vector.shape_cast %44 : vector<1x1x32x8xbf16> to vector<32x8xbf16>
    %cst_28 = arith.constant dense<0.000000e+00> : vector<24x8xf32>
    %46 = tpu.matmul %28, %45, %cst_28 {dimension_numbers = #tpu.dot_dimension_numbers<[1], [0], [0], [1], [0, 0, 1, 1], [], []>} : vector<24x32xbf16>, vector<32x8xbf16>, vector<24x8xf32> -> vector<24x8xf32>
    %c0_29 = arith.constant 0 : index
    %c0_30 = arith.constant 0 : index
    %c0_31 = arith.constant 0 : index
    %c0_32 = arith.constant 0 : index
    %47 = vector.load %arg12[%c0_29, %c0_30, %c0_31, %c0_32] : memref<1x4x1x8xf32, #tpu.memory_space<vmem>>, vector<1x1x1x8xf32>
    %48 = vector.shape_cast %47 : vector<1x1x1x8xf32> to vector<1x8xf32>
    %49 = vector.broadcast %48 : vector<1x8xf32> to vector<24x8xf32>
    %50 = arith.addf %46, %49 : vector<24x8xf32>
    %51 = arith.truncf %50 : vector<24x8xf32> to vector<24x8xbf16>
    %c0_33 = arith.constant 0 : index
    %c0_34 = arith.constant 0 : index
    %c0_35 = arith.constant 0 : index
    %c0_36 = arith.constant 0 : index
    %52 = vector.load %arg13[%c0_33, %c0_34, %c0_35, %c0_36] : memref<1x4x32x8xbf16, #tpu.memory_space<vmem>>, vector<1x1x32x8xbf16>
    %53 = vector.shape_cast %52 : vector<1x1x32x8xbf16> to vector<32x8xbf16>
    %cst_37 = arith.constant dense<0.000000e+00> : vector<24x8xf32>
    %54 = tpu.matmul %28, %53, %cst_37 {dimension_numbers = #tpu.dot_dimension_numbers<[1], [0], [0], [1], [0, 0, 1, 1], [], []>} : vector<24x32xbf16>, vector<32x8xbf16>, vector<24x8xf32> -> vector<24x8xf32>
    %c0_38 = arith.constant 0 : index
    %c0_39 = arith.constant 0 : index
    %c0_40 = arith.constant 0 : index
    %c0_41 = arith.constant 0 : index
    %55 = vector.load %arg14[%c0_38, %c0_39, %c0_40, %c0_41] : memref<1x4x1x8xf32, #tpu.memory_space<vmem>>, vector<1x1x1x8xf32>
    %56 = vector.shape_cast %55 : vector<1x1x1x8xf32> to vector<1x8xf32>
    %57 = vector.broadcast %56 : vector<1x8xf32> to vector<24x8xf32>
    %58 = arith.addf %54, %57 : vector<24x8xf32>
    %59 = arith.truncf %58 : vector<24x8xf32> to vector<24x8xbf16>
    %cst_42 = arith.constant dense<0.000000e+00> : vector<24x24xf32>
    %60 = tpu.matmul %43, %51, %cst_42 {dimension_numbers = #tpu.dot_dimension_numbers<[1], [1], [0], [0], [0, 0, 1, 0], [], []>} : vector<24x8xbf16>, vector<24x8xbf16>, vector<24x24xf32> -> vector<24x24xf32>
    %61 = vector.broadcast %34 : vector<1x24xf32> to vector<24x24xf32>
    %62 = arith.addf %60, %61 : vector<24x24xf32>
    %cst_43 = arith.constant dense<0xFF800000> : vector<24xf32>
    %63 = vector.multi_reduction <maximumf>, %62, %cst_43 [1] : vector<24x24xf32> to vector<24xf32>
    %64 = vector.shape_cast %63 : vector<24xf32> to vector<24x1xf32>
    %65 = vector.broadcast %64 : vector<24x1xf32> to vector<24x24xf32>
    %66 = arith.subf %62, %65 : vector<24x24xf32>
    %67 = math.exp %66 : vector<24x24xf32>
    %cst_44 = arith.constant dense<0.000000e+00> : vector<24xf32>
    %68 = vector.multi_reduction <add>, %67, %cst_44 [1] : vector<24x24xf32> to vector<24xf32>
    %69 = vector.shape_cast %68 : vector<24xf32> to vector<24x1xf32>
    %70 = tpu.reciprocal %69 {approx = true} : vector<24x1xf32> -> vector<24x1xf32>
    %71 = vector.broadcast %70 : vector<24x1xf32> to vector<24x24xf32>
    %72 = arith.mulf %67, %71 : vector<24x24xf32>
    %73 = arith.truncf %72 : vector<24x24xf32> to vector<24x24xbf16>
    %cst_45 = arith.constant dense<0.000000e+00> : vector<24x8xf32>
    %74 = tpu.matmul %73, %59, %cst_45 {dimension_numbers = #tpu.dot_dimension_numbers<[1], [0], [0], [1], [0, 0, 1, 1], [], []>} : vector<24x24xbf16>, vector<24x8xbf16>, vector<24x8xf32> -> vector<24x8xf32>
    %75 = arith.truncf %74 : vector<24x8xf32> to vector<24x8xbf16>
    %c0_46 = arith.constant 0 : index
    %c0_47 = arith.constant 0 : index
    %c0_48 = arith.constant 0 : index
    %c0_49 = arith.constant 0 : index
    %76 = vector.load %arg15[%c0_46, %c0_47, %c0_48, %c0_49] : memref<1x4x8x32xbf16, #tpu.memory_space<vmem>>, vector<1x1x8x32xbf16>
    %77 = vector.shape_cast %76 : vector<1x1x8x32xbf16> to vector<8x32xbf16>
    %cst_50 = arith.constant dense<0.000000e+00> : vector<24x32xf32>
    %78 = tpu.matmul %75, %77, %cst_50 {dimension_numbers = #tpu.dot_dimension_numbers<[1], [0], [0], [1], [0, 0, 1, 1], [], []>} : vector<24x8xbf16>, vector<8x32xbf16>, vector<24x32xf32> -> vector<24x32xf32>
    %79 = arith.addf %35, %78 : vector<24x32xf32>
    %c0_51 = arith.constant 0 : index
    %c1 = arith.constant 1 : index
    %c0_52 = arith.constant 0 : index
    %c0_53 = arith.constant 0 : index
    %80 = vector.load %arg9[%c0_51, %c1, %c0_52, %c0_53] : memref<1x4x32x8xbf16, #tpu.memory_space<vmem>>, vector<1x1x32x8xbf16>
    %81 = vector.shape_cast %80 : vector<1x1x32x8xbf16> to vector<32x8xbf16>
    %cst_54 = arith.constant dense<0.000000e+00> : vector<24x8xf32>
    %82 = tpu.matmul %28, %81, %cst_54 {dimension_numbers = #tpu.dot_dimension_numbers<[1], [0], [0], [1], [0, 0, 1, 1], [], []>} : vector<24x32xbf16>, vector<32x8xbf16>, vector<24x8xf32> -> vector<24x8xf32>
    %c0_55 = arith.constant 0 : index
    %c1_56 = arith.constant 1 : index
    %c0_57 = arith.constant 0 : index
    %c0_58 = arith.constant 0 : index
    %83 = vector.load %arg10[%c0_55, %c1_56, %c0_57, %c0_58] : memref<1x4x1x8xf32, #tpu.memory_space<vmem>>, vector<1x1x1x8xf32>
    %84 = vector.shape_cast %83 : vector<1x1x1x8xf32> to vector<1x8xf32>
    %85 = vector.broadcast %84 : vector<1x8xf32> to vector<24x8xf32>
    %86 = arith.addf %82, %85 : vector<24x8xf32>
    %87 = arith.truncf %86 : vector<24x8xf32> to vector<24x8xbf16>
    %c0_59 = arith.constant 0 : index
    %c1_60 = arith.constant 1 : index
    %c0_61 = arith.constant 0 : index
    %c0_62 = arith.constant 0 : index
    %88 = vector.load %arg11[%c0_59, %c1_60, %c0_61, %c0_62] : memref<1x4x32x8xbf16, #tpu.memory_space<vmem>>, vector<1x1x32x8xbf16>
    %89 = vector.shape_cast %88 : vector<1x1x32x8xbf16> to vector<32x8xbf16>
    %cst_63 = arith.constant dense<0.000000e+00> : vector<24x8xf32>
    %90 = tpu.matmul %28, %89, %cst_63 {dimension_numbers = #tpu.dot_dimension_numbers<[1], [0], [0], [1], [0, 0, 1, 1], [], []>} : vector<24x32xbf16>, vector<32x8xbf16>, vector<24x8xf32> -> vector<24x8xf32>
    %c0_64 = arith.constant 0 : index
    %c1_65 = arith.constant 1 : index
    %c0_66 = arith.constant 0 : index
    %c0_67 = arith.constant 0 : index
    %91 = vector.load %arg12[%c0_64, %c1_65, %c0_66, %c0_67] : memref<1x4x1x8xf32, #tpu.memory_space<vmem>>, vector<1x1x1x8xf32>
    %92 = vector.shape_cast %91 : vector<1x1x1x8xf32> to vector<1x8xf32>
    %93 = vector.broadcast %92 : vector<1x8xf32> to vector<24x8xf32>
    %94 = arith.addf %90, %93 : vector<24x8xf32>
    %95 = arith.truncf %94 : vector<24x8xf32> to vector<24x8xbf16>
    %c0_68 = arith.constant 0 : index
    %c1_69 = arith.constant 1 : index
    %c0_70 = arith.constant 0 : index
    %c0_71 = arith.constant 0 : index
    %96 = vector.load %arg13[%c0_68, %c1_69, %c0_70, %c0_71] : memref<1x4x32x8xbf16, #tpu.memory_space<vmem>>, vector<1x1x32x8xbf16>
    %97 = vector.shape_cast %96 : vector<1x1x32x8xbf16> to vector<32x8xbf16>
    %cst_72 = arith.constant dense<0.000000e+00> : vector<24x8xf32>
    %98 = tpu.matmul %28, %97, %cst_72 {dimension_numbers = #tpu.dot_dimension_numbers<[1], [0], [0], [1], [0, 0, 1, 1], [], []>} : vector<24x32xbf16>, vector<32x8xbf16>, vector<24x8xf32> -> vector<24x8xf32>
    %c0_73 = arith.constant 0 : index
    %c1_74 = arith.constant 1 : index
    %c0_75 = arith.constant 0 : index
    %c0_76 = arith.constant 0 : index
    %99 = vector.load %arg14[%c0_73, %c1_74, %c0_75, %c0_76] : memref<1x4x1x8xf32, #tpu.memory_space<vmem>>, vector<1x1x1x8xf32>
    %100 = vector.shape_cast %99 : vector<1x1x1x8xf32> to vector<1x8xf32>
    %101 = vector.broadcast %100 : vector<1x8xf32> to vector<24x8xf32>
    %102 = arith.addf %98, %101 : vector<24x8xf32>
    %103 = arith.truncf %102 : vector<24x8xf32> to vector<24x8xbf16>
    %cst_77 = arith.constant dense<0.000000e+00> : vector<24x24xf32>
    %104 = tpu.matmul %87, %95, %cst_77 {dimension_numbers = #tpu.dot_dimension_numbers<[1], [1], [0], [0], [0, 0, 1, 0], [], []>} : vector<24x8xbf16>, vector<24x8xbf16>, vector<24x24xf32> -> vector<24x24xf32>
    %105 = vector.broadcast %34 : vector<1x24xf32> to vector<24x24xf32>
    %106 = arith.addf %104, %105 : vector<24x24xf32>
    %cst_78 = arith.constant dense<0xFF800000> : vector<24xf32>
    %107 = vector.multi_reduction <maximumf>, %106, %cst_78 [1] : vector<24x24xf32> to vector<24xf32>
    %108 = vector.shape_cast %107 : vector<24xf32> to vector<24x1xf32>
    %109 = vector.broadcast %108 : vector<24x1xf32> to vector<24x24xf32>
    %110 = arith.subf %106, %109 : vector<24x24xf32>
    %111 = math.exp %110 : vector<24x24xf32>
    %cst_79 = arith.constant dense<0.000000e+00> : vector<24xf32>
    %112 = vector.multi_reduction <add>, %111, %cst_79 [1] : vector<24x24xf32> to vector<24xf32>
    %113 = vector.shape_cast %112 : vector<24xf32> to vector<24x1xf32>
    %114 = tpu.reciprocal %113 {approx = true} : vector<24x1xf32> -> vector<24x1xf32>
    %115 = vector.broadcast %114 : vector<24x1xf32> to vector<24x24xf32>
    %116 = arith.mulf %111, %115 : vector<24x24xf32>
    %117 = arith.truncf %116 : vector<24x24xf32> to vector<24x24xbf16>
    %cst_80 = arith.constant dense<0.000000e+00> : vector<24x8xf32>
    %118 = tpu.matmul %117, %103, %cst_80 {dimension_numbers = #tpu.dot_dimension_numbers<[1], [0], [0], [1], [0, 0, 1, 1], [], []>} : vector<24x24xbf16>, vector<24x8xbf16>, vector<24x8xf32> -> vector<24x8xf32>
    %119 = arith.truncf %118 : vector<24x8xf32> to vector<24x8xbf16>
    %c0_81 = arith.constant 0 : index
    %c1_82 = arith.constant 1 : index
    %c0_83 = arith.constant 0 : index
    %c0_84 = arith.constant 0 : index
    %120 = vector.load %arg15[%c0_81, %c1_82, %c0_83, %c0_84] : memref<1x4x8x32xbf16, #tpu.memory_space<vmem>>, vector<1x1x8x32xbf16>
    %121 = vector.shape_cast %120 : vector<1x1x8x32xbf16> to vector<8x32xbf16>
    %cst_85 = arith.constant dense<0.000000e+00> : vector<24x32xf32>
    %122 = tpu.matmul %119, %121, %cst_85 {dimension_numbers = #tpu.dot_dimension_numbers<[1], [0], [0], [1], [0, 0, 1, 1], [], []>} : vector<24x8xbf16>, vector<8x32xbf16>, vector<24x32xf32> -> vector<24x32xf32>
    %123 = arith.addf %79, %122 : vector<24x32xf32>
    %c0_86 = arith.constant 0 : index
    %c2 = arith.constant 2 : index
    %c0_87 = arith.constant 0 : index
    %c0_88 = arith.constant 0 : index
    %124 = vector.load %arg9[%c0_86, %c2, %c0_87, %c0_88] : memref<1x4x32x8xbf16, #tpu.memory_space<vmem>>, vector<1x1x32x8xbf16>
    %125 = vector.shape_cast %124 : vector<1x1x32x8xbf16> to vector<32x8xbf16>
    %cst_89 = arith.constant dense<0.000000e+00> : vector<24x8xf32>
    %126 = tpu.matmul %28, %125, %cst_89 {dimension_numbers = #tpu.dot_dimension_numbers<[1], [0], [0], [1], [0, 0, 1, 1], [], []>} : vector<24x32xbf16>, vector<32x8xbf16>, vector<24x8xf32> -> vector<24x8xf32>
    %c0_90 = arith.constant 0 : index
    %c2_91 = arith.constant 2 : index
    %c0_92 = arith.constant 0 : index
    %c0_93 = arith.constant 0 : index
    %127 = vector.load %arg10[%c0_90, %c2_91, %c0_92, %c0_93] : memref<1x4x1x8xf32, #tpu.memory_space<vmem>>, vector<1x1x1x8xf32>
    %128 = vector.shape_cast %127 : vector<1x1x1x8xf32> to vector<1x8xf32>
    %129 = vector.broadcast %128 : vector<1x8xf32> to vector<24x8xf32>
    %130 = arith.addf %126, %129 : vector<24x8xf32>
    %131 = arith.truncf %130 : vector<24x8xf32> to vector<24x8xbf16>
    %c0_94 = arith.constant 0 : index
    %c2_95 = arith.constant 2 : index
    %c0_96 = arith.constant 0 : index
    %c0_97 = arith.constant 0 : index
    %132 = vector.load %arg11[%c0_94, %c2_95, %c0_96, %c0_97] : memref<1x4x32x8xbf16, #tpu.memory_space<vmem>>, vector<1x1x32x8xbf16>
    %133 = vector.shape_cast %132 : vector<1x1x32x8xbf16> to vector<32x8xbf16>
    %cst_98 = arith.constant dense<0.000000e+00> : vector<24x8xf32>
    %134 = tpu.matmul %28, %133, %cst_98 {dimension_numbers = #tpu.dot_dimension_numbers<[1], [0], [0], [1], [0, 0, 1, 1], [], []>} : vector<24x32xbf16>, vector<32x8xbf16>, vector<24x8xf32> -> vector<24x8xf32>
    %c0_99 = arith.constant 0 : index
    %c2_100 = arith.constant 2 : index
    %c0_101 = arith.constant 0 : index
    %c0_102 = arith.constant 0 : index
    %135 = vector.load %arg12[%c0_99, %c2_100, %c0_101, %c0_102] : memref<1x4x1x8xf32, #tpu.memory_space<vmem>>, vector<1x1x1x8xf32>
    %136 = vector.shape_cast %135 : vector<1x1x1x8xf32> to vector<1x8xf32>
    %137 = vector.broadcast %136 : vector<1x8xf32> to vector<24x8xf32>
    %138 = arith.addf %134, %137 : vector<24x8xf32>
    %139 = arith.truncf %138 : vector<24x8xf32> to vector<24x8xbf16>
    %c0_103 = arith.constant 0 : index
    %c2_104 = arith.constant 2 : index
    %c0_105 = arith.constant 0 : index
    %c0_106 = arith.constant 0 : index
    %140 = vector.load %arg13[%c0_103, %c2_104, %c0_105, %c0_106] : memref<1x4x32x8xbf16, #tpu.memory_space<vmem>>, vector<1x1x32x8xbf16>
    %141 = vector.shape_cast %140 : vector<1x1x32x8xbf16> to vector<32x8xbf16>
    %cst_107 = arith.constant dense<0.000000e+00> : vector<24x8xf32>
    %142 = tpu.matmul %28, %141, %cst_107 {dimension_numbers = #tpu.dot_dimension_numbers<[1], [0], [0], [1], [0, 0, 1, 1], [], []>} : vector<24x32xbf16>, vector<32x8xbf16>, vector<24x8xf32> -> vector<24x8xf32>
    %c0_108 = arith.constant 0 : index
    %c2_109 = arith.constant 2 : index
    %c0_110 = arith.constant 0 : index
    %c0_111 = arith.constant 0 : index
    %143 = vector.load %arg14[%c0_108, %c2_109, %c0_110, %c0_111] : memref<1x4x1x8xf32, #tpu.memory_space<vmem>>, vector<1x1x1x8xf32>
    %144 = vector.shape_cast %143 : vector<1x1x1x8xf32> to vector<1x8xf32>
    %145 = vector.broadcast %144 : vector<1x8xf32> to vector<24x8xf32>
    %146 = arith.addf %142, %145 : vector<24x8xf32>
    %147 = arith.truncf %146 : vector<24x8xf32> to vector<24x8xbf16>
    %cst_112 = arith.constant dense<0.000000e+00> : vector<24x24xf32>
    %148 = tpu.matmul %131, %139, %cst_112 {dimension_numbers = #tpu.dot_dimension_numbers<[1], [1], [0], [0], [0, 0, 1, 0], [], []>} : vector<24x8xbf16>, vector<24x8xbf16>, vector<24x24xf32> -> vector<24x24xf32>
    %149 = vector.broadcast %34 : vector<1x24xf32> to vector<24x24xf32>
    %150 = arith.addf %148, %149 : vector<24x24xf32>
    %cst_113 = arith.constant dense<0xFF800000> : vector<24xf32>
    %151 = vector.multi_reduction <maximumf>, %150, %cst_113 [1] : vector<24x24xf32> to vector<24xf32>
    %152 = vector.shape_cast %151 : vector<24xf32> to vector<24x1xf32>
    %153 = vector.broadcast %152 : vector<24x1xf32> to vector<24x24xf32>
    %154 = arith.subf %150, %153 : vector<24x24xf32>
    %155 = math.exp %154 : vector<24x24xf32>
    %cst_114 = arith.constant dense<0.000000e+00> : vector<24xf32>
    %156 = vector.multi_reduction <add>, %155, %cst_114 [1] : vector<24x24xf32> to vector<24xf32>
    %157 = vector.shape_cast %156 : vector<24xf32> to vector<24x1xf32>
    %158 = tpu.reciprocal %157 {approx = true} : vector<24x1xf32> -> vector<24x1xf32>
    %159 = vector.broadcast %158 : vector<24x1xf32> to vector<24x24xf32>
    %160 = arith.mulf %155, %159 : vector<24x24xf32>
    %161 = arith.truncf %160 : vector<24x24xf32> to vector<24x24xbf16>
    %cst_115 = arith.constant dense<0.000000e+00> : vector<24x8xf32>
    %162 = tpu.matmul %161, %147, %cst_115 {dimension_numbers = #tpu.dot_dimension_numbers<[1], [0], [0], [1], [0, 0, 1, 1], [], []>} : vector<24x24xbf16>, vector<24x8xbf16>, vector<24x8xf32> -> vector<24x8xf32>
    %163 = arith.truncf %162 : vector<24x8xf32> to vector<24x8xbf16>
    %c0_116 = arith.constant 0 : index
    %c2_117 = arith.constant 2 : index
    %c0_118 = arith.constant 0 : index
    %c0_119 = arith.constant 0 : index
    %164 = vector.load %arg15[%c0_116, %c2_117, %c0_118, %c0_119] : memref<1x4x8x32xbf16, #tpu.memory_space<vmem>>, vector<1x1x8x32xbf16>
    %165 = vector.shape_cast %164 : vector<1x1x8x32xbf16> to vector<8x32xbf16>
    %cst_120 = arith.constant dense<0.000000e+00> : vector<24x32xf32>
    %166 = tpu.matmul %163, %165, %cst_120 {dimension_numbers = #tpu.dot_dimension_numbers<[1], [0], [0], [1], [0, 0, 1, 1], [], []>} : vector<24x8xbf16>, vector<8x32xbf16>, vector<24x32xf32> -> vector<24x32xf32>
    %167 = arith.addf %123, %166 : vector<24x32xf32>
    %c0_121 = arith.constant 0 : index
    %c3 = arith.constant 3 : index
    %c0_122 = arith.constant 0 : index
    %c0_123 = arith.constant 0 : index
    %168 = vector.load %arg9[%c0_121, %c3, %c0_122, %c0_123] : memref<1x4x32x8xbf16, #tpu.memory_space<vmem>>, vector<1x1x32x8xbf16>
    %169 = vector.shape_cast %168 : vector<1x1x32x8xbf16> to vector<32x8xbf16>
    %cst_124 = arith.constant dense<0.000000e+00> : vector<24x8xf32>
    %170 = tpu.matmul %28, %169, %cst_124 {dimension_numbers = #tpu.dot_dimension_numbers<[1], [0], [0], [1], [0, 0, 1, 1], [], []>} : vector<24x32xbf16>, vector<32x8xbf16>, vector<24x8xf32> -> vector<24x8xf32>
    %c0_125 = arith.constant 0 : index
    %c3_126 = arith.constant 3 : index
    %c0_127 = arith.constant 0 : index
    %c0_128 = arith.constant 0 : index
    %171 = vector.load %arg10[%c0_125, %c3_126, %c0_127, %c0_128] : memref<1x4x1x8xf32, #tpu.memory_space<vmem>>, vector<1x1x1x8xf32>
    %172 = vector.shape_cast %171 : vector<1x1x1x8xf32> to vector<1x8xf32>
    %173 = vector.broadcast %172 : vector<1x8xf32> to vector<24x8xf32>
    %174 = arith.addf %170, %173 : vector<24x8xf32>
    %175 = arith.truncf %174 : vector<24x8xf32> to vector<24x8xbf16>
    %c0_129 = arith.constant 0 : index
    %c3_130 = arith.constant 3 : index
    %c0_131 = arith.constant 0 : index
    %c0_132 = arith.constant 0 : index
    %176 = vector.load %arg11[%c0_129, %c3_130, %c0_131, %c0_132] : memref<1x4x32x8xbf16, #tpu.memory_space<vmem>>, vector<1x1x32x8xbf16>
    %177 = vector.shape_cast %176 : vector<1x1x32x8xbf16> to vector<32x8xbf16>
    %cst_133 = arith.constant dense<0.000000e+00> : vector<24x8xf32>
    %178 = tpu.matmul %28, %177, %cst_133 {dimension_numbers = #tpu.dot_dimension_numbers<[1], [0], [0], [1], [0, 0, 1, 1], [], []>} : vector<24x32xbf16>, vector<32x8xbf16>, vector<24x8xf32> -> vector<24x8xf32>
    %c0_134 = arith.constant 0 : index
    %c3_135 = arith.constant 3 : index
    %c0_136 = arith.constant 0 : index
    %c0_137 = arith.constant 0 : index
    %179 = vector.load %arg12[%c0_134, %c3_135, %c0_136, %c0_137] : memref<1x4x1x8xf32, #tpu.memory_space<vmem>>, vector<1x1x1x8xf32>
    %180 = vector.shape_cast %179 : vector<1x1x1x8xf32> to vector<1x8xf32>
    %181 = vector.broadcast %180 : vector<1x8xf32> to vector<24x8xf32>
    %182 = arith.addf %178, %181 : vector<24x8xf32>
    %183 = arith.truncf %182 : vector<24x8xf32> to vector<24x8xbf16>
    %c0_138 = arith.constant 0 : index
    %c3_139 = arith.constant 3 : index
    %c0_140 = arith.constant 0 : index
    %c0_141 = arith.constant 0 : index
    %184 = vector.load %arg13[%c0_138, %c3_139, %c0_140, %c0_141] : memref<1x4x32x8xbf16, #tpu.memory_space<vmem>>, vector<1x1x32x8xbf16>
    %185 = vector.shape_cast %184 : vector<1x1x32x8xbf16> to vector<32x8xbf16>
    %cst_142 = arith.constant dense<0.000000e+00> : vector<24x8xf32>
    %186 = tpu.matmul %28, %185, %cst_142 {dimension_numbers = #tpu.dot_dimension_numbers<[1], [0], [0], [1], [0, 0, 1, 1], [], []>} : vector<24x32xbf16>, vector<32x8xbf16>, vector<24x8xf32> -> vector<24x8xf32>
    %c0_143 = arith.constant 0 : index
    %c3_144 = arith.constant 3 : index
    %c0_145 = arith.constant 0 : index
    %c0_146 = arith.constant 0 : index
    %187 = vector.load %arg14[%c0_143, %c3_144, %c0_145, %c0_146] : memref<1x4x1x8xf32, #tpu.memory_space<vmem>>, vector<1x1x1x8xf32>
    %188 = vector.shape_cast %187 : vector<1x1x1x8xf32> to vector<1x8xf32>
    %189 = vector.broadcast %188 : vector<1x8xf32> to vector<24x8xf32>
    %190 = arith.addf %186, %189 : vector<24x8xf32>
    %191 = arith.truncf %190 : vector<24x8xf32> to vector<24x8xbf16>
    %cst_147 = arith.constant dense<0.000000e+00> : vector<24x24xf32>
    %192 = tpu.matmul %175, %183, %cst_147 {dimension_numbers = #tpu.dot_dimension_numbers<[1], [1], [0], [0], [0, 0, 1, 0], [], []>} : vector<24x8xbf16>, vector<24x8xbf16>, vector<24x24xf32> -> vector<24x24xf32>
    %193 = vector.broadcast %34 : vector<1x24xf32> to vector<24x24xf32>
    %194 = arith.addf %192, %193 : vector<24x24xf32>
    %cst_148 = arith.constant dense<0xFF800000> : vector<24xf32>
    %195 = vector.multi_reduction <maximumf>, %194, %cst_148 [1] : vector<24x24xf32> to vector<24xf32>
    %196 = vector.shape_cast %195 : vector<24xf32> to vector<24x1xf32>
    %197 = vector.broadcast %196 : vector<24x1xf32> to vector<24x24xf32>
    %198 = arith.subf %194, %197 : vector<24x24xf32>
    %199 = math.exp %198 : vector<24x24xf32>
    %cst_149 = arith.constant dense<0.000000e+00> : vector<24xf32>
    %200 = vector.multi_reduction <add>, %199, %cst_149 [1] : vector<24x24xf32> to vector<24xf32>
    %201 = vector.shape_cast %200 : vector<24xf32> to vector<24x1xf32>
    %202 = tpu.reciprocal %201 {approx = true} : vector<24x1xf32> -> vector<24x1xf32>
    %203 = vector.broadcast %202 : vector<24x1xf32> to vector<24x24xf32>
    %204 = arith.mulf %199, %203 : vector<24x24xf32>
    %205 = arith.truncf %204 : vector<24x24xf32> to vector<24x24xbf16>
    %cst_150 = arith.constant dense<0.000000e+00> : vector<24x8xf32>
    %206 = tpu.matmul %205, %191, %cst_150 {dimension_numbers = #tpu.dot_dimension_numbers<[1], [0], [0], [1], [0, 0, 1, 1], [], []>} : vector<24x24xbf16>, vector<24x8xbf16>, vector<24x8xf32> -> vector<24x8xf32>
    %207 = arith.truncf %206 : vector<24x8xf32> to vector<24x8xbf16>
    %c0_151 = arith.constant 0 : index
    %c3_152 = arith.constant 3 : index
    %c0_153 = arith.constant 0 : index
    %c0_154 = arith.constant 0 : index
    %208 = vector.load %arg15[%c0_151, %c3_152, %c0_153, %c0_154] : memref<1x4x8x32xbf16, #tpu.memory_space<vmem>>, vector<1x1x8x32xbf16>
    %209 = vector.shape_cast %208 : vector<1x1x8x32xbf16> to vector<8x32xbf16>
    %cst_155 = arith.constant dense<0.000000e+00> : vector<24x32xf32>
    %210 = tpu.matmul %207, %209, %cst_155 {dimension_numbers = #tpu.dot_dimension_numbers<[1], [0], [0], [1], [0, 0, 1, 1], [], []>} : vector<24x8xbf16>, vector<8x32xbf16>, vector<24x32xf32> -> vector<24x32xf32>
    %211 = arith.addf %167, %210 : vector<24x32xf32>
    %212 = arith.addf %3, %211 : vector<24x32xf32>
    %c0_156 = arith.constant 0 : index
    %c0_157 = arith.constant 0 : index
    %c0_158 = arith.constant 0 : index
    %213 = vector.load %arg16[%c0_156, %c0_157, %c0_158] : memref<1x1x32xf32, #tpu.memory_space<vmem>>, vector<1x1x32xf32>
    %214 = vector.shape_cast %213 : vector<1x1x32xf32> to vector<1x32xf32>
    %215 = vector.broadcast %214 : vector<1x32xf32> to vector<24x32xf32>
    %216 = arith.addf %212, %215 : vector<24x32xf32>
    %c0_159 = arith.constant 0 : index
    %c0_160 = arith.constant 0 : index
    %c0_161 = arith.constant 0 : index
    %217 = vector.load %arg17[%c0_159, %c0_160, %c0_161] : memref<1x1x32xf32, #tpu.memory_space<vmem>>, vector<1x1x32xf32>
    %218 = vector.shape_cast %217 : vector<1x1x32xf32> to vector<1x32xf32>
    %c0_162 = arith.constant 0 : index
    %c0_163 = arith.constant 0 : index
    %c0_164 = arith.constant 0 : index
    %219 = vector.load %arg18[%c0_162, %c0_163, %c0_164] : memref<1x1x32xf32, #tpu.memory_space<vmem>>, vector<1x1x32xf32>
    %220 = vector.shape_cast %219 : vector<1x1x32xf32> to vector<1x32xf32>
    %cst_165 = arith.constant dense<0.000000e+00> : vector<24xf32>
    %221 = vector.multi_reduction <add>, %216, %cst_165 [1] : vector<24x32xf32> to vector<24xf32>
    %222 = vector.shape_cast %221 : vector<24xf32> to vector<24x1xf32>
    %cst_166 = arith.constant 3.200000e+01 : f32
    %223 = vector.broadcast %cst_166 : f32 to vector<24x1xf32>
    %224 = arith.divf %222, %223 : vector<24x1xf32>
    %225 = vector.broadcast %224 : vector<24x1xf32> to vector<24x32xf32>
    %226 = arith.subf %216, %225 : vector<24x32xf32>
    %227 = arith.mulf %226, %226 : vector<24x32xf32>
    %cst_167 = arith.constant dense<0.000000e+00> : vector<24xf32>
    %228 = vector.multi_reduction <add>, %227, %cst_167 [1] : vector<24x32xf32> to vector<24xf32>
    %229 = vector.shape_cast %228 : vector<24xf32> to vector<24x1xf32>
    %cst_168 = arith.constant 3.200000e+01 : f32
    %230 = vector.broadcast %cst_168 : f32 to vector<24x1xf32>
    %231 = arith.divf %229, %230 : vector<24x1xf32>
    %cst_169 = arith.constant 9.99999997E-7 : f32
    %232 = vector.broadcast %cst_169 : f32 to vector<24x1xf32>
    %233 = arith.addf %231, %232 : vector<24x1xf32>
    %234 = math.rsqrt %233 : vector<24x1xf32>
    %235 = vector.broadcast %234 : vector<24x1xf32> to vector<24x32xf32>
    %236 = arith.mulf %226, %235 : vector<24x32xf32>
    %237 = vector.broadcast %218 : vector<1x32xf32> to vector<24x32xf32>
    %238 = arith.mulf %236, %237 : vector<24x32xf32>
    %239 = vector.broadcast %220 : vector<1x32xf32> to vector<24x32xf32>
    %240 = arith.addf %238, %239 : vector<24x32xf32>
    %241 = arith.truncf %240 : vector<24x32xf32> to vector<24x32xbf16>
    %c0_170 = arith.constant 0 : index
    %c0_171 = arith.constant 0 : index
    %c0_172 = arith.constant 0 : index
    %242 = vector.load %arg19[%c0_170, %c0_171, %c0_172] : memref<1x32x128xbf16, #tpu.memory_space<vmem>>, vector<1x32x128xbf16>
    %243 = vector.shape_cast %242 : vector<1x32x128xbf16> to vector<32x128xbf16>
    %cst_173 = arith.constant dense<0.000000e+00> : vector<24x128xf32>
    %244 = tpu.matmul %241, %243, %cst_173 {dimension_numbers = #tpu.dot_dimension_numbers<[1], [0], [0], [1], [0, 0, 1, 1], [], []>} : vector<24x32xbf16>, vector<32x128xbf16>, vector<24x128xf32> -> vector<24x128xf32>
    %c0_174 = arith.constant 0 : index
    %c0_175 = arith.constant 0 : index
    %c0_176 = arith.constant 0 : index
    %245 = vector.load %arg20[%c0_174, %c0_175, %c0_176] : memref<1x1x128xf32, #tpu.memory_space<vmem>>, vector<1x1x128xf32>
    %246 = vector.shape_cast %245 : vector<1x1x128xf32> to vector<1x128xf32>
    %247 = vector.broadcast %246 : vector<1x128xf32> to vector<24x128xf32>
    %248 = arith.addf %244, %247 : vector<24x128xf32>
    %cst_177 = arith.constant 5.000000e-01 : f32
    %249 = vector.broadcast %cst_177 : f32 to vector<24x128xf32>
    %250 = arith.mulf %249, %248 : vector<24x128xf32>
    %cst_178 = arith.constant 4.471500e-02 : f32
    %251 = vector.broadcast %cst_178 : f32 to vector<24x128xf32>
    %252 = arith.mulf %251, %248 : vector<24x128xf32>
    %253 = arith.mulf %252, %248 : vector<24x128xf32>
    %254 = arith.mulf %253, %248 : vector<24x128xf32>
    %255 = arith.addf %248, %254 : vector<24x128xf32>
    %cst_179 = arith.constant 0.797884583 : f32
    %256 = vector.broadcast %cst_179 : f32 to vector<24x128xf32>
    %257 = arith.mulf %256, %255 : vector<24x128xf32>
    %258 = math.tanh %257 : vector<24x128xf32>
    %cst_180 = arith.constant 1.000000e+00 : f32
    %259 = vector.broadcast %cst_180 : f32 to vector<24x128xf32>
    %260 = arith.addf %259, %258 : vector<24x128xf32>
    %261 = arith.mulf %250, %260 : vector<24x128xf32>
    %262 = arith.truncf %261 : vector<24x128xf32> to vector<24x128xbf16>
    %c0_181 = arith.constant 0 : index
    %c0_182 = arith.constant 0 : index
    %c0_183 = arith.constant 0 : index
    %263 = vector.load %arg21[%c0_181, %c0_182, %c0_183] : memref<1x128x32xbf16, #tpu.memory_space<vmem>>, vector<1x128x32xbf16>
    %264 = vector.shape_cast %263 : vector<1x128x32xbf16> to vector<128x32xbf16>
    %cst_184 = arith.constant dense<0.000000e+00> : vector<24x32xf32>
    %265 = tpu.matmul %262, %264, %cst_184 {dimension_numbers = #tpu.dot_dimension_numbers<[1], [0], [0], [1], [0, 0, 1, 1], [], []>} : vector<24x128xbf16>, vector<128x32xbf16>, vector<24x32xf32> -> vector<24x32xf32>
    %c0_185 = arith.constant 0 : index
    %c0_186 = arith.constant 0 : index
    %c0_187 = arith.constant 0 : index
    %266 = vector.load %arg22[%c0_185, %c0_186, %c0_187] : memref<1x1x32xf32, #tpu.memory_space<vmem>>, vector<1x1x32xf32>
    %267 = vector.shape_cast %266 : vector<1x1x32xf32> to vector<1x32xf32>
    %268 = vector.broadcast %267 : vector<1x32xf32> to vector<24x32xf32>
    %269 = arith.addf %265, %268 : vector<24x32xf32>
    %270 = arith.addf %216, %269 : vector<24x32xf32>
    %c0_188 = arith.constant 0 : index
    %c0_189 = arith.constant 0 : index
    %271 = vector.load %arg28[%c0_188, %c0_189] : memref<24x32xf32, #tpu.memory_space<vmem>>, vector<24x32xf32>
    tpu.vector_store %arg28[%c0_188, %c0_189], %270 {strides = array<i32>} : memref<24x32xf32, #tpu.memory_space<vmem>>, vector<24x32xf32>,
    %c1_i32 = arith.constant 1 : i32
    %272 = arith.cmpi eq, %arg1, %c1_i32 : i32
    %273 = arith.extui %272 : i1 to i32
    %c0_i32_190 = arith.constant 0 : i32
    %274 = arith.cmpi ne, %273, %c0_i32_190 : i32
    scf.if %274 {
      %275 = vector.extract_strided_slice %270 {offsets = [0, 0], sizes = [1, 32], strides = [1, 1]} : vector<24x32xf32> to vector<1x32xf32>
      %c0_191 = arith.constant 0 : index
      %c0_192 = arith.constant 0 : index
      %276 = vector.load %arg23[%c0_191, %c0_192] : memref<1x32xf32, #tpu.memory_space<vmem>>, vector<1x32xf32>
      %c0_193 = arith.constant 0 : index
      %c0_194 = arith.constant 0 : index
      %277 = vector.load %arg24[%c0_193, %c0_194] : memref<1x32xf32, #tpu.memory_space<vmem>>, vector<1x32xf32>
      %cst_195 = arith.constant dense<0.000000e+00> : vector<1xf32>
      %278 = vector.multi_reduction <add>, %275, %cst_195 [1] : vector<1x32xf32> to vector<1xf32>
      %279 = vector.shape_cast %278 : vector<1xf32> to vector<1x1xf32>
      %cst_196 = arith.constant 3.200000e+01 : f32
      %280 = vector.broadcast %cst_196 : f32 to vector<1x1xf32>
      %281 = arith.divf %279, %280 : vector<1x1xf32>
      %282 = vector.broadcast %281 : vector<1x1xf32> to vector<1x32xf32>
      %283 = arith.subf %275, %282 : vector<1x32xf32>
      %284 = arith.mulf %283, %283 : vector<1x32xf32>
      %cst_197 = arith.constant dense<0.000000e+00> : vector<1xf32>
      %285 = vector.multi_reduction <add>, %284, %cst_197 [1] : vector<1x32xf32> to vector<1xf32>
      %286 = vector.shape_cast %285 : vector<1xf32> to vector<1x1xf32>
      %cst_198 = arith.constant 3.200000e+01 : f32
      %287 = vector.broadcast %cst_198 : f32 to vector<1x1xf32>
      %288 = arith.divf %286, %287 : vector<1x1xf32>
      %cst_199 = arith.constant 9.99999997E-7 : f32
      %289 = vector.broadcast %cst_199 : f32 to vector<1x1xf32>
      %290 = arith.addf %288, %289 : vector<1x1xf32>
      %291 = math.rsqrt %290 : vector<1x1xf32>
      %292 = vector.broadcast %291 : vector<1x1xf32> to vector<1x32xf32>
      %293 = arith.mulf %283, %292 : vector<1x32xf32>
      %294 = arith.mulf %293, %276 : vector<1x32xf32>
      %295 = arith.addf %294, %277 : vector<1x32xf32>
      %296 = arith.truncf %295 : vector<1x32xf32> to vector<1x32xbf16>
      %c0_200 = arith.constant 0 : index
      %c0_201 = arith.constant 0 : index
      %297 = vector.load %arg25[%c0_200, %c0_201] : memref<32x128xbf16, #tpu.memory_space<vmem>>, vector<32x128xbf16>
      %cst_202 = arith.constant dense<0.000000e+00> : vector<1x128xf32>
      %298 = tpu.matmul %296, %297, %cst_202 {dimension_numbers = #tpu.dot_dimension_numbers<[1], [0], [0], [1], [0, 0, 1, 1], [], []>} : vector<1x32xbf16>, vector<32x128xbf16>, vector<1x128xf32> -> vector<1x128xf32>
      %c0_203 = arith.constant 0 : index
      %c0_204 = arith.constant 0 : index
      %299 = vector.load %arg26[%c0_203, %c0_204] : memref<1x128xf32, #tpu.memory_space<vmem>>, vector<1x128xf32>
      %300 = arith.addf %298, %299 : vector<1x128xf32>
      %c0_205 = arith.constant 0 : index
      %c0_206 = arith.constant 0 : index
      %c0_207 = arith.constant 0 : index
      %301 = vector.load %arg27[%c0_205, %c0_206, %c0_207] : memref<1x1x128xf32, #tpu.memory_space<vmem>>, vector<1x1x128xf32>
      %302 = vector.shape_cast %301 : vector<1x1x128xf32> to vector<1x128xf32>
      %303 = vector.shape_cast %300 : vector<1x128xf32> to vector<1x1x128xf32>
      tpu.vector_store %arg27[%c0_205, %c0_206, %c0_207], %303 {strides = array<i32>} : memref<1x1x128xf32, #tpu.memory_space<vmem>>, vector<1x1x128xf32>,
    } else {
    }
    return
  }
  func.func @transform_0(%arg0: i32, %arg1: i32) -> (i32, i32, i32) {
    %c0_i32 = arith.constant 0 : i32
    %c0_i32_0 = arith.constant 0 : i32
    %c0_i32_1 = arith.constant 0 : i32
    return %arg0, %c0_i32, %c0_i32_0 : i32, i32, i32
  }
  func.func @transform_1(%arg0: i32, %arg1: i32) -> (i32, i32) {
    %c0_i32 = arith.constant 0 : i32
    %c0_i32_0 = arith.constant 0 : i32
    %c0_i32_1 = arith.constant 0 : i32
    return %c0_i32, %c0_i32_0 : i32, i32
  }
  func.func @transform_2(%arg0: i32, %arg1: i32) -> (i32, i32) {
    %c0_i32 = arith.constant 0 : i32
    %c0_i32_0 = arith.constant 0 : i32
    %c0_i32_1 = arith.constant 0 : i32
    return %c0_i32, %c0_i32_0 : i32, i32
  }
  func.func @transform_3(%arg0: i32, %arg1: i32) -> (i32, i32) {
    %c0_i32 = arith.constant 0 : i32
    %c0_i32_0 = arith.constant 0 : i32
    %c0_i32_1 = arith.constant 0 : i32
    return %c0_i32, %c0_i32_0 : i32, i32
  }
  func.func @transform_4(%arg0: i32, %arg1: i32) -> (i32, i32, i32) {
    %c0_i32 = arith.constant 0 : i32
    %c0_i32_0 = arith.constant 0 : i32
    %c0_i32_1 = arith.constant 0 : i32
    %c0_i32_2 = arith.constant 0 : i32
    return %c0_i32, %c0_i32_0, %c0_i32_1 : i32, i32, i32
  }
  func.func @transform_5(%arg0: i32, %arg1: i32) -> (i32, i32, i32) {
    %c0_i32 = arith.constant 0 : i32
    %c0_i32_0 = arith.constant 0 : i32
    %c0_i32_1 = arith.constant 0 : i32
    return %arg1, %c0_i32, %c0_i32_0 : i32, i32, i32
  }
  func.func @transform_6(%arg0: i32, %arg1: i32) -> (i32, i32, i32) {
    %c0_i32 = arith.constant 0 : i32
    %c0_i32_0 = arith.constant 0 : i32
    %c0_i32_1 = arith.constant 0 : i32
    return %arg1, %c0_i32, %c0_i32_0 : i32, i32, i32
  }
  func.func @transform_7(%arg0: i32, %arg1: i32) -> (i32, i32, i32, i32) {
    %c0_i32 = arith.constant 0 : i32
    %c0_i32_0 = arith.constant 0 : i32
    %c0_i32_1 = arith.constant 0 : i32
    %c0_i32_2 = arith.constant 0 : i32
    return %arg1, %c0_i32, %c0_i32_0, %c0_i32_1 : i32, i32, i32, i32
  }
  func.func @transform_8(%arg0: i32, %arg1: i32) -> (i32, i32, i32, i32) {
    %c0_i32 = arith.constant 0 : i32
    %c0_i32_0 = arith.constant 0 : i32
    %c0_i32_1 = arith.constant 0 : i32
    %c0_i32_2 = arith.constant 0 : i32
    return %arg1, %c0_i32, %c0_i32_0, %c0_i32_1 : i32, i32, i32, i32
  }
  func.func @transform_9(%arg0: i32, %arg1: i32) -> (i32, i32, i32, i32) {
    %c0_i32 = arith.constant 0 : i32
    %c0_i32_0 = arith.constant 0 : i32
    %c0_i32_1 = arith.constant 0 : i32
    %c0_i32_2 = arith.constant 0 : i32
    return %arg1, %c0_i32, %c0_i32_0, %c0_i32_1 : i32, i32, i32, i32
  }
  func.func @transform_10(%arg0: i32, %arg1: i32) -> (i32, i32, i32, i32) {
    %c0_i32 = arith.constant 0 : i32
    %c0_i32_0 = arith.constant 0 : i32
    %c0_i32_1 = arith.constant 0 : i32
    %c0_i32_2 = arith.constant 0 : i32
    return %arg1, %c0_i32, %c0_i32_0, %c0_i32_1 : i32, i32, i32, i32
  }
  func.func @transform_11(%arg0: i32, %arg1: i32) -> (i32, i32, i32, i32) {
    %c0_i32 = arith.constant 0 : i32
    %c0_i32_0 = arith.constant 0 : i32
    %c0_i32_1 = arith.constant 0 : i32
    %c0_i32_2 = arith.constant 0 : i32
    return %arg1, %c0_i32, %c0_i32_0, %c0_i32_1 : i32, i32, i32, i32
  }
  func.func @transform_12(%arg0: i32, %arg1: i32) -> (i32, i32, i32, i32) {
    %c0_i32 = arith.constant 0 : i32
    %c0_i32_0 = arith.constant 0 : i32
    %c0_i32_1 = arith.constant 0 : i32
    %c0_i32_2 = arith.constant 0 : i32
    return %arg1, %c0_i32, %c0_i32_0, %c0_i32_1 : i32, i32, i32, i32
  }
  func.func @transform_13(%arg0: i32, %arg1: i32) -> (i32, i32, i32, i32) {
    %c0_i32 = arith.constant 0 : i32
    %c0_i32_0 = arith.constant 0 : i32
    %c0_i32_1 = arith.constant 0 : i32
    %c0_i32_2 = arith.constant 0 : i32
    return %arg1, %c0_i32, %c0_i32_0, %c0_i32_1 : i32, i32, i32, i32
  }
  func.func @transform_14(%arg0: i32, %arg1: i32) -> (i32, i32, i32) {
    %c0_i32 = arith.constant 0 : i32
    %c0_i32_0 = arith.constant 0 : i32
    %c0_i32_1 = arith.constant 0 : i32
    return %arg1, %c0_i32, %c0_i32_0 : i32, i32, i32
  }
  func.func @transform_15(%arg0: i32, %arg1: i32) -> (i32, i32, i32) {
    %c0_i32 = arith.constant 0 : i32
    %c0_i32_0 = arith.constant 0 : i32
    %c0_i32_1 = arith.constant 0 : i32
    return %arg1, %c0_i32, %c0_i32_0 : i32, i32, i32
  }
  func.func @transform_16(%arg0: i32, %arg1: i32) -> (i32, i32, i32) {
    %c0_i32 = arith.constant 0 : i32
    %c0_i32_0 = arith.constant 0 : i32
    %c0_i32_1 = arith.constant 0 : i32
    return %arg1, %c0_i32, %c0_i32_0 : i32, i32, i32
  }
  func.func @transform_17(%arg0: i32, %arg1: i32) -> (i32, i32, i32) {
    %c0_i32 = arith.constant 0 : i32
    %c0_i32_0 = arith.constant 0 : i32
    %c0_i32_1 = arith.constant 0 : i32
    return %arg1, %c0_i32, %c0_i32_0 : i32, i32, i32
  }
  func.func @transform_18(%arg0: i32, %arg1: i32) -> (i32, i32, i32) {
    %c0_i32 = arith.constant 0 : i32
    %c0_i32_0 = arith.constant 0 : i32
    %c0_i32_1 = arith.constant 0 : i32
    return %arg1, %c0_i32, %c0_i32_0 : i32, i32, i32
  }
  func.func @transform_19(%arg0: i32, %arg1: i32) -> (i32, i32, i32) {
    %c0_i32 = arith.constant 0 : i32
    %c0_i32_0 = arith.constant 0 : i32
    %c0_i32_1 = arith.constant 0 : i32
    return %arg1, %c0_i32, %c0_i32_0 : i32, i32, i32
  }
  func.func @transform_20(%arg0: i32, %arg1: i32) -> (i32, i32, i32) {
    %c0_i32 = arith.constant 0 : i32
    %c0_i32_0 = arith.constant 0 : i32
    %c0_i32_1 = arith.constant 0 : i32
    return %arg1, %c0_i32, %c0_i32_0 : i32, i32, i32
  }
  func.func @transform_21(%arg0: i32, %arg1: i32) -> (i32, i32) {
    %c0_i32 = arith.constant 0 : i32
    %c0_i32_0 = arith.constant 0 : i32
    %c0_i32_1 = arith.constant 0 : i32
    return %c0_i32, %c0_i32_0 : i32, i32
  }
  func.func @transform_22(%arg0: i32, %arg1: i32) -> (i32, i32) {
    %c0_i32 = arith.constant 0 : i32
    %c0_i32_0 = arith.constant 0 : i32
    %c0_i32_1 = arith.constant 0 : i32
    return %c0_i32, %c0_i32_0 : i32, i32
  }
  func.func @transform_23(%arg0: i32, %arg1: i32) -> (i32, i32) {
    %c0_i32 = arith.constant 0 : i32
    %c0_i32_0 = arith.constant 0 : i32
    %c0_i32_1 = arith.constant 0 : i32
    return %c0_i32, %c0_i32_0 : i32, i32
  }
  func.func @transform_24(%arg0: i32, %arg1: i32) -> (i32, i32) {
    %c0_i32 = arith.constant 0 : i32
    %c0_i32_0 = arith.constant 0 : i32
    %c0_i32_1 = arith.constant 0 : i32
    return %c0_i32, %c0_i32_0 : i32, i32
  }
  func.func @transform_25(%arg0: i32, %arg1: i32) -> (i32, i32, i32) {
    %c0_i32 = arith.constant 0 : i32
    %c0_i32_0 = arith.constant 0 : i32
    %c0_i32_1 = arith.constant 0 : i32
    return %arg0, %c0_i32, %c0_i32_0 : i32, i32, i32
  }
}

</mosaic_0001>

<llo_original>
// kernel: vit_forward.1
$region0: #{vit_forward.1}
  #allocation0 [shape = 'u32[]', space=smem, size = 0x4, offset = 0x4, fixed_abs, tag = 'smem constant byte address 0x4 - core index']
  #allocation1 [shape = 'u32[144,128]{1,0:T(1,128)}', space=vmem, size = 0x12000, scoped, tag = 'internal scratch']
  #allocation2 [shape = 'f32[24,32]{1,0:T(8,128)}', space=vmem, size = 0x3000, scoped, tag = 'scratch operand']
  %s0 = inlined_call_operand.vmem [shape: bf16[2,16,48], index: 0, kind: input, shape index: {}]
  %s1 = inlined_call_operand.vmem [shape: bf16[48,32], index: 1, kind: input, shape index: {}]
  %s2 = inlined_call_operand.vmem [shape: f32[1,32], index: 2, kind: input, shape index: {}]
  %s3 = inlined_call_operand.vmem [shape: f32[1,32], index: 3, kind: input, shape index: {}]
  %s4 = inlined_call_operand.vmem [shape: f32[1,24,32], index: 4, kind: input, shape index: {}]
  %s5 = inlined_call_operand.vmem [shape: f32[2,1,32], index: 5, kind: input, shape index: {}]
  %s6 = inlined_call_operand.vmem [shape: f32[2,1,32], index: 6, kind: input, shape index: {}]
  %s7 = inlined_call_operand.vmem [shape: bf16[2,4,32,8], index: 7, kind: input, shape index: {}]
  %s8 = inlined_call_operand.vmem [shape: f32[2,4,1,8], index: 8, kind: input, shape index: {}]
  %s9 = inlined_call_operand.vmem [shape: bf16[2,4,32,8], index: 9, kind: input, shape index: {}]
  %s10 = inlined_call_operand.vmem [shape: f32[2,4,1,8], index: 10, kind: input, shape index: {}]
  %s11 = inlined_call_operand.vmem [shape: bf16[2,4,32,8], index: 11, kind: input, shape index: {}]
  %s12 = inlined_call_operand.vmem [shape: f32[2,4,1,8], index: 12, kind: input, shape index: {}]
  %s13 = inlined_call_operand.vmem [shape: bf16[2,4,8,32], index: 13, kind: input, shape index: {}]
  %s14 = inlined_call_operand.vmem [shape: f32[2,1,32], index: 14, kind: input, shape index: {}]
  %s15 = inlined_call_operand.vmem [shape: f32[2,1,32], index: 15, kind: input, shape index: {}]
  %s16 = inlined_call_operand.vmem [shape: f32[2,1,32], index: 16, kind: input, shape index: {}]
  %s17 = inlined_call_operand.vmem [shape: bf16[2,32,128], index: 17, kind: input, shape index: {}]
  %s18 = inlined_call_operand.vmem [shape: f32[2,1,128], index: 18, kind: input, shape index: {}]
  %s19 = inlined_call_operand.vmem [shape: bf16[2,128,32], index: 19, kind: input, shape index: {}]
  %s20 = inlined_call_operand.vmem [shape: f32[2,1,32], index: 20, kind: input, shape index: {}]
  %s21 = inlined_call_operand.vmem [shape: f32[1,32], index: 21, kind: input, shape index: {}]
  %s22 = inlined_call_operand.vmem [shape: f32[1,32], index: 22, kind: input, shape index: {}]
  %s23 = inlined_call_operand.vmem [shape: bf16[32,128], index: 23, kind: input, shape index: {}]
  %s24 = inlined_call_operand.vmem [shape: f32[1,128], index: 24, kind: input, shape index: {}]
  %s25 = inlined_call_operand.hbm [shape: f32[2,1,128], index: 25, kind: output, shape index: {}]
  %s26 = sld [smem:[#allocation0]]
  $region141: #{vit_forward.1} parent=0
    _
  %s28 = ssub.s32 1, %s26
  %s29 = scalar_select 0, %s28, %s26
  $region1: #{vit_forward.1} parent=0
    #allocation3 [shape = 'u8[1024]{0}', space=vmem, size = 0x400, scoped, tag = 'output window, operand 0']
    #allocation4 [shape = 's32[2]{0}', space=sflag, size = 0x8, scoped, tag = 'scoped memory for vit_forward.1']
    %30 = vsyncpa [#allocation4], 0
    %s31 = scalar_lea.sflag [#allocation4], 1
    %32 = vsyncpa %s31, 0
    loop: start=0, step=1, limit=6
    $region2: #{vit_forward.1} parent=1 // loop_pre_header
      _
    $region3: #{vit_forward.1} parent=1 // loop_header
      %s34 = sphi 0, %s38
      %p35 = scmp.ge.s32.totalorder %s34, 6
      %s41 = sphi 0, %s53
      %s42 = sphi 0, %s49
      %s43 = sphi 0, %s41
      %s44 = sphi 0, %s42
      %s45 = sphi 0, %s43
      %s46 = sphi 0, %s44
      %s56 = sphi 0, %s58
      %s59 = sphi 0, %s56
      %s60 = sphi 0, %s59
      %s76 = sphi 0, %s60
      %s80 = sphi 0, %s80
      %s82 = sphi 0, %s80
      %s83 = sphi 0, %s82
      %s97 = sphi 0, %s83
      %s101 = sphi 0, %s101
      %s103 = sphi 0, %s101
      %s104 = sphi 0, %s103
      %s118 = sphi 0, %s104
      %s122 = sphi 0, %s122
      %s124 = sphi 0, %s122
      %s125 = sphi 0, %s124
      %s139 = sphi 0, %s125
      %s143 = sphi 0, %s143
      %s145 = sphi 0, %s143
      %s146 = sphi 0, %s145
      %s160 = sphi 0, %s146
      %s166 = sphi 0, %s168
      %s169 = sphi 0, %s166
      %s170 = sphi 0, %s169
      %s186 = sphi 0, %s170
      %s192 = sphi 0, %s194
      %s195 = sphi 0, %s192
      %s196 = sphi 0, %s195
      %s212 = sphi 0, %s196
      %s218 = sphi 0, %s220
      %s221 = sphi 0, %s218
      %s222 = sphi 0, %s221
      %s238 = sphi 0, %s222
      %s244 = sphi 0, %s246
      %s247 = sphi 0, %s244
      %s248 = sphi 0, %s247
      %s264 = sphi 0, %s248
      %s270 = sphi 0, %s272
      %s273 = sphi 0, %s270
      %s274 = sphi 0, %s273
      %s290 = sphi 0, %s274
      %s296 = sphi 0, %s298
      %s299 = sphi 0, %s296
      %s300 = sphi 0, %s299
      %s316 = sphi 0, %s300
      %s322 = sphi 0, %s324
      %s325 = sphi 0, %s322
      %s326 = sphi 0, %s325
      %s342 = sphi 0, %s326
      %s348 = sphi 0, %s350
      %s351 = sphi 0, %s348
      %s352 = sphi 0, %s351
      %s368 = sphi 0, %s352
      %s374 = sphi 0, %s376
      %s377 = sphi 0, %s374
      %s378 = sphi 0, %s377
      %s394 = sphi 0, %s378
      %s400 = sphi 0, %s402
      %s403 = sphi 0, %s400
      %s404 = sphi 0, %s403
      %s420 = sphi 0, %s404
      %s426 = sphi 0, %s428
      %s429 = sphi 0, %s426
      %s430 = sphi 0, %s429
      %s446 = sphi 0, %s430
      %s452 = sphi 0, %s454
      %s455 = sphi 0, %s452
      %s456 = sphi 0, %s455
      %s472 = sphi 0, %s456
      %s478 = sphi 0, %s480
      %s481 = sphi 0, %s478
      %s482 = sphi 0, %s481
      %s498 = sphi 0, %s482
      %s504 = sphi 0, %s506
      %s507 = sphi 0, %s504
      %s508 = sphi 0, %s507
      %s524 = sphi 0, %s508
      %s530 = sphi 0, %s532
      %s533 = sphi 0, %s530
      %s534 = sphi 0, %s533
      %s550 = sphi 0, %s534
      %s556 = sphi 0, %s558
      %s559 = sphi 0, %s556
      %s560 = sphi 0, %s559
      %s576 = sphi 0, %s560
      %s580 = sphi 0, %s580
      %s582 = sphi 0, %s580
      %s583 = sphi 0, %s582
      %s597 = sphi 0, %s583
      %s601 = sphi 0, %s601
      %s603 = sphi 0, %s601
      %s604 = sphi 0, %s603
      %s618 = sphi 0, %s604
      %s622 = sphi 0, %s622
      %s624 = sphi 0, %s622
      %s625 = sphi 0, %s624
      %s639 = sphi 0, %s625
      %s643 = sphi 0, %s643
      %s645 = sphi 0, %s643
      %s646 = sphi 0, %s645
      %s660 = sphi 0, %s646
      %s666 = sphi 0, %s668
      %s669 = sphi 0, %s666
      %s670 = sphi 0, %s669
      %s686 = sphi 0, %s670
    $region4: #{vit_forward.1} parent=1 // loop_header_branch
      %37 = sbr.rel (%p35) target = $region8
    $region5: #{vit_forward.1} parent=1 // loop_body
      %s39 = ssub.s32 %s34, 1
      %s40 = ssub.s32 %s34, 2
      %s47 = sadd.s32 1, %s42
      %p48 = scmp.ge.s32.totalorder %s47, 2
      %s49 = scalar_select %p48, 0, %s47
      %s50 = sadd.s32 1, %s41
      %s51 = scalar_select %p48, %s50, %s41
      %p52 = scmp.ge.s32.totalorder %s51, 2
      %s53 = scalar_select %p52, 0, %s51
      %s54 = ssub.s32 %s41, %s53
      %p55 = scmp.eq.s32.totalorder %s54, 0
      %s57 = sadd.s32 %s56, 1
      %s58 = scalar_select %p55, %s56, %s57
      %p61 = pneg %p55
      %p62 = scmp.eq.s32.totalorder %s34, 3
      %p63 = por %p61, %p62
      %p64 = scmp.ne.s32.totalorder %s56, %s59
      %p65 = scmp.eq.s32.totalorder %s34, 0
      %p66 = por %p64, %p65
      %p67 = scmp.ne.s32.totalorder %s56, %s59
      %p68 = scmp.eq.s32.totalorder %s39, 3
      %p69 = por %p67, %p68
      %p70 = scmp.ne.s32.totalorder %s59, %s60
      %p71 = scmp.eq.s32.totalorder %s39, 0
      %p72 = por %p70, %p71
      %p73 = scmp.ne.s32.totalorder %s59, %s60
      %p74 = scmp.eq.s32.totalorder %s40, 3
      %p75 = por %p73, %p74
      %p77 = scmp.ne.s32.totalorder %s60, %s76
      %p78 = scmp.eq.s32.totalorder %s40, 0
      %p79 = por %p77, %p78
      %s81 = sadd.s32 %s80, 1
      %p84 = scmp.eq.s32.totalorder %s34, 3
      %p85 = scmp.ne.s32.totalorder %s80, %s82
      %p86 = scmp.eq.s32.totalorder %s34, 0
      %p87 = por %p85, %p86
      %p88 = scmp.ne.s32.totalorder %s80, %s82
      %p89 = scmp.eq.s32.totalorder %s39, 3
      %p90 = por %p88, %p89
      %p91 = scmp.ne.s32.totalorder %s82, %s83
      %p92 = scmp.eq.s32.totalorder %s39, 0
      %p93 = por %p91, %p92
      %p94 = scmp.ne.s32.totalorder %s82, %s83
      %p95 = scmp.eq.s32.totalorder %s40, 3
      %p96 = por %p94, %p95
      %p98 = scmp.ne.s32.totalorder %s83, %s97
      %p99 = scmp.eq.s32.totalorder %s40, 0
      %p100 = por %p98, %p99
      %s102 = sadd.s32 %s101, 1
      %p105 = scmp.eq.s32.totalorder %s34, 3
      %p106 = scmp.ne.s32.totalorder %s101, %s103
      %p107 = scmp.eq.s32.totalorder %s34, 0
      %p108 = por %p106, %p107
      %p109 = scmp.ne.s32.totalorder %s101, %s103
      %p110 = scmp.eq.s32.totalorder %s39, 3
      %p111 = por %p109, %p110
      %p112 = scmp.ne.s32.totalorder %s103, %s104
      %p113 = scmp.eq.s32.totalorder %s39, 0
      %p114 = por %p112, %p113
      %p115 = scmp.ne.s32.totalorder %s103, %s104
      %p116 = scmp.eq.s32.totalorder %s40, 3
      %p117 = por %p115, %p116
      %p119 = scmp.ne.s32.totalorder %s104, %s118
      %p120 = scmp.eq.s32.totalorder %s40, 0
      %p121 = por %p119, %p120
      %s123 = sadd.s32 %s122, 1
      %p126 = scmp.eq.s32.totalorder %s34, 3
      %p127 = scmp.ne.s32.totalorder %s122, %s124
      %p128 = scmp.eq.s32.totalorder %s34, 0
      %p129 = por %p127, %p128
      %p130 = scmp.ne.s32.totalorder %s122, %s124
      %p131 = scmp.eq.s32.totalorder %s39, 3
      %p132 = por %p130, %p131
      %p133 = scmp.ne.s32.totalorder %s124, %s125
      %p134 = scmp.eq.s32.totalorder %s39, 0
      %p135 = por %p133, %p134
      %p136 = scmp.ne.s32.totalorder %s124, %s125
      %p137 = scmp.eq.s32.totalorder %s40, 3
      %p138 = por %p136, %p137
      %p140 = scmp.ne.s32.totalorder %s125, %s139
      %p141 = scmp.eq.s32.totalorder %s40, 0
      %p142 = por %p140, %p141
      %s144 = sadd.s32 %s143, 1
      %p147 = scmp.eq.s32.totalorder %s34, 3
      %p148 = scmp.ne.s32.totalorder %s143, %s145
      %p149 = scmp.eq.s32.totalorder %s34, 0
      %p150 = por %p148, %p149
      %p151 = scmp.ne.s32.totalorder %s143, %s145
      %p152 = scmp.eq.s32.totalorder %s39, 3
      %p153 = por %p151, %p152
      %p154 = scmp.ne.s32.totalorder %s145, %s146
      %p155 = scmp.eq.s32.totalorder %s39, 0
      %p156 = por %p154, %p155
      %p157 = scmp.ne.s32.totalorder %s145, %s146
      %p158 = scmp.eq.s32.totalorder %s40, 3
      %p159 = por %p157, %p158
      %p161 = scmp.ne.s32.totalorder %s146, %s160
      %p162 = scmp.eq.s32.totalorder %s40, 0
      %p163 = por %p161, %p162
      %s164 = ssub.s32 %s42, %s49
      %p165 = scmp.eq.s32.totalorder %s164, 0
      %s167 = sadd.s32 %s166, 1
      %s168 = scalar_select %p165, %s166, %s167
      %p171 = pneg %p165
      %p172 = scmp.eq.s32.totalorder %s34, 3
      %p173 = por %p171, %p172
      %p174 = scmp.ne.s32.totalorder %s166, %s169
      %p175 = scmp.eq.s32.totalorder %s34, 0
      %p176 = por %p174, %p175
      %p177 = scmp.ne.s32.totalorder %s166, %s169
      %p178 = scmp.eq.s32.totalorder %s39, 3
      %p179 = por %p177, %p178
      %p180 = scmp.ne.s32.totalorder %s169, %s170
      %p181 = scmp.eq.s32.totalorder %s39, 0
      %p182 = por %p180, %p181
      %p183 = scmp.ne.s32.totalorder %s169, %s170
      %p184 = scmp.eq.s32.totalorder %s40, 3
      %p185 = por %p183, %p184
      %p187 = scmp.ne.s32.totalorder %s170, %s186
      %p188 = scmp.eq.s32.totalorder %s40, 0
      %p189 = por %p187, %p188
      %s190 = ssub.s32 %s42, %s49
      %p191 = scmp.eq.s32.totalorder %s190, 0
      %s193 = sadd.s32 %s192, 1
      %s194 = scalar_select %p191, %s192, %s193
      %p197 = pneg %p191
      %p198 = scmp.eq.s32.totalorder %s34, 3
      %p199 = por %p197, %p198
      %p200 = scmp.ne.s32.totalorder %s192, %s195
      %p201 = scmp.eq.s32.totalorder %s34, 0
      %p202 = por %p200, %p201
      %p203 = scmp.ne.s32.totalorder %s192, %s195
      %p204 = scmp.eq.s32.totalorder %s39, 3
      %p205 = por %p203, %p204
      %p206 = scmp.ne.s32.totalorder %s195, %s196
      %p207 = scmp.eq.s32.totalorder %s39, 0
      %p208 = por %p206, %p207
      %p209 = scmp.ne.s32.totalorder %s195, %s196
      %p210 = scmp.eq.s32.totalorder %s40, 3
      %p211 = por %p209, %p210
      %p213 = scmp.ne.s32.totalorder %s196, %s212
      %p214 = scmp.eq.s32.totalorder %s40, 0
      %p215 = por %p213, %p214
      %s216 = ssub.s32 %s42, %s49
      %p217 = scmp.eq.s32.totalorder %s216, 0
      %s219 = sadd.s32 %s218, 1
      %s220 = scalar_select %p217, %s218, %s219
      %p223 = pneg %p217
      %p224 = scmp.eq.s32.totalorder %s34, 3
      %p225 = por %p223, %p224
      %p226 = scmp.ne.s32.totalorder %s218, %s221
      %p227 = scmp.eq.s32.totalorder %s34, 0
      %p228 = por %p226, %p227
      %p229 = scmp.ne.s32.totalorder %s218, %s221
      %p230 = scmp.eq.s32.totalorder %s39, 3
      %p231 = por %p229, %p230
      %p232 = scmp.ne.s32.totalorder %s221, %s222
      %p233 = scmp.eq.s32.totalorder %s39, 0
      %p234 = por %p232, %p233
      %p235 = scmp.ne.s32.totalorder %s221, %s222
      %p236 = scmp.eq.s32.totalorder %s40, 3
      %p237 = por %p235, %p236
      %p239 = scmp.ne.s32.totalorder %s222, %s238
      %p240 = scmp.eq.s32.totalorder %s40, 0
      %p241 = por %p239, %p240
      %s242 = ssub.s32 %s42, %s49
      %p243 = scmp.eq.s32.totalorder %s242, 0
      %s245 = sadd.s32 %s244, 1
      %s246 = scalar_select %p243, %s244, %s245
      %p249 = pneg %p243
      %p250 = scmp.eq.s32.totalorder %s34, 3
      %p251 = por %p249, %p250
      %p252 = scmp.ne.s32.totalorder %s244, %s247
      %p253 = scmp.eq.s32.totalorder %s34, 0
      %p254 = por %p252, %p253
      %p255 = scmp.ne.s32.totalorder %s244, %s247
      %p256 = scmp.eq.s32.totalorder %s39, 3
      %p257 = por %p255, %p256
      %p258 = scmp.ne.s32.totalorder %s247, %s248
      %p259 = scmp.eq.s32.totalorder %s39, 0
      %p260 = por %p258, %p259
      %p261 = scmp.ne.s32.totalorder %s247, %s248
      %p262 = scmp.eq.s32.totalorder %s40, 3
      %p263 = por %p261, %p262
      %p265 = scmp.ne.s32.totalorder %s248, %s264
      %p266 = scmp.eq.s32.totalorder %s40, 0
      %p267 = por %p265, %p266
      %s268 = ssub.s32 %s42, %s49
      %p269 = scmp.eq.s32.totalorder %s268, 0
      %s271 = sadd.s32 %s270, 1
      %s272 = scalar_select %p269, %s270, %s271
      %p275 = pneg %p269
      %p276 = scmp.eq.s32.totalorder %s34, 3
      %p277 = por %p275, %p276
      %p278 = scmp.ne.s32.totalorder %s270, %s273
      %p279 = scmp.eq.s32.totalorder %s34, 0
      %p280 = por %p278, %p279
      %p281 = scmp.ne.s32.totalorder %s270, %s273
      %p282 = scmp.eq.s32.totalorder %s39, 3
      %p283 = por %p281, %p282
      %p284 = scmp.ne.s32.totalorder %s273, %s274
      %p285 = scmp.eq.s32.totalorder %s39, 0
      %p286 = por %p284, %p285
      %p287 = scmp.ne.s32.totalorder %s273, %s274
      %p288 = scmp.eq.s32.totalorder %s40, 3
      %p289 = por %p287, %p288
      %p291 = scmp.ne.s32.totalorder %s274, %s290
      %p292 = scmp.eq.s32.totalorder %s40, 0
      %p293 = por %p291, %p292
      %s294 = ssub.s32 %s42, %s49
      %p295 = scmp.eq.s32.totalorder %s294, 0
      %s297 = sadd.s32 %s296, 1
      %s298 = scalar_select %p295, %s296, %s297
      %p301 = pneg %p295
      %p302 = scmp.eq.s32.totalorder %s34, 3
      %p303 = por %p301, %p302
      %p304 = scmp.ne.s32.totalorder %s296, %s299
      %p305 = scmp.eq.s32.totalorder %s34, 0
      %p306 = por %p304, %p305
      %p307 = scmp.ne.s32.totalorder %s296, %s299
      %p308 = scmp.eq.s32.totalorder %s39, 3
      %p309 = por %p307, %p308
      %p310 = scmp.ne.s32.totalorder %s299, %s300
      %p311 = scmp.eq.s32.totalorder %s39, 0
      %p312 = por %p310, %p311
      %p313 = scmp.ne.s32.totalorder %s299, %s300
      %p314 = scmp.eq.s32.totalorder %s40, 3
      %p315 = por %p313, %p314
      %p317 = scmp.ne.s32.totalorder %s300, %s316
      %p318 = scmp.eq.s32.totalorder %s40, 0
      %p319 = por %p317, %p318
      %s320 = ssub.s32 %s42, %s49
      %p321 = scmp.eq.s32.totalorder %s320, 0
      %s323 = sadd.s32 %s322, 1
      %s324 = scalar_select %p321, %s322, %s323
      %p327 = pneg %p321
      %p328 = scmp.eq.s32.totalorder %s34, 3
      %p329 = por %p327, %p328
      %p330 = scmp.ne.s32.totalorder %s322, %s325
      %p331 = scmp.eq.s32.totalorder %s34, 0
      %p332 = por %p330, %p331
      %p333 = scmp.ne.s32.totalorder %s322, %s325
      %p334 = scmp.eq.s32.totalorder %s39, 3
      %p335 = por %p333, %p334
      %p336 = scmp.ne.s32.totalorder %s325, %s326
      %p337 = scmp.eq.s32.totalorder %s39, 0
      %p338 = por %p336, %p337
      %p339 = scmp.ne.s32.totalorder %s325, %s326
      %p340 = scmp.eq.s32.totalorder %s40, 3
      %p341 = por %p339, %p340
      %p343 = scmp.ne.s32.totalorder %s326, %s342
      %p344 = scmp.eq.s32.totalorder %s40, 0
      %p345 = por %p343, %p344
      %s346 = ssub.s32 %s42, %s49
      %p347 = scmp.eq.s32.totalorder %s346, 0
      %s349 = sadd.s32 %s348, 1
      %s350 = scalar_select %p347, %s348, %s349
      %p353 = pneg %p347
      %p354 = scmp.eq.s32.totalorder %s34, 3
      %p355 = por %p353, %p354
      %p356 = scmp.ne.s32.totalorder %s348, %s351
      %p357 = scmp.eq.s32.totalorder %s34, 0
      %p358 = por %p356, %p357
      %p359 = scmp.ne.s32.totalorder %s348, %s351
      %p360 = scmp.eq.s32.totalorder %s39, 3
      %p361 = por %p359, %p360
      %p362 = scmp.ne.s32.totalorder %s351, %s352
      %p363 = scmp.eq.s32.totalorder %s39, 0
      %p364 = por %p362, %p363
      %p365 = scmp.ne.s32.totalorder %s351, %s352
      %p366 = scmp.eq.s32.totalorder %s40, 3
      %p367 = por %p365, %p366
      %p369 = scmp.ne.s32.totalorder %s352, %s368
      %p370 = scmp.eq.s32.totalorder %s40, 0
      %p371 = por %p369, %p370
      %s372 = ssub.s32 %s42, %s49
      %p373 = scmp.eq.s32.totalorder %s372, 0
      %s375 = sadd.s32 %s374, 1
      %s376 = scalar_select %p373, %s374, %s375
      %p379 = pneg %p373
      %p380 = scmp.eq.s32.totalorder %s34, 3
      %p381 = por %p379, %p380
      %p382 = scmp.ne.s32.totalorder %s374, %s377
      %p383 = scmp.eq.s32.totalorder %s34, 0
      %p384 = por %p382, %p383
      %p385 = scmp.ne.s32.totalorder %s374, %s377
      %p386 = scmp.eq.s32.totalorder %s39, 3
      %p387 = por %p385, %p386
      %p388 = scmp.ne.s32.totalorder %s377, %s378
      %p389 = scmp.eq.s32.totalorder %s39, 0
      %p390 = por %p388, %p389
      %p391 = scmp.ne.s32.totalorder %s377, %s378
      %p392 = scmp.eq.s32.totalorder %s40, 3
      %p393 = por %p391, %p392
      %p395 = scmp.ne.s32.totalorder %s378, %s394
      %p396 = scmp.eq.s32.totalorder %s40, 0
      %p397 = por %p395, %p396
      %s398 = ssub.s32 %s42, %s49
      %p399 = scmp.eq.s32.totalorder %s398, 0
      %s401 = sadd.s32 %s400, 1
      %s402 = scalar_select %p399, %s400, %s401
      %p405 = pneg %p399
      %p406 = scmp.eq.s32.totalorder %s34, 3
      %p407 = por %p405, %p406
      %p408 = scmp.ne.s32.totalorder %s400, %s403
      %p409 = scmp.eq.s32.totalorder %s34, 0
      %p410 = por %p408, %p409
      %p411 = scmp.ne.s32.totalorder %s400, %s403
      %p412 = scmp.eq.s32.totalorder %s39, 3
      %p413 = por %p411, %p412
      %p414 = scmp.ne.s32.totalorder %s403, %s404
      %p415 = scmp.eq.s32.totalorder %s39, 0
      %p416 = por %p414, %p415
      %p417 = scmp.ne.s32.totalorder %s403, %s404
      %p418 = scmp.eq.s32.totalorder %s40, 3
      %p419 = por %p417, %p418
      %p421 = scmp.ne.s32.totalorder %s404, %s420
      %p422 = scmp.eq.s32.totalorder %s40, 0
      %p423 = por %p421, %p422
      %s424 = ssub.s32 %s42, %s49
      %p425 = scmp.eq.s32.totalorder %s424, 0
      %s427 = sadd.s32 %s426, 1
      %s428 = scalar_select %p425, %s426, %s427
      %p431 = pneg %p425
      %p432 = scmp.eq.s32.totalorder %s34, 3
      %p433 = por %p431, %p432
      %p434 = scmp.ne.s32.totalorder %s426, %s429
      %p435 = scmp.eq.s32.totalorder %s34, 0
      %p436 = por %p434, %p435
      %p437 = scmp.ne.s32.totalorder %s426, %s429
      %p438 = scmp.eq.s32.totalorder %s39, 3
      %p439 = por %p437, %p438
      %p440 = scmp.ne.s32.totalorder %s429, %s430
      %p441 = scmp.eq.s32.totalorder %s39, 0
      %p442 = por %p440, %p441
      %p443 = scmp.ne.s32.totalorder %s429, %s430
      %p444 = scmp.eq.s32.totalorder %s40, 3
      %p445 = por %p443, %p444
      %p447 = scmp.ne.s32.totalorder %s430, %s446
      %p448 = scmp.eq.s32.totalorder %s40, 0
      %p449 = por %p447, %p448
      %s450 = ssub.s32 %s42, %s49
      %p451 = scmp.eq.s32.totalorder %s450, 0
      %s453 = sadd.s32 %s452, 1
      %s454 = scalar_select %p451, %s452, %s453
      %p457 = pneg %p451
      %p458 = scmp.eq.s32.totalorder %s34, 3
      %p459 = por %p457, %p458
      %p460 = scmp.ne.s32.totalorder %s452, %s455
      %p461 = scmp.eq.s32.totalorder %s34, 0
      %p462 = por %p460, %p461
      %p463 = scmp.ne.s32.totalorder %s452, %s455
      %p464 = scmp.eq.s32.totalorder %s39, 3
      %p465 = por %p463, %p464
      %p466 = scmp.ne.s32.totalorder %s455, %s456
      %p467 = scmp.eq.s32.totalorder %s39, 0
      %p468 = por %p466, %p467
      %p469 = scmp.ne.s32.totalorder %s455, %s456
      %p470 = scmp.eq.s32.totalorder %s40, 3
      %p471 = por %p469, %p470
      %p473 = scmp.ne.s32.totalorder %s456, %s472
      %p474 = scmp.eq.s32.totalorder %s40, 0
      %p475 = por %p473, %p474
      %s476 = ssub.s32 %s42, %s49
      %p477 = scmp.eq.s32.totalorder %s476, 0
      %s479 = sadd.s32 %s478, 1
      %s480 = scalar_select %p477, %s478, %s479
      %p483 = pneg %p477
      %p484 = scmp.eq.s32.totalorder %s34, 3
      %p485 = por %p483, %p484
      %p486 = scmp.ne.s32.totalorder %s478, %s481
      %p487 = scmp.eq.s32.totalorder %s34, 0
      %p488 = por %p486, %p487
      %p489 = scmp.ne.s32.totalorder %s478, %s481
      %p490 = scmp.eq.s32.totalorder %s39, 3
      %p491 = por %p489, %p490
      %p492 = scmp.ne.s32.totalorder %s481, %s482
      %p493 = scmp.eq.s32.totalorder %s39, 0
      %p494 = por %p492, %p493
      %p495 = scmp.ne.s32.totalorder %s481, %s482
      %p496 = scmp.eq.s32.totalorder %s40, 3
      %p497 = por %p495, %p496
      %p499 = scmp.ne.s32.totalorder %s482, %s498
      %p500 = scmp.eq.s32.totalorder %s40, 0
      %p501 = por %p499, %p500
      %s502 = ssub.s32 %s42, %s49
      %p503 = scmp.eq.s32.totalorder %s502, 0
      %s505 = sadd.s32 %s504, 1
      %s506 = scalar_select %p503, %s504, %s505
      %p509 = pneg %p503
      %p510 = scmp.eq.s32.totalorder %s34, 3
      %p511 = por %p509, %p510
      %p512 = scmp.ne.s32.totalorder %s504, %s507
      %p513 = scmp.eq.s32.totalorder %s34, 0
      %p514 = por %p512, %p513
      %p515 = scmp.ne.s32.totalorder %s504, %s507
      %p516 = scmp.eq.s32.totalorder %s39, 3
      %p517 = por %p515, %p516
      %p518 = scmp.ne.s32.totalorder %s507, %s508
      %p519 = scmp.eq.s32.totalorder %s39, 0
      %p520 = por %p518, %p519
      %p521 = scmp.ne.s32.totalorder %s507, %s508
      %p522 = scmp.eq.s32.totalorder %s40, 3
      %p523 = por %p521, %p522
      %p525 = scmp.ne.s32.totalorder %s508, %s524
      %p526 = scmp.eq.s32.totalorder %s40, 0
      %p527 = por %p525, %p526
      %s528 = ssub.s32 %s42, %s49
      %p529 = scmp.eq.s32.totalorder %s528, 0
      %s531 = sadd.s32 %s530, 1
      %s532 = scalar_select %p529, %s530, %s531
      %p535 = pneg %p529
      %p536 = scmp.eq.s32.totalorder %s34, 3
      %p537 = por %p535, %p536
      %p538 = scmp.ne.s32.totalorder %s530, %s533
      %p539 = scmp.eq.s32.totalorder %s34, 0
      %p540 = por %p538, %p539
      %p541 = scmp.ne.s32.totalorder %s530, %s533
      %p542 = scmp.eq.s32.totalorder %s39, 3
      %p543 = por %p541, %p542
      %p544 = scmp.ne.s32.totalorder %s533, %s534
      %p545 = scmp.eq.s32.totalorder %s39, 0
      %p546 = por %p544, %p545
      %p547 = scmp.ne.s32.totalorder %s533, %s534
      %p548 = scmp.eq.s32.totalorder %s40, 3
      %p549 = por %p547, %p548
      %p551 = scmp.ne.s32.totalorder %s534, %s550
      %p552 = scmp.eq.s32.totalorder %s40, 0
      %p553 = por %p551, %p552
      %s554 = ssub.s32 %s42, %s49
      %p555 = scmp.eq.s32.totalorder %s554, 0
      %s557 = sadd.s32 %s556, 1
      %s558 = scalar_select %p555, %s556, %s557
      %p561 = pneg %p555
      %p562 = scmp.eq.s32.totalorder %s34, 3
      %p563 = por %p561, %p562
      %p564 = scmp.ne.s32.totalorder %s556, %s559
      %p565 = scmp.eq.s32.totalorder %s34, 0
      %p566 = por %p564, %p565
      %p567 = scmp.ne.s32.totalorder %s556, %s559
      %p568 = scmp.eq.s32.totalorder %s39, 3
      %p569 = por %p567, %p568
      %p570 = scmp.ne.s32.totalorder %s559, %s560
      %p571 = scmp.eq.s32.totalorder %s39, 0
      %p572 = por %p570, %p571
      %p573 = scmp.ne.s32.totalorder %s559, %s560
      %p574 = scmp.eq.s32.totalorder %s40, 3
      %p575 = por %p573, %p574
      %p577 = scmp.ne.s32.totalorder %s560, %s576
      %p578 = scmp.eq.s32.totalorder %s40, 0
      %p579 = por %p577, %p578
      %s581 = sadd.s32 %s580, 1
      %p584 = scmp.eq.s32.totalorder %s34, 3
      %p585 = scmp.ne.s32.totalorder %s580, %s582
      %p586 = scmp.eq.s32.totalorder %s34, 0
      %p587 = por %p585, %p586
      %p588 = scmp.ne.s32.totalorder %s580, %s582
      %p589 = scmp.eq.s32.totalorder %s39, 3
      %p590 = por %p588, %p589
      %p591 = scmp.ne.s32.totalorder %s582, %s583
      %p592 = scmp.eq.s32.totalorder %s39, 0
      %p593 = por %p591, %p592
      %p594 = scmp.ne.s32.totalorder %s582, %s583
      %p595 = scmp.eq.s32.totalorder %s40, 3
      %p596 = por %p594, %p595
      %p598 = scmp.ne.s32.totalorder %s583, %s597
      %p599 = scmp.eq.s32.totalorder %s40, 0
      %p600 = por %p598, %p599
      %s602 = sadd.s32 %s601, 1
      %p605 = scmp.eq.s32.totalorder %s34, 3
      %p606 = scmp.ne.s32.totalorder %s601, %s603
      %p607 = scmp.eq.s32.totalorder %s34, 0
      %p608 = por %p606, %p607
      %p609 = scmp.ne.s32.totalorder %s601, %s603
      %p610 = scmp.eq.s32.totalorder %s39, 3
      %p611 = por %p609, %p610
      %p612 = scmp.ne.s32.totalorder %s603, %s604
      %p613 = scmp.eq.s32.totalorder %s39, 0
      %p614 = por %p612, %p613
      %p615 = scmp.ne.s32.totalorder %s603, %s604
      %p616 = scmp.eq.s32.totalorder %s40, 3
      %p617 = por %p615, %p616
      %p619 = scmp.ne.s32.totalorder %s604, %s618
      %p620 = scmp.eq.s32.totalorder %s40, 0
      %p621 = por %p619, %p620
      %s623 = sadd.s32 %s622, 1
      %p626 = scmp.eq.s32.totalorder %s34, 3
      %p627 = scmp.ne.s32.totalorder %s622, %s624
      %p628 = scmp.eq.s32.totalorder %s34, 0
      %p629 = por %p627, %p628
      %p630 = scmp.ne.s32.totalorder %s622, %s624
      %p631 = scmp.eq.s32.totalorder %s39, 3
      %p632 = por %p630, %p631
      %p633 = scmp.ne.s32.totalorder %s624, %s625
      %p634 = scmp.eq.s32.totalorder %s39, 0
      %p635 = por %p633, %p634
      %p636 = scmp.ne.s32.totalorder %s624, %s625
      %p637 = scmp.eq.s32.totalorder %s40, 3
      %p638 = por %p636, %p637
      %p640 = scmp.ne.s32.totalorder %s625, %s639
      %p641 = scmp.eq.s32.totalorder %s40, 0
      %p642 = por %p640, %p641
      %s644 = sadd.s32 %s643, 1
      %p647 = scmp.eq.s32.totalorder %s34, 3
      %p648 = scmp.ne.s32.totalorder %s643, %s645
      %p649 = scmp.eq.s32.totalorder %s34, 0
      %p650 = por %p648, %p649
      %p651 = scmp.ne.s32.totalorder %s643, %s645
      %p652 = scmp.eq.s32.totalorder %s39, 3
      %p653 = por %p651, %p652
      %p654 = scmp.ne.s32.totalorder %s645, %s646
      %p655 = scmp.eq.s32.totalorder %s39, 0
      %p656 = por %p654, %p655
      %p657 = scmp.ne.s32.totalorder %s645, %s646
      %p658 = scmp.eq.s32.totalorder %s40, 3
      %p659 = por %p657, %p658
      %p661 = scmp.ne.s32.totalorder %s646, %s660
      %p662 = scmp.eq.s32.totalorder %s40, 0
      %p663 = por %p661, %p662
      %s664 = ssub.s32 %s41, %s53
      %p665 = scmp.eq.s32.totalorder %s664, 0
      %s667 = sadd.s32 %s666, 1
      %s668 = scalar_select %p665, %s666, %s667
      %p671 = pneg %p665
      %p672 = scmp.eq.s32.totalorder %s34, 3
      %p673 = por %p671, %p672
      %p674 = scmp.ne.s32.totalorder %s666, %s669
      %p675 = scmp.eq.s32.totalorder %s34, 0
      %p676 = por %p674, %p675
      %p677 = scmp.ne.s32.totalorder %s666, %s669
      %p678 = scmp.eq.s32.totalorder %s39, 3
      %p679 = por %p677, %p678
      %p680 = scmp.ne.s32.totalorder %s669, %s670
      %p681 = scmp.eq.s32.totalorder %s39, 0
      %p682 = por %p680, %p681
      %p683 = scmp.ne.s32.totalorder %s669, %s670
      %p684 = scmp.eq.s32.totalorder %s40, 3
      %p685 = por %p683, %p684
      %p687 = scmp.ne.s32.totalorder %s670, %s686
      %p688 = scmp.eq.s32.totalorder %s40, 0
      %p689 = por %p687, %p688
      %p690 = scmp.le.s32.totalorder 1, %s34
      %p691 = scmp.lt.s32.totalorder %s34, 5
      %p692 = pnand %p690, %p691
      %p693 = pneg %p692
      // Predicated region
      $region9: #{vit_forward.1} parent=5 // pred_check
        _
      $region10: #{vit_forward.1} parent=5 // pred_check_branch
        %695 = sbr.rel (%p692) target = $region12
      $region11: #{vit_forward.1} parent=5 // pred_region
        %s696 = ssub.s32 %s34, 1
        // Predicated region
        $region13: #{vit_forward.1} parent=11 // pred_check
          %p697 = pneg %p93
        $region14: #{vit_forward.1} parent=11 // pred_check_branch
          %699 = sbr.rel (%p697) target = $region16
        $region15: #{vit_forward.1} parent=11 // pred_region
          _
        $region16: #{vit_forward.1} parent=11 // pred_fallthru
          _
        // Predicated region
        $region17: #{vit_forward.1} parent=11 // pred_check
          %p700 = pneg %p114
        $region18: #{vit_forward.1} parent=11 // pred_check_branch
          %702 = sbr.rel (%p700) target = $region20
        $region19: #{vit_forward.1} parent=11 // pred_region
          _
        $region20: #{vit_forward.1} parent=11 // pred_fallthru
          _
        // Predicated region
        $region21: #{vit_forward.1} parent=11 // pred_check
          %p703 = pneg %p135
        $region22: #{vit_forward.1} parent=11 // pred_check_branch
          %705 = sbr.rel (%p703) target = $region24
        $region23: #{vit_forward.1} parent=11 // pred_region
          _
        $region24: #{vit_forward.1} parent=11 // pred_fallthru
          _
        // Predicated region
        $region25: #{vit_forward.1} parent=11 // pred_check
          %p706 = pneg %p156
        $region26: #{vit_forward.1} parent=11 // pred_check_branch
          %708 = sbr.rel (%p706) target = $region28
        $region27: #{vit_forward.1} parent=11 // pred_region
          _
        $region28: #{vit_forward.1} parent=11 // pred_fallthru
          _
        // Predicated region
        $region29: #{vit_forward.1} parent=11 // pred_check
          %p709 = pneg %p593
        $region30: #{vit_forward.1} parent=11 // pred_check_branch
          %711 = sbr.rel (%p709) target = $region32
        $region31: #{vit_forward.1} parent=11 // pred_region
          _
        $region32: #{vit_forward.1} parent=11 // pred_fallthru
          _
        // Predicated region
        $region33: #{vit_forward.1} parent=11 // pred_check
          %p712 = pneg %p614
        $region34: #{vit_forward.1} parent=11 // pred_check_branch
          %714 = sbr.rel (%p712) target = $region36
        $region35: #{vit_forward.1} parent=11 // pred_region
          _
        $region36: #{vit_forward.1} parent=11 // pred_fallthru
          _
        // Predicated region
        $region37: #{vit_forward.1} parent=11 // pred_check
          %p715 = pneg %p635
        $region38: #{vit_forward.1} parent=11 // pred_check_branch
          %717 = sbr.rel (%p715) target = $region40
        $region39: #{vit_forward.1} parent=11 // pred_region
          _
        $region40: #{vit_forward.1} parent=11 // pred_fallthru
          _
        // Predicated region
        $region41: #{vit_forward.1} parent=11 // pred_check
          %p718 = pneg %p656
        $region42: #{vit_forward.1} parent=11 // pred_check_branch
          %720 = sbr.rel (%p718) target = $region44
        $region43: #{vit_forward.1} parent=11 // pred_region
          _
        $region44: #{vit_forward.1} parent=11 // pred_fallthru
          _
      $region12: #{vit_forward.1} parent=5 // pred_fallthru
        _
      %p721 = scmp.lt.s32.totalorder %s34, 4
      // Predicated region
      $region45: #{vit_forward.1} parent=5 // pred_check
        %p722 = pneg %p721
      $region46: #{vit_forward.1} parent=5 // pred_check_branch
        %724 = sbr.rel (%p722) target = $region48
      $region47: #{vit_forward.1} parent=5 // pred_region
        // Predicated region
        $region49: #{vit_forward.1} parent=47 // pred_check
          %p725 = pneg %p66
        $region50: #{vit_forward.1} parent=47 // pred_check_branch
          %727 = sbr.rel (%p725) target = $region52
        $region51: #{vit_forward.1} parent=47 // pred_region
          %p728 = scmp.lt.s32.totalorder %s41, 1
          %s729 = scalar_select %p728, %s41, 1
          %s730 = smul.addr %s729, 2
          %s731 = smul.addr %s730, 4
          %s732 = scalar_lea.vmem %s0, %s731
        $region52: #{vit_forward.1} parent=47 // pred_fallthru
          _
        // Predicated region
        $region53: #{vit_forward.1} parent=47 // pred_check
          %p733 = pneg %p176
        $region54: #{vit_forward.1} parent=47 // pred_check_branch
          %735 = sbr.rel (%p733) target = $region56
        $region55: #{vit_forward.1} parent=47 // pred_region
          %p736 = scmp.lt.s32.totalorder %s42, 1
          %s737 = scalar_select %p736, %s42, 1
          %s738 = scalar_lea.vmem %s5, %s737
        $region56: #{vit_forward.1} parent=47 // pred_fallthru
          _
        // Predicated region
        $region57: #{vit_forward.1} parent=47 // pred_check
          %p739 = pneg %p202
        $region58: #{vit_forward.1} parent=47 // pred_check_branch
          %741 = sbr.rel (%p739) target = $region60
        $region59: #{vit_forward.1} parent=47 // pred_region
          %p742 = scmp.lt.s32.totalorder %s42, 1
          %s743 = scalar_select %p742, %s42, 1
          %s744 = scalar_lea.vmem %s6, %s743
        $region60: #{vit_forward.1} parent=47 // pred_fallthru
          _
        // Predicated region
        $region61: #{vit_forward.1} parent=47 // pred_check
          %p745 = pneg %p228
        $region62: #{vit_forward.1} parent=47 // pred_check_branch
          %747 = sbr.rel (%p745) target = $region64
        $region63: #{vit_forward.1} parent=47 // pred_region
          %p748 = scmp.lt.s32.totalorder %s42, 1
          %s749 = scalar_select %p748, %s42, 1
          %s750 = smul.addr %s749, 16
          %s751 = smul.addr %s750, 4
          %s752 = scalar_lea.vmem %s7, %s751
        $region64: #{vit_forward.1} parent=47 // pred_fallthru
          _
        // Predicated region
        $region65: #{vit_forward.1} parent=47 // pred_check
          %p753 = pneg %p254
        $region66: #{vit_forward.1} parent=47 // pred_check_branch
          %755 = sbr.rel (%p753) target = $region68
        $region67: #{vit_forward.1} parent=47 // pred_region
          %p756 = scmp.lt.s32.totalorder %s42, 1
          %s757 = scalar_select %p756, %s42, 1
          %s758 = smul.addr %s757, 4
          %s759 = scalar_lea.vmem %s8, %s758
        $region68: #{vit_forward.1} parent=47 // pred_fallthru
          _
        // Predicated region
        $region69: #{vit_forward.1} parent=47 // pred_check
          %p760 = pneg %p280
        $region70: #{vit_forward.1} parent=47 // pred_check_branch
          %762 = sbr.rel (%p760) target = $region72
        $region71: #{vit_forward.1} parent=47 // pred_region
          %p763 = scmp.lt.s32.totalorder %s42, 1
          %s764 = scalar_select %p763, %s42, 1
          %s765 = smul.addr %s764, 16
          %s766 = smul.addr %s765, 4
          %s767 = scalar_lea.vmem %s9, %s766
        $region72: #{vit_forward.1} parent=47 // pred_fallthru
          _
        // Predicated region
        $region73: #{vit_forward.1} parent=47 // pred_check
          %p768 = pneg %p306
        $region74: #{vit_forward.1} parent=47 // pred_check_branch
          %770 = sbr.rel (%p768) target = $region76
        $region75: #{vit_forward.1} parent=47 // pred_region
          %p771 = scmp.lt.s32.totalorder %s42, 1
          %s772 = scalar_select %p771, %s42, 1
          %s773 = smul.addr %s772, 4
          %s774 = scalar_lea.vmem %s10, %s773
        $region76: #{vit_forward.1} parent=47 // pred_fallthru
          _
        // Predicated region
        $region77: #{vit_forward.1} parent=47 // pred_check
          %p775 = pneg %p332
        $region78: #{vit_forward.1} parent=47 // pred_check_branch
          %777 = sbr.rel (%p775) target = $region80
        $region79: #{vit_forward.1} parent=47 // pred_region
          %p778 = scmp.lt.s32.totalorder %s42, 1
          %s779 = scalar_select %p778, %s42, 1
          %s780 = smul.addr %s779, 16
          %s781 = smul.addr %s780, 4
          %s782 = scalar_lea.vmem %s11, %s781
        $region80: #{vit_forward.1} parent=47 // pred_fallthru
          _
        // Predicated region
        $region81: #{vit_forward.1} parent=47 // pred_check
          %p783 = pneg %p358
        $region82: #{vit_forward.1} parent=47 // pred_check_branch
          %785 = sbr.rel (%p783) target = $region84
        $region83: #{vit_forward.1} parent=47 // pred_region
          %p786 = scmp.lt.s32.totalorder %s42, 1
          %s787 = scalar_select %p786, %s42, 1
          %s788 = smul.addr %s787, 4
          %s789 = scalar_lea.vmem %s12, %s788
        $region84: #{vit_forward.1} parent=47 // pred_fallthru
          _
        // Predicated region
        $region85: #{vit_forward.1} parent=47 // pred_check
          %p790 = pneg %p384
        $region86: #{vit_forward.1} parent=47 // pred_check_branch
          %792 = sbr.rel (%p790) target = $region88
        $region87: #{vit_forward.1} parent=47 // pred_region
          %p793 = scmp.lt.s32.totalorder %s42, 1
          %s794 = scalar_select %p793, %s42, 1
          %s795 = smul.addr %s794, 4
          %s796 = smul.addr %s795, 4
          %s797 = scalar_lea.vmem %s13, %s796
        $region88: #{vit_forward.1} parent=47 // pred_fallthru
          _
        // Predicated region
        $region89: #{vit_forward.1} parent=47 // pred_check
          %p798 = pneg %p410
        $region90: #{vit_forward.1} parent=47 // pred_check_branch
          %800 = sbr.rel (%p798) target = $region92
        $region91: #{vit_forward.1} parent=47 // pred_region
          %p801 = scmp.lt.s32.totalorder %s42, 1
          %s802 = scalar_select %p801, %s42, 1
          %s803 = scalar_lea.vmem %s14, %s802
        $region92: #{vit_forward.1} parent=47 // pred_fallthru
          _
        // Predicated region
        $region93: #{vit_forward.1} parent=47 // pred_check
          %p804 = pneg %p436
        $region94: #{vit_forward.1} parent=47 // pred_check_branch
          %806 = sbr.rel (%p804) target = $region96
        $region95: #{vit_forward.1} parent=47 // pred_region
          %p807 = scmp.lt.s32.totalorder %s42, 1
          %s808 = scalar_select %p807, %s42, 1
          %s809 = scalar_lea.vmem %s15, %s808
        $region96: #{vit_forward.1} parent=47 // pred_fallthru
          _
        // Predicated region
        $region97: #{vit_forward.1} parent=47 // pred_check
          %p810 = pneg %p462
        $region98: #{vit_forward.1} parent=47 // pred_check_branch
          %812 = sbr.rel (%p810) target = $region100
        $region99: #{vit_forward.1} parent=47 // pred_region
          %p813 = scmp.lt.s32.totalorder %s42, 1
          %s814 = scalar_select %p813, %s42, 1
          %s815 = scalar_lea.vmem %s16, %s814
        $region100: #{vit_forward.1} parent=47 // pred_fallthru
          _
        // Predicated region
        $region101: #{vit_forward.1} parent=47 // pred_check
          %p816 = pneg %p488
        $region102: #{vit_forward.1} parent=47 // pred_check_branch
          %818 = sbr.rel (%p816) target = $region104
        $region103: #{vit_forward.1} parent=47 // pred_region
          %p819 = scmp.lt.s32.totalorder %s42, 1
          %s820 = scalar_select %p819, %s42, 1
          %s821 = smul.addr %s820, 4
          %s822 = smul.addr %s821, 4
          %s823 = scalar_lea.vmem %s17, %s822
        $region104: #{vit_forward.1} parent=47 // pred_fallthru
          _
        // Predicated region
        $region105: #{vit_forward.1} parent=47 // pred_check
          %p824 = pneg %p514
        $region106: #{vit_forward.1} parent=47 // pred_check_branch
          %826 = sbr.rel (%p824) target = $region108
        $region107: #{vit_forward.1} parent=47 // pred_region
          %p827 = scmp.lt.s32.totalorder %s42, 1
          %s828 = scalar_select %p827, %s42, 1
          %s829 = scalar_lea.vmem %s18, %s828
        $region108: #{vit_forward.1} parent=47 // pred_fallthru
          _
        // Predicated region
        $region109: #{vit_forward.1} parent=47 // pred_check
          %p830 = pneg %p540
        $region110: #{vit_forward.1} parent=47 // pred_check_branch
          %832 = sbr.rel (%p830) target = $region112
        $region111: #{vit_forward.1} parent=47 // pred_region
          %p833 = scmp.lt.s32.totalorder %s42, 1
          %s834 = scalar_select %p833, %s42, 1
          %s835 = smul.addr %s834, 16
          %s836 = smul.addr %s835, 4
          %s837 = scalar_lea.vmem %s19, %s836
        $region112: #{vit_forward.1} parent=47 // pred_fallthru
          _
        // Predicated region
        $region113: #{vit_forward.1} parent=47 // pred_check
          %p838 = pneg %p566
        $region114: #{vit_forward.1} parent=47 // pred_check_branch
          %840 = sbr.rel (%p838) target = $region116
        $region115: #{vit_forward.1} parent=47 // pred_region
          %p841 = scmp.lt.s32.totalorder %s42, 1
          %s842 = scalar_select %p841, %s42, 1
          %s843 = scalar_lea.vmem %s20, %s842
        $region116: #{vit_forward.1} parent=47 // pred_fallthru
          _
      $region48: #{vit_forward.1} parent=5 // pred_fallthru
        _
      %p844 = scmp.le.s32.totalorder 1, %s34
      %p845 = scmp.lt.s32.totalorder %s34, 5
      %p846 = pnand %p844, %p845
      %p847 = pneg %p846
      // Predicated region
      $region117: #{vit_forward.1} parent=5 // pred_check
        _
      $region118: #{vit_forward.1} parent=5 // pred_check_branch
        %849 = sbr.rel (%p846) target = $region120
      $region119: #{vit_forward.1} parent=5 // pred_region
        %s850 = ssub.s32 %s34, 1
        %p851 = scmp.lt.s32.totalorder %s43, 1
        %s852 = scalar_select %p851, %s43, 1
        %s853 = smul.addr %s852, 2
        %s854 = smul.addr %s853, 4
        %s855 = scalar_lea.vmem %s0, %s854
        %p856 = pneg %p72
        %p857 = pneg %p69
        %p858 = pneg %p93
        %p859 = pneg %p90
        %p860 = pneg %p114
        %p861 = pneg %p111
        %p862 = pneg %p135
        %p863 = pneg %p132
        %p864 = pneg %p156
        %p865 = pneg %p153
        %p866 = scmp.lt.s32.totalorder %s44, 1
        %s867 = scalar_select %p866, %s44, 1
        %s868 = scalar_lea.vmem %s5, %s867
        %p869 = pneg %p182
        %p870 = pneg %p179
        %p871 = scmp.lt.s32.totalorder %s44, 1
        %s872 = scalar_select %p871, %s44, 1
        %s873 = scalar_lea.vmem %s6, %s872
        %p874 = pneg %p208
        %p875 = pneg %p205
        %p876 = scmp.lt.s32.totalorder %s44, 1
        %s877 = scalar_select %p876, %s44, 1
        %s878 = smul.addr %s877, 16
        %s879 = smul.addr %s878, 4
        %s880 = scalar_lea.vmem %s7, %s879
        %p881 = pneg %p234
        %p882 = pneg %p231
        %p883 = scmp.lt.s32.totalorder %s44, 1
        %s884 = scalar_select %p883, %s44, 1
        %s885 = smul.addr %s884, 4
        %s886 = scalar_lea.vmem %s8, %s885
        %p887 = pneg %p260
        %p888 = pneg %p257
        %p889 = scmp.lt.s32.totalorder %s44, 1
        %s890 = scalar_select %p889, %s44, 1
        %s891 = smul.addr %s890, 16
        %s892 = smul.addr %s891, 4
        %s893 = scalar_lea.vmem %s9, %s892
        %p894 = pneg %p286
        %p895 = pneg %p283
        %p896 = scmp.lt.s32.totalorder %s44, 1
        %s897 = scalar_select %p896, %s44, 1
        %s898 = smul.addr %s897, 4
        %s899 = scalar_lea.vmem %s10, %s898
        %p900 = pneg %p312
        %p901 = pneg %p309
        %p902 = scmp.lt.s32.totalorder %s44, 1
        %s903 = scalar_select %p902, %s44, 1
        %s904 = smul.addr %s903, 16
        %s905 = smul.addr %s904, 4
        %s906 = scalar_lea.vmem %s11, %s905
        %p907 = pneg %p338
        %p908 = pneg %p335
        %p909 = scmp.lt.s32.totalorder %s44, 1
        %s910 = scalar_select %p909, %s44, 1
        %s911 = smul.addr %s910, 4
        %s912 = scalar_lea.vmem %s12, %s911
        %p913 = pneg %p364
        %p914 = pneg %p361
        %p915 = scmp.lt.s32.totalorder %s44, 1
        %s916 = scalar_select %p915, %s44, 1
        %s917 = smul.addr %s916, 4
        %s918 = smul.addr %s917, 4
        %s919 = scalar_lea.vmem %s13, %s918
        %p920 = pneg %p390
        %p921 = pneg %p387
        %p922 = scmp.lt.s32.totalorder %s44, 1
        %s923 = scalar_select %p922, %s44, 1
        %s924 = scalar_lea.vmem %s14, %s923
        %p925 = pneg %p416
        %p926 = pneg %p413
        %p927 = scmp.lt.s32.totalorder %s44, 1
        %s928 = scalar_select %p927, %s44, 1
        %s929 = scalar_lea.vmem %s15, %s928
        %p930 = pneg %p442
        %p931 = pneg %p439
        %p932 = scmp.lt.s32.totalorder %s44, 1
        %s933 = scalar_select %p932, %s44, 1
        %s934 = scalar_lea.vmem %s16, %s933
        %p935 = pneg %p468
        %p936 = pneg %p465
        %p937 = scmp.lt.s32.totalorder %s44, 1
        %s938 = scalar_select %p937, %s44, 1
        %s939 = smul.addr %s938, 4
        %s940 = smul.addr %s939, 4
        %s941 = scalar_lea.vmem %s17, %s940
        %p942 = pneg %p494
        %p943 = pneg %p491
        %p944 = scmp.lt.s32.totalorder %s44, 1
        %s945 = scalar_select %p944, %s44, 1
        %s946 = scalar_lea.vmem %s18, %s945
        %p947 = pneg %p520
        %p948 = pneg %p517
        %p949 = scmp.lt.s32.totalorder %s44, 1
        %s950 = scalar_select %p949, %s44, 1
        %s951 = smul.addr %s950, 16
        %s952 = smul.addr %s951, 4
        %s953 = scalar_lea.vmem %s19, %s952
        %p954 = pneg %p546
        %p955 = pneg %p543
        %p956 = scmp.lt.s32.totalorder %s44, 1
        %s957 = scalar_select %p956, %s44, 1
        %s958 = scalar_lea.vmem %s20, %s957
        %p959 = pneg %p572
        %p960 = pneg %p569
        %p961 = pneg %p593
        %p962 = pneg %p590
        %p963 = pneg %p614
        %p964 = pneg %p611
        %p965 = pneg %p635
        %p966 = pneg %p632
        %p967 = pneg %p656
        %p968 = pneg %p653
        %p969 = pneg %p682
        %p970 = pneg %p679
        %s971 = sand.u32 %s669, 1
        %s972 = scalar_lea.sflag [#allocation4], %s971
        %s973 = sand.u32 %s669, 1
        %s974 = scalar_lea.vmem [#allocation3], %s973
        %p975 = scmp.lt.s32.totalorder %s43, 1
        %s976 = scalar_select %p975, %s43, 1
        %s977 = smul.addr %s976, 2
        %s978 = smul.addr %s977, 4
        %s979 = scalar_lea.vmem %s0, %s978
        %p980 = scmp.lt.s32.totalorder %s44, 1
        %s981 = scalar_select %p980, %s44, 1
        %s982 = scalar_lea.vmem %s5, %s981
        %p983 = scmp.lt.s32.totalorder %s44, 1
        %s984 = scalar_select %p983, %s44, 1
        %s985 = scalar_lea.vmem %s6, %s984
        %p986 = scmp.lt.s32.totalorder %s44, 1
        %s987 = scalar_select %p986, %s44, 1
        %s988 = smul.addr %s987, 16
        %s989 = smul.addr %s988, 4
        %s990 = scalar_lea.vmem %s7, %s989
        %p991 = scmp.lt.s32.totalorder %s44, 1
        %s992 = scalar_select %p991, %s44, 1
        %s993 = smul.addr %s992, 4
        %s994 = scalar_lea.vmem %s8, %s993
        %p995 = scmp.lt.s32.totalorder %s44, 1
        %s996 = scalar_select %p995, %s44, 1
        %s997 = smul.addr %s996, 16
        %s998 = smul.addr %s997, 4
        %s999 = scalar_lea.vmem %s9, %s998
        %p1000 = scmp.lt.s32.totalorder %s44, 1
        %s1001 = scalar_select %p1000, %s44, 1
        %s1002 = smul.addr %s1001, 4
        %s1003 = scalar_lea.vmem %s10, %s1002
        %p1004 = scmp.lt.s32.totalorder %s44, 1
        %s1005 = scalar_select %p1004, %s44, 1
        %s1006 = smul.addr %s1005, 16
        %s1007 = smul.addr %s1006, 4
        %s1008 = scalar_lea.vmem %s11, %s1007
        %p1009 = scmp.lt.s32.totalorder %s44, 1
        %s1010 = scalar_select %p1009, %s44, 1
        %s1011 = smul.addr %s1010, 4
        %s1012 = scalar_lea.vmem %s12, %s1011
        %p1013 = scmp.lt.s32.totalorder %s44, 1
        %s1014 = scalar_select %p1013, %s44, 1
        %s1015 = smul.addr %s1014, 4
        %s1016 = smul.addr %s1015, 4
        %s1017 = scalar_lea.vmem %s13, %s1016
        %p1018 = scmp.lt.s32.totalorder %s44, 1
        %s1019 = scalar_select %p1018, %s44, 1
        %s1020 = scalar_lea.vmem %s14, %s1019
        %p1021 = scmp.lt.s32.totalorder %s44, 1
        %s1022 = scalar_select %p1021, %s44, 1
        %s1023 = scalar_lea.vmem %s15, %s1022
        %p1024 = scmp.lt.s32.totalorder %s44, 1
        %s1025 = scalar_select %p1024, %s44, 1
        %s1026 = scalar_lea.vmem %s16, %s1025
        %p1027 = scmp.lt.s32.totalorder %s44, 1
        %s1028 = scalar_select %p1027, %s44, 1
        %s1029 = smul.addr %s1028, 4
        %s1030 = smul.addr %s1029, 4
        %s1031 = scalar_lea.vmem %s17, %s1030
        %p1032 = scmp.lt.s32.totalorder %s44, 1
        %s1033 = scalar_select %p1032, %s44, 1
        %s1034 = scalar_lea.vmem %s18, %s1033
        %p1035 = scmp.lt.s32.totalorder %s44, 1
        %s1036 = scalar_select %p1035, %s44, 1
        %s1037 = smul.addr %s1036, 16
        %s1038 = smul.addr %s1037, 4
        %s1039 = scalar_lea.vmem %s19, %s1038
        %p1040 = scmp.lt.s32.totalorder %s44, 1
        %s1041 = scalar_select %p1040, %s44, 1
        %s1042 = scalar_lea.vmem %s20, %s1041
        %p1044 = scmp.eq.s32.totalorder %s44, 0
        // Predicated region
        $region121: #{vit_forward.1} parent=119 // pred_check
          %p1045 = pneg %p1044
        $region122: #{vit_forward.1} parent=119 // pred_check_branch
          %1047 = sbr.rel (%p1045) target = $region124
        $region123: #{vit_forward.1} parent=119 // pred_region
          %v1048 = vld [vmem:[%s979] sm:$0xf]
          %v1049 = vld [vmem:[%s979 + $0x4] sm:$0xf]
          %v1050 = vld [vmem:[%s1] sm:$0xf]
          %v1051 = vld [vmem:[%s1 + $0x4] sm:$0xf]
          %v1052 = vld [vmem:[%s1 + $0x8] sm:$0xf]
          %v1053 = vld [vmem:[%s1 + $0xc] sm:$0xf]
          %v1054 = vld [vmem:[%s1 + $0x10] sm:$0xf]
          %v1055 = vld [vmem:[%s1 + $0x14] sm:$0xf]
          %v1056 = vld [vmem:[%s2] sm:$0x1]
          %v1058 = vlaneseq
          %v1059 = vshrl.u32 %v1058, 7
          %v1060 = vsub.s32 0, %v1059
          %v1061 = vrot.slane %v1056, %v1060
          %v1065 = vunpack.c.l.b16 %v1048
          %v1066 = vunpack.c.l.b16 %v1049
          %v1067 = vpack.c.b16 %v1066, %v1065
          %v1074 = vunpack.c.l.b16 %v1050
          %v1075 = vunpack.c.l.b16 %v1051
          %v1076 = vunpack.c.l.b16 %v1052
          %v1077 = vunpack.c.l.b16 %v1053
          %v1078 = vunpack.c.l.b16 %v1054
          %v1079 = vunpack.c.l.b16 %v1055
          %v1080 = vpack.c.b16 %v1075, %v1074
          %v1081 = vpack.c.b16 %v1077, %v1076
          %v1082 = vpack.c.b16 %v1079, %v1078
          %vm1086 = vcmask 392192
          %v1088 = vsel %vm1086, %v1067, 0
          %1090 = vmatprep.subr.bf16.mxu0 0
          %1091 = vmatpush1.bf16.msra.mxu0 %v1080
          %1092 = vmatprep.subr.bf16.mxu0 0
          %1093 = vmatpush1.bf16.msra.mxu0 %v1081
          %1094 = vmatprep.subr.bf16.mxu0 0
          %1095 = vmatpush1.bf16.msra.mxu0 %v1082
          %1096 = vmatprep.subr.bf16.mxu0 0
          %1097 = vmatpush1.bf16.msra.mxu0 0
          %1098 = vmatprep.subr.bf16.mxu0 0
          %1099 = vmatpush1.bf16.msra.mxu0 0
          %1100 = vmatprep.subr.bf16.mxu0 0
          %1101 = vmatpush1.bf16.msra.mxu0 0
          %1102 = vmatprep.subr.bf16.mxu0 0
          %1103 = vmatpush1.bf16.msra.mxu0 0
          %1104 = vmatprep.subr.bf16.mxu0 0
          %1105 = vmatpush1.bf16.msra.mxu0 0
          %1106 = vmatprep.subr.bf16.mxu0 0
          %1107 = vmatpush1.bf16.msra.mxu0 0
          %1108 = vmatprep.subr.bf16.mxu0 0
          %1109 = vmatpush1.bf16.msra.mxu0 0
          %1110 = vmatprep.subr.bf16.mxu0 0
          %1111 = vmatpush1.bf16.msra.mxu0 0
          %1112 = vmatprep.subr.bf16.mxu0 0
          %1113 = vmatpush1.bf16.msra.mxu0 0
          %1114 = vmatprep.subr.bf16.mxu0 0
          %1115 = vmatpush1.bf16.msra.mxu0 0
          %1116 = vmatprep.subr.bf16.mxu0 0
          %1117 = vmatpush1.bf16.msra.mxu0 0
          %1118 = vmatprep.subr.bf16.mxu0 0
          %1119 = vmatpush1.bf16.msra.mxu0 0
          %1120 = vmatprep.subr.bf16.mxu0 0
          %1121 = vmatpush1.bf16.msra.mxu0 0
          %1122 = vmatprep.mubr.bf16.mxu0 0
          %1123 = vmatmul.mubr.bf16.gmra.mrb[0].mxu0 %v1088
          %v1124 = vpop.f32.mrb[0].mxu0
          %v1125 = vadd.f32 %v1061, %v1124
          %v1126 = vpop.f32.mrb[0].mxu0
          %v1127 = vpop.f32.mrb[0].mxu0
          %v1128 = vadd.f32 %v1061, %v1127
          %v1129 = vpop.f32.mrb[0].mxu0
          %1130 = vdwg.mxu0
          %v1131 = vld [vmem:[%s3] sm:$0x1]
          %v1132 = vld [vmem:[%s4] sm:$0x1]
          %v1133 = vadd.f32 %v1131, %v1132
          %vm1134 = vcmask 253952
          %1135 = vst.msk [vmem:[#allocation2] sm:$0x1] %vm1134, %v1133
          %v1136 = vld [vmem:[%s4 + $0x1] sm:$0xff]
          %v1137 = vld [vmem:[%s4 + $0x9] sm:$0xff]
          %v1138 = vadd.f32 %v1125, %v1136
          %v1139 = vadd.f32 %v1128, %v1137
          %vm1140 = vcmask 261120
          %1141 = vst.msk [vmem:[#allocation2 + $0x1] sm:$0xff] %vm1140, %v1138
          %1142 = vst.msk [vmem:[#allocation2 + $0x9] sm:$0xff] %vm1140, %v1139
          %vm1143 = vcmask 260096
          %1144 = vst.msk [vmem:[#allocation2 + $0x11] sm:$0x7f] %vm1143, 0.0
        $region124: #{vit_forward.1} parent=119 // pred_fallthru
          _
        %v1145 = vld [vmem:[#allocation2] sm:$0xff]
        %v1146 = vld [vmem:[#allocation2 + $0x8] sm:$0xff]
        %v1147 = vld [vmem:[#allocation2 + $0x10] sm:$0xff]
        %v1148 = vld [vmem:[%s982] sm:$0x1]
        %v1149 = vld [vmem:[%s985] sm:$0x1]
        %vm1150 = vcmask 261120
        %v1151 = vsel %vm1150, %v1145, 0.0
        %1152 = vadd.xlane.f32.xlu0 %v1151
        %v1153 = vpop.xlane.xlu0 %1152
        %v1154 = vsel %vm1150, %v1146, 0.0
        %1155 = vadd.xlane.f32.xlu0 %v1154
        %v1156 = vpop.xlane.xlu0 %1155
        %v1157 = vsel %vm1150, %v1147, 0.0
        %1158 = vadd.xlane.f32.xlu0 %v1157
        %v1159 = vpop.xlane.xlu0 %1158
        %v1160 = vrcp.pop 32.0
        %v1161 = vmul.f32 %v1153, %v1160
        %v1162 = vmul.f32 %v1156, %v1160
        %v1163 = vmul.f32 %v1159, %v1160
        %v1164 = vsub.f32 %v1145, %v1161
        %v1165 = vsub.f32 %v1146, %v1162
        %v1166 = vsub.f32 %v1147, %v1163
        %v1167 = vmul.f32 %v1164, %v1164
        %v1168 = vmul.f32 %v1165, %v1165
        %v1169 = vmul.f32 %v1166, %v1166
        %v1170 = vsel %vm1150, %v1167, 0.0
        %1171 = vadd.xlane.f32.xlu0 %v1170
        %v1172 = vpop.xlane.xlu0 %1171
        %v1173 = vsel %vm1150, %v1168, 0.0
        %1174 = vadd.xlane.f32.xlu0 %v1173
        %v1175 = vpop.xlane.xlu0 %1174
        %v1176 = vsel %vm1150, %v1169, 0.0
        %1177 = vadd.xlane.f32.xlu0 %v1176
        %v1178 = vpop.xlane.xlu0 %1177
        %v1179 = vmul.f32 %v1172, %v1160
        %v1180 = vmul.f32 %v1175, %v1160
        %v1181 = vmul.f32 %v1178, %v1160
        %v1182 = vadd.f32 %v1179, 1e-06
        %v1183 = vadd.f32 %v1180, 1e-06
        %v1184 = vadd.f32 %v1181, 1e-06
        %v1185 = vrsqrt.pop %v1182
        %v1186 = vrsqrt.pop %v1183
        %v1187 = vrsqrt.pop %v1184
        %v1188 = vmul.f32 %v1164, %v1185
        %v1189 = vmul.f32 %v1165, %v1186
        %v1190 = vmul.f32 %v1166, %v1187
        %v1192 = vlaneseq
        %v1193 = vshrl.u32 %v1192, 7
        %v1194 = vsub.s32 0, %v1193
        %v1195 = vrot.slane %v1148, %v1194
        %v1197 = vmul.f32 %v1188, %v1195
        %v1198 = vmul.f32 %v1189, %v1195
        %v1199 = vmul.f32 %v1190, %v1195
        %v1201 = vlaneseq
        %v1202 = vshrl.u32 %v1201, 7
        %v1203 = vsub.s32 0, %v1202
        %v1204 = vrot.slane %v1149, %v1203
        %v1206 = vadd.f32 %v1197, %v1204
        %v1207 = vadd.f32 %v1198, %v1204
        %v1208 = vadd.f32 %v1199, %v1204
        %v1209 = vpack.c.bf16 %v1207, %v1206
        %v1210 = vpack.c.bf16 %v1208, %v1208
        %v1211 = vlaneseq
        %v1212 = vand.u32 %v1211, 127
        %vm1213 = vcmp.lt.s32.totalorder %v1212, 17
        %v1214 = vsel %vm1213, 0.0, -1e+30
        %v1215 = vld [vmem:[%s990] sm:$0xf]
        %v1216 = vld [vmem:[%s990 + $0x4] sm:$0xf]
        %v1217 = vld [vmem:[%s990 + $0x8] sm:$0xf]
        %v1218 = vld [vmem:[%s990 + $0xc] sm:$0xf]
        %v1219 = vld [vmem:[%s994] sm:$0x1]
        %v1221 = vlaneseq
        %v1222 = vshrl.u32 %v1221, 7
        %v1223 = vsub.s32 0, %v1222
        %v1224 = vrot.slane %v1219, %v1223
        %v1230 = vunpack.c.l.b16 %v1215
        %v1231 = vunpack.c.l.b16 %v1216
        %v1232 = vunpack.c.l.b16 %v1217
        %v1233 = vunpack.c.l.b16 %v1218
        %v1234 = vpack.c.b16 %v1231, %v1230
        %v1235 = vpack.c.b16 %v1233, %v1232
        %v1239 = vsel %vm1150, %v1209, 0
        %v1242 = vsel %vm1150, %v1210, 0
        %1244 = vmatprep.subr.bf16.mxu0 0
        %1245 = vmatpush1.bf16.msra.mxu0 %v1234
        %1246 = vmatprep.subr.bf16.mxu0 0
        %1247 = vmatpush1.bf16.msra.mxu0 %v1235
        %1248 = vmatprep.subr.bf16.mxu0 0
        %1249 = vmatpush1.bf16.msra.mxu0 0
        %1250 = vmatprep.subr.bf16.mxu0 0
        %1251 = vmatpush1.bf16.msra.mxu0 0
        %1252 = vmatprep.subr.bf16.mxu0 0
        %1253 = vmatpush1.bf16.msra.mxu0 0
        %1254 = vmatprep.subr.bf16.mxu0 0
        %1255 = vmatpush1.bf16.msra.mxu0 0
        %1256 = vmatprep.subr.bf16.mxu0 0
        %1257 = vmatpush1.bf16.msra.mxu0 0
        %1258 = vmatprep.subr.bf16.mxu0 0
        %1259 = vmatpush1.bf16.msra.mxu0 0
        %1260 = vmatprep.subr.bf16.mxu0 0
        %1261 = vmatpush1.bf16.msra.mxu0 0
        %1262 = vmatprep.subr.bf16.mxu0 0
        %1263 = vmatpush1.bf16.msra.mxu0 0
        %1264 = vmatprep.subr.bf16.mxu0 0
        %1265 = vmatpush1.bf16.msra.mxu0 0
        %1266 = vmatprep.subr.bf16.mxu0 0
        %1267 = vmatpush1.bf16.msra.mxu0 0
        %1268 = vmatprep.subr.bf16.mxu0 0
        %1269 = vmatpush1.bf16.msra.mxu0 0
        %1270 = vmatprep.subr.bf16.mxu0 0
        %1271 = vmatpush1.bf16.msra.mxu0 0
        %1272 = vmatprep.subr.bf16.mxu0 0
        %1273 = vmatpush1.bf16.msra.mxu0 0
        %1274 = vmatprep.subr.bf16.mxu0 0
        %1275 = vmatpush1.bf16.msra.mxu0 0
        %1276 = vmatprep.mubr.bf16.mxu0 0
        %1277 = vmatmul.mubr.bf16.gmra.mrb[0].mxu0 %v1239
        %v1278 = vpop.f32.mrb[0].mxu0
        %v1279 = vadd.f32 %v1224, %v1278
        %v1280 = vpop.f32.mrb[0].mxu0
        %v1281 = vpop.f32.mrb[0].mxu0
        %v1282 = vadd.f32 %v1224, %v1281
        %v1283 = vpop.f32.mrb[0].mxu0
        %1284 = vmatprep.mubr.bf16.mxu0 0
        %1285 = vmatmul.mubr.bf16.gmra.mrb[0].mxu0 %v1242
        %v1286 = vpop.f32.mrb[0].mxu0
        %v1287 = vadd.f32 %v1224, %v1286
        %v1288 = vpop.f32.mrb[0].mxu0
        %v1289 = vpop.f32.mrb[0].mxu0
        %v1290 = vpop.f32.mrb[0].mxu0
        %1291 = vdwg.mxu0
        %v1292 = vpack.c.bf16 %v1282, %v1279
        %v1293 = vpack.c.bf16 %v1287, %v1287
        %v1294 = vld [vmem:[%s999] sm:$0xf]
        %v1295 = vld [vmem:[%s999 + $0x4] sm:$0xf]
        %v1296 = vld [vmem:[%s999 + $0x8] sm:$0xf]
        %v1297 = vld [vmem:[%s999 + $0xc] sm:$0xf]
        %v1298 = vld [vmem:[%s1003] sm:$0x1]
        %v1300 = vlaneseq
        %v1301 = vshrl.u32 %v1300, 7
        %v1302 = vsub.s32 0, %v1301
        %v1303 = vrot.slane %v1298, %v1302
        %v1309 = vunpack.c.l.b16 %v1294
        %v1310 = vunpack.c.l.b16 %v1295
        %v1311 = vunpack.c.l.b16 %v1296
        %v1312 = vunpack.c.l.b16 %v1297
        %v1313 = vpack.c.b16 %v1310, %v1309
        %v1314 = vpack.c.b16 %v1312, %v1311
        %1317 = vmatprep.subr.bf16.mxu0 0
        %1318 = vmatpush1.bf16.msra.mxu0 %v1313
        %1319 = vmatprep.subr.bf16.mxu0 0
        %1320 = vmatpush1.bf16.msra.mxu0 %v1314
        %1321 = vmatprep.subr.bf16.mxu0 0
        %1322 = vmatpush1.bf16.msra.mxu0 0
        %1323 = vmatprep.subr.bf16.mxu0 0
        %1324 = vmatpush1.bf16.msra.mxu0 0
        %1325 = vmatprep.subr.bf16.mxu0 0
        %1326 = vmatpush1.bf16.msra.mxu0 0
        %1327 = vmatprep.subr.bf16.mxu0 0
        %1328 = vmatpush1.bf16.msra.mxu0 0
        %1329 = vmatprep.subr.bf16.mxu0 0
        %1330 = vmatpush1.bf16.msra.mxu0 0
        %1331 = vmatprep.subr.bf16.mxu0 0
        %1332 = vmatpush1.bf16.msra.mxu0 0
        %1333 = vmatprep.subr.bf16.mxu0 0
        %1334 = vmatpush1.bf16.msra.mxu0 0
        %1335 = vmatprep.subr.bf16.mxu0 0
        %1336 = vmatpush1.bf16.msra.mxu0 0
        %1337 = vmatprep.subr.bf16.mxu0 0
        %1338 = vmatpush1.bf16.msra.mxu0 0
        %1339 = vmatprep.subr.bf16.mxu0 0
        %1340 = vmatpush1.bf16.msra.mxu0 0
        %1341 = vmatprep.subr.bf16.mxu0 0
        %1342 = vmatpush1.bf16.msra.mxu0 0
        %1343 = vmatprep.subr.bf16.mxu0 0
        %1344 = vmatpush1.bf16.msra.mxu0 0
        %1345 = vmatprep.subr.bf16.mxu0 0
        %1346 = vmatpush1.bf16.msra.mxu0 0
        %1347 = vmatprep.subr.bf16.mxu0 0
        %1348 = vmatpush1.bf16.msra.mxu0 0
        %1349 = vmatprep.mubr.bf16.mxu0 0
        %1350 = vmatmul.mubr.bf16.gmra.mrb[0].mxu0 %v1239
        %v1351 = vpop.f32.mrb[0].mxu0
        %v1352 = vadd.f32 %v1303, %v1351
        %v1353 = vpop.f32.mrb[0].mxu0
        %v1354 = vpop.f32.mrb[0].mxu0
        %v1355 = vadd.f32 %v1303, %v1354
        %v1356 = vpop.f32.mrb[0].mxu0
        %1357 = vmatprep.mubr.bf16.mxu0 0
        %1358 = vmatmul.mubr.bf16.gmra.mrb[0].mxu0 %v1242
        %v1359 = vpop.f32.mrb[0].mxu0
        %v1360 = vadd.f32 %v1303, %v1359
        %v1361 = vpop.f32.mrb[0].mxu0
        %v1362 = vpop.f32.mrb[0].mxu0
        %v1363 = vpop.f32.mrb[0].mxu0
        %1364 = vdwg.mxu0
        %v1365 = vpack.c.bf16 %v1355, %v1352
        %v1366 = vpack.c.bf16 %v1360, %v1360
        %v1367 = vld [vmem:[%s1008] sm:$0xf]
        %v1368 = vld [vmem:[%s1008 + $0x4] sm:$0xf]
        %v1369 = vld [vmem:[%s1008 + $0x8] sm:$0xf]
        %v1370 = vld [vmem:[%s1008 + $0xc] sm:$0xf]
        %v1371 = vld [vmem:[%s1012] sm:$0x1]
        %v1373 = vlaneseq
        %v1374 = vshrl.u32 %v1373, 7
        %v1375 = vsub.s32 0, %v1374
        %v1376 = vrot.slane %v1371, %v1375
        %v1382 = vunpack.c.l.b16 %v1367
        %v1383 = vunpack.c.l.b16 %v1368
        %v1384 = vunpack.c.l.b16 %v1369
        %v1385 = vunpack.c.l.b16 %v1370
        %v1386 = vpack.c.b16 %v1383, %v1382
        %v1387 = vpack.c.b16 %v1385, %v1384
        %1390 = vmatprep.subr.bf16.mxu0 0
        %1391 = vmatpush1.bf16.msra.mxu0 %v1386
        %1392 = vmatprep.subr.bf16.mxu0 0
        %1393 = vmatpush1.bf16.msra.mxu0 %v1387
        %1394 = vmatprep.subr.bf16.mxu0 0
        %1395 = vmatpush1.bf16.msra.mxu0 0
        %1396 = vmatprep.subr.bf16.mxu0 0
        %1397 = vmatpush1.bf16.msra.mxu0 0
        %1398 = vmatprep.subr.bf16.mxu0 0
        %1399 = vmatpush1.bf16.msra.mxu0 0
        %1400 = vmatprep.subr.bf16.mxu0 0
        %1401 = vmatpush1.bf16.msra.mxu0 0
        %1402 = vmatprep.subr.bf16.mxu0 0
        %1403 = vmatpush1.bf16.msra.mxu0 0
        %1404 = vmatprep.subr.bf16.mxu0 0
        %1405 = vmatpush1.bf16.msra.mxu0 0
        %1406 = vmatprep.subr.bf16.mxu0 0
        %1407 = vmatpush1.bf16.msra.mxu0 0
        %1408 = vmatprep.subr.bf16.mxu0 0
        %1409 = vmatpush1.bf16.msra.mxu0 0
        %1410 = vmatprep.subr.bf16.mxu0 0
        %1411 = vmatpush1.bf16.msra.mxu0 0
        %1412 = vmatprep.subr.bf16.mxu0 0
        %1413 = vmatpush1.bf16.msra.mxu0 0
        %1414 = vmatprep.subr.bf16.mxu0 0
        %1415 = vmatpush1.bf16.msra.mxu0 0
        %1416 = vmatprep.subr.bf16.mxu0 0
        %1417 = vmatpush1.bf16.msra.mxu0 0
        %1418 = vmatprep.subr.bf16.mxu0 0
        %1419 = vmatpush1.bf16.msra.mxu0 0
        %1420 = vmatprep.subr.bf16.mxu0 0
        %1421 = vmatpush1.bf16.msra.mxu0 0
        %1422 = vmatprep.mubr.bf16.mxu0 0
        %1423 = vmatmul.mubr.bf16.gmra.mrb[0].mxu0 %v1239
        %v1424 = vpop.f32.mrb[0].mxu0
        %v1425 = vadd.f32 %v1376, %v1424
        %v1426 = vpop.f32.mrb[0].mxu0
        %v1427 = vpop.f32.mrb[0].mxu0
        %v1428 = vadd.f32 %v1376, %v1427
        %v1429 = vpop.f32.mrb[0].mxu0
        %1430 = vmatprep.mubr.bf16.mxu0 0
        %1431 = vmatmul.mubr.bf16.gmra.mrb[0].mxu0 %v1242
        %v1432 = vpop.f32.mrb[0].mxu0
        %v1433 = vadd.f32 %v1376, %v1432
        %v1434 = vpop.f32.mrb[0].mxu0
        %v1435 = vpop.f32.mrb[0].mxu0
        %v1436 = vpop.f32.mrb[0].mxu0
        %1437 = vdwg.mxu0
        %v1438 = vpack.c.bf16 %v1428, %v1425
        %v1439 = vpack.c.bf16 %v1433, %v1433
        %vm1440 = vcmask 64512
        %v1442 = vsel %vm1440, %v1292, 0
        %v1445 = vsel %vm1440, %v1293, 0
        %v1448 = vsel %vm1440, %v1365, 0
        %v1451 = vsel %vm1440, %v1366, 0
        %1453 = vmatprep.subr.bf16.mxu0 0
        %1454 = vmatpush1.bf16.xpose.msra.mxu0 %v1448
        %1455 = vmatprep.subr.bf16.mxu0 0
        %1456 = vmatpush1.bf16.xpose.msra.mxu0 %v1451
        %1457 = vmatprep.subr.bf16.mxu0 0
        %1458 = vmatpush1.bf16.xpose.msra.mxu0 0
        %1459 = vmatprep.subr.bf16.mxu0 0
        %1460 = vmatpush1.bf16.xpose.msra.mxu0 0
        %1461 = vmatprep.subr.bf16.mxu0 0
        %1462 = vmatpush1.bf16.xpose.msra.mxu0 0
        %1463 = vmatprep.subr.bf16.mxu0 0
        %1464 = vmatpush1.bf16.xpose.msra.mxu0 0
        %1465 = vmatprep.subr.bf16.mxu0 0
        %1466 = vmatpush1.bf16.xpose.msra.mxu0 0
        %1467 = vmatprep.subr.bf16.mxu0 0
        %1468 = vmatpush1.bf16.xpose.msra.mxu0 0
        %1469 = vmatprep.subr.bf16.mxu0 0
        %1470 = vmatpush1.bf16.xpose.msra.mxu0 0
        %1471 = vmatprep.subr.bf16.mxu0 0
        %1472 = vmatpush1.bf16.xpose.msra.mxu0 0
        %1473 = vmatprep.subr.bf16.mxu0 0
        %1474 = vmatpush1.bf16.xpose.msra.mxu0 0
        %1475 = vmatprep.subr.bf16.mxu0 0
        %1476 = vmatpush1.bf16.xpose.msra.mxu0 0
        %1477 = vmatprep.subr.bf16.mxu0 0
        %1478 = vmatpush1.bf16.xpose.msra.mxu0 0
        %1479 = vmatprep.subr.bf16.mxu0 0
        %1480 = vmatpush1.bf16.xpose.msra.mxu0 0
        %1481 = vmatprep.subr.bf16.mxu0 0
        %1482 = vmatpush1.bf16.xpose.msra.mxu0 0
        %1483 = vmatprep.subr.bf16.mxu0 0
        %1484 = vmatpush1.bf16.xpose.msra.mxu0 0
        %1485 = vmatprep.mubr.bf16.mxu0 0
        %1486 = vmatmul.mubr.bf16.gmra.mrb[0].mxu0 %v1442
        %v1487 = vpop.f32.mrb[0].mxu0
        %v1488 = vadd.f32 %v1214, %v1487
        %v1489 = vpop.f32.mrb[0].mxu0
        %v1490 = vpop.f32.mrb[0].mxu0
        %v1491 = vadd.f32 %v1214, %v1490
        %v1492 = vpop.f32.mrb[0].mxu0
        %1493 = vmatprep.mubr.bf16.mxu0 0
        %1494 = vmatmul.mubr.bf16.gmra.mrb[0].mxu0 %v1445
        %v1495 = vpop.f32.mrb[0].mxu0
        %v1496 = vadd.f32 %v1214, %v1495
        %v1497 = vpop.f32.mrb[0].mxu0
        %v1498 = vpop.f32.mrb[0].mxu0
        %v1499 = vpop.f32.mrb[0].mxu0
        %1500 = vdwg.mxu0
        %vm1501 = vcmask 195584
        %v1502 = vsel %vm1501, %v1488, -inf
        %1503 = vmax.xlane.f32.xlu0 %v1502
        %v1504 = vpop.xlane.xlu0 %1503
        %v1505 = vsel %vm1501, %v1491, -inf
        %1506 = vmax.xlane.f32.xlu0 %v1505
        %v1507 = vpop.xlane.xlu0 %1506
        %v1508 = vsel %vm1501, %v1496, -inf
        %1509 = vmax.xlane.f32.xlu0 %v1508
        %v1510 = vpop.xlane.xlu0 %1509
        %v1511 = vsub.f32 %v1488, %v1504
        %v1512 = vsub.f32 %v1491, %v1507
        %v1513 = vsub.f32 %v1496, %v1510
        %v1514 = vmul.f32 %v1511, 1.442695
        %v1515 = vpow.pop %v1514
        %v1516 = vmul.f32 %v1512, 1.442695
        %v1517 = vpow.pop %v1516
        %v1518 = vmul.f32 %v1513, 1.442695
        %v1519 = vpow.pop %v1518
        %v1520 = vsel %vm1501, %v1515, 0.0
        %1521 = vadd.xlane.f32.xlu0 %v1520
        %v1522 = vpop.xlane.xlu0 %1521
        %v1523 = vsel %vm1501, %v1517, 0.0
        %1524 = vadd.xlane.f32.xlu0 %v1523
        %v1525 = vpop.xlane.xlu0 %1524
        %v1526 = vsel %vm1501, %v1519, 0.0
        %1527 = vadd.xlane.f32.xlu0 %v1526
        %v1528 = vpop.xlane.xlu0 %1527
        %v1529 = vrcp.pop %v1522
        %v1530 = vrcp.pop %v1525
        %v1531 = vrcp.pop %v1528
        %v1532 = vmul.f32 %v1515, %v1529
        %v1533 = vmul.f32 %v1517, %v1530
        %v1534 = vmul.f32 %v1519, %v1531
        %v1535 = vpack.c.bf16 %v1533, %v1532
        %v1536 = vpack.c.bf16 %v1534, %v1534
        %v1538 = vsel %vm1501, %v1535, 0
        %v1541 = vsel %vm1501, %v1536, 0
        %vm1543 = vcmask 1043456
        %v1545 = vsel %vm1543, %v1439, 0
        %1547 = vmatprep.subr.bf16.mxu0 0
        %1548 = vmatpush1.bf16.msra.mxu0 %v1438
        %1549 = vmatprep.subr.bf16.mxu0 0
        %1550 = vmatpush1.bf16.msra.mxu0 %v1545
        %1551 = vmatprep.subr.bf16.mxu0 0
        %1552 = vmatpush1.bf16.msra.mxu0 0
        %1553 = vmatprep.subr.bf16.mxu0 0
        %1554 = vmatpush1.bf16.msra.mxu0 0
        %1555 = vmatprep.subr.bf16.mxu0 0
        %1556 = vmatpush1.bf16.msra.mxu0 0
        %1557 = vmatprep.subr.bf16.mxu0 0
        %1558 = vmatpush1.bf16.msra.mxu0 0
        %1559 = vmatprep.subr.bf16.mxu0 0
        %1560 = vmatpush1.bf16.msra.mxu0 0
        %1561 = vmatprep.subr.bf16.mxu0 0
        %1562 = vmatpush1.bf16.msra.mxu0 0
        %1563 = vmatprep.subr.bf16.mxu0 0
        %1564 = vmatpush1.bf16.msra.mxu0 0
        %1565 = vmatprep.subr.bf16.mxu0 0
        %1566 = vmatpush1.bf16.msra.mxu0 0
        %1567 = vmatprep.subr.bf16.mxu0 0
        %1568 = vmatpush1.bf16.msra.mxu0 0
        %1569 = vmatprep.subr.bf16.mxu0 0
        %1570 = vmatpush1.bf16.msra.mxu0 0
        %1571 = vmatprep.subr.bf16.mxu0 0
        %1572 = vmatpush1.bf16.msra.mxu0 0
        %1573 = vmatprep.subr.bf16.mxu0 0
        %1574 = vmatpush1.bf16.msra.mxu0 0
        %1575 = vmatprep.subr.bf16.mxu0 0
        %1576 = vmatpush1.bf16.msra.mxu0 0
        %1577 = vmatprep.subr.bf16.mxu0 0
        %1578 = vmatpush1.bf16.msra.mxu0 0
        %1579 = vmatprep.mubr.bf16.mxu0 0
        %1580 = vmatmul.mubr.bf16.gmra.mrb[0].mxu0 %v1538
        %v1581 = vpop.f32.mrb[0].mxu0
        %v1582 = vadd.f32 0.0, %v1581
        %v1583 = vpop.f32.mrb[0].mxu0
        %v1584 = vpop.f32.mrb[0].mxu0
        %v1585 = vadd.f32 0.0, %v1584
        %v1586 = vpop.f32.mrb[0].mxu0
        %1587 = vmatprep.mubr.bf16.mxu0 0
        %1588 = vmatmul.mubr.bf16.gmra.mrb[0].mxu0 %v1541
        %v1589 = vpop.f32.mrb[0].mxu0
        %v1590 = vadd.f32 0.0, %v1589
        %v1591 = vpop.f32.mrb[0].mxu0
        %v1592 = vpop.f32.mrb[0].mxu0
        %v1593 = vpop.f32.mrb[0].mxu0
        %1594 = vdwg.mxu0
        %v1595 = vpack.c.bf16 %v1585, %v1582
        %v1596 = vpack.c.bf16 %v1590, %v1590
        %v1597 = vld [vmem:[%s1017] sm:$0xf]
        %s1598 = scalar_lea.vmem %s990, 16
        %v1599 = vld [vmem:[%s1598] sm:$0xf]
        %v1600 = vld [vmem:[%s1598 + $0x4] sm:$0xf]
        %v1601 = vld [vmem:[%s1598 + $0x8] sm:$0xf]
        %v1602 = vld [vmem:[%s1598 + $0xc] sm:$0xf]
        %s1603 = scalar_lea.vmem %s994, 1
        %v1604 = vld [vmem:[%s1603] sm:$0x1]
        %v1606 = vlaneseq
        %v1607 = vshrl.u32 %v1606, 7
        %v1608 = vsub.s32 0, %v1607
        %v1609 = vrot.slane %v1604, %v1608
        %v1615 = vunpack.c.l.b16 %v1599
        %v1616 = vunpack.c.l.b16 %v1600
        %v1617 = vunpack.c.l.b16 %v1601
        %v1618 = vunpack.c.l.b16 %v1602
        %v1619 = vpack.c.b16 %v1616, %v1615
        %v1620 = vpack.c.b16 %v1618, %v1617
        %1623 = vmatprep.subr.bf16.mxu0 0
        %1624 = vmatpush1.bf16.msra.mxu0 %v1619
        %1625 = vmatprep.subr.bf16.mxu0 0
        %1626 = vmatpush1.bf16.msra.mxu0 %v1620
        %1627 = vmatprep.subr.bf16.mxu0 0
        %1628 = vmatpush1.bf16.msra.mxu0 0
        %1629 = vmatprep.subr.bf16.mxu0 0
        %1630 = vmatpush1.bf16.msra.mxu0 0
        %1631 = vmatprep.subr.bf16.mxu0 0
        %1632 = vmatpush1.bf16.msra.mxu0 0
        %1633 = vmatprep.subr.bf16.mxu0 0
        %1634 = vmatpush1.bf16.msra.mxu0 0
        %1635 = vmatprep.subr.bf16.mxu0 0
        %1636 = vmatpush1.bf16.msra.mxu0 0
        %1637 = vmatprep.subr.bf16.mxu0 0
        %1638 = vmatpush1.bf16.msra.mxu0 0
        %1639 = vmatprep.subr.bf16.mxu0 0
        %1640 = vmatpush1.bf16.msra.mxu0 0
        %1641 = vmatprep.subr.bf16.mxu0 0
        %1642 = vmatpush1.bf16.msra.mxu0 0
        %1643 = vmatprep.subr.bf16.mxu0 0
        %1644 = vmatpush1.bf16.msra.mxu0 0
        %1645 = vmatprep.subr.bf16.mxu0 0
        %1646 = vmatpush1.bf16.msra.mxu0 0
        %1647 = vmatprep.subr.bf16.mxu0 0
        %1648 = vmatpush1.bf16.msra.mxu0 0
        %1649 = vmatprep.subr.bf16.mxu0 0
        %1650 = vmatpush1.bf16.msra.mxu0 0
        %1651 = vmatprep.subr.bf16.mxu0 0
        %1652 = vmatpush1.bf16.msra.mxu0 0
        %1653 = vmatprep.subr.bf16.mxu0 0
        %1654 = vmatpush1.bf16.msra.mxu0 0
        %1655 = vmatprep.mubr.bf16.mxu0 0
        %1656 = vmatmul.mubr.bf16.gmra.mrb[0].mxu0 %v1239
        %v1657 = vpop.f32.mrb[0].mxu0
        %v1658 = vadd.f32 %v1609, %v1657
        %v1659 = vpop.f32.mrb[0].mxu0
        %v1660 = vpop.f32.mrb[0].mxu0
        %v1661 = vadd.f32 %v1609, %v1660
        %v1662 = vpop.f32.mrb[0].mxu0
        %1663 = vmatprep.mubr.bf16.mxu0 0
        %1664 = vmatmul.mubr.bf16.gmra.mrb[0].mxu0 %v1242
        %v1665 = vpop.f32.mrb[0].mxu0
        %v1666 = vadd.f32 %v1609, %v1665
        %v1667 = vpop.f32.mrb[0].mxu0
        %v1668 = vpop.f32.mrb[0].mxu0
        %v1669 = vpop.f32.mrb[0].mxu0
        %1670 = vdwg.mxu0
        %v1671 = vpack.c.bf16 %v1661, %v1658
        %v1672 = vpack.c.bf16 %v1666, %v1666
        %s1673 = scalar_lea.vmem %s999, 16
        %v1674 = vld [vmem:[%s1673] sm:$0xf]
        %v1675 = vld [vmem:[%s1673 + $0x4] sm:$0xf]
        %v1676 = vld [vmem:[%s1673 + $0x8] sm:$0xf]
        %v1677 = vld [vmem:[%s1673 + $0xc] sm:$0xf]
        %s1678 = scalar_lea.vmem %s1003, 1
        %v1679 = vld [vmem:[%s1678] sm:$0x1]
        %v1681 = vlaneseq
        %v1682 = vshrl.u32 %v1681, 7
        %v1683 = vsub.s32 0, %v1682
        %v1684 = vrot.slane %v1679, %v1683
        %v1690 = vunpack.c.l.b16 %v1674
        %v1691 = vunpack.c.l.b16 %v1675
        %v1692 = vunpack.c.l.b16 %v1676
        %v1693 = vunpack.c.l.b16 %v1677
        %v1694 = vpack.c.b16 %v1691, %v1690
        %v1695 = vpack.c.b16 %v1693, %v1692
        %1698 = vmatprep.subr.bf16.mxu0 0
        %1699 = vmatpush1.bf16.msra.mxu0 %v1694
        %1700 = vmatprep.subr.bf16.mxu0 0
        %1701 = vmatpush1.bf16.msra.mxu0 %v1695
        %1702 = vmatprep.subr.bf16.mxu0 0
        %1703 = vmatpush1.bf16.msra.mxu0 0
        %1704 = vmatprep.subr.bf16.mxu0 0
        %1705 = vmatpush1.bf16.msra.mxu0 0
        %1706 = vmatprep.subr.bf16.mxu0 0
        %1707 = vmatpush1.bf16.msra.mxu0 0
        %1708 = vmatprep.subr.bf16.mxu0 0
        %1709 = vmatpush1.bf16.msra.mxu0 0
        %1710 = vmatprep.subr.bf16.mxu0 0
        %1711 = vmatpush1.bf16.msra.mxu0 0
        %1712 = vmatprep.subr.bf16.mxu0 0
        %1713 = vmatpush1.bf16.msra.mxu0 0
        %1714 = vmatprep.subr.bf16.mxu0 0
        %1715 = vmatpush1.bf16.msra.mxu0 0
        %1716 = vmatprep.subr.bf16.mxu0 0
        %1717 = vmatpush1.bf16.msra.mxu0 0
        %1718 = vmatprep.subr.bf16.mxu0 0
        %1719 = vmatpush1.bf16.msra.mxu0 0
        %1720 = vmatprep.subr.bf16.mxu0 0
        %1721 = vmatpush1.bf16.msra.mxu0 0
        %1722 = vmatprep.subr.bf16.mxu0 0
        %1723 = vmatpush1.bf16.msra.mxu0 0
        %1724 = vmatprep.subr.bf16.mxu0 0
        %1725 = vmatpush1.bf16.msra.mxu0 0
        %1726 = vmatprep.subr.bf16.mxu0 0
        %1727 = vmatpush1.bf16.msra.mxu0 0
        %1728 = vmatprep.subr.bf16.mxu0 0
        %1729 = vmatpush1.bf16.msra.mxu0 0
        %1730 = vmatprep.mubr.bf16.mxu0 0
        %1731 = vmatmul.mubr.bf16.gmra.mrb[0].mxu0 %v1239
        %v1732 = vpop.f32.mrb[0].mxu0
        %v1733 = vadd.f32 %v1684, %v1732
        %v1734 = vpop.f32.mrb[0].mxu0
        %v1735 = vpop.f32.mrb[0].mxu0
        %v1736 = vadd.f32 %v1684, %v1735
        %v1737 = vpop.f32.mrb[0].mxu0
        %1738 = vmatprep.mubr.bf16.mxu0 0
        %1739 = vmatmul.mubr.bf16.gmra.mrb[0].mxu0 %v1242
        %v1740 = vpop.f32.mrb[0].mxu0
        %v1741 = vadd.f32 %v1684, %v1740
        %v1742 = vpop.f32.mrb[0].mxu0
        %v1743 = vpop.f32.mrb[0].mxu0
        %v1744 = vpop.f32.mrb[0].mxu0
        %1745 = vdwg.mxu0
        %v1746 = vpack.c.bf16 %v1736, %v1733
        %v1747 = vpack.c.bf16 %v1741, %v1741
        %s1748 = scalar_lea.vmem %s1008, 16
        %v1749 = vld [vmem:[%s1748] sm:$0xf]
        %v1750 = vld [vmem:[%s1748 + $0x4] sm:$0xf]
        %v1751 = vld [vmem:[%s1748 + $0x8] sm:$0xf]
        %v1752 = vld [vmem:[%s1748 + $0xc] sm:$0xf]
        %s1753 = scalar_lea.vmem %s1012, 1
        %v1754 = vld [vmem:[%s1753] sm:$0x1]
        %v1756 = vlaneseq
        %v1757 = vshrl.u32 %v1756, 7
        %v1758 = vsub.s32 0, %v1757
        %v1759 = vrot.slane %v1754, %v1758
        %v1765 = vunpack.c.l.b16 %v1749
        %v1766 = vunpack.c.l.b16 %v1750
        %v1767 = vunpack.c.l.b16 %v1751
        %v1768 = vunpack.c.l.b16 %v1752
        %v1769 = vpack.c.b16 %v1766, %v1765
        %v1770 = vpack.c.b16 %v1768, %v1767
        %1773 = vmatprep.subr.bf16.mxu0 0
        %1774 = vmatpush1.bf16.msra.mxu0 %v1769
        %1775 = vmatprep.subr.bf16.mxu0 0
        %1776 = vmatpush1.bf16.msra.mxu0 %v1770
        %1777 = vmatprep.subr.bf16.mxu0 0
        %1778 = vmatpush1.bf16.msra.mxu0 0
        %1779 = vmatprep.subr.bf16.mxu0 0
        %1780 = vmatpush1.bf16.msra.mxu0 0
        %1781 = vmatprep.subr.bf16.mxu0 0
        %1782 = vmatpush1.bf16.msra.mxu0 0
        %1783 = vmatprep.subr.bf16.mxu0 0
        %1784 = vmatpush1.bf16.msra.mxu0 0
        %1785 = vmatprep.subr.bf16.mxu0 0
        %1786 = vmatpush1.bf16.msra.mxu0 0
        %1787 = vmatprep.subr.bf16.mxu0 0
        %1788 = vmatpush1.bf16.msra.mxu0 0
        %1789 = vmatprep.subr.bf16.mxu0 0
        %1790 = vmatpush1.bf16.msra.mxu0 0
        %1791 = vmatprep.subr.bf16.mxu0 0
        %1792 = vmatpush1.bf16.msra.mxu0 0
        %1793 = vmatprep.subr.bf16.mxu0 0
        %1794 = vmatpush1.bf16.msra.mxu0 0
        %1795 = vmatprep.subr.bf16.mxu0 0
        %1796 = vmatpush1.bf16.msra.mxu0 0
        %1797 = vmatprep.subr.bf16.mxu0 0
        %1798 = vmatpush1.bf16.msra.mxu0 0
        %1799 = vmatprep.subr.bf16.mxu0 0
        %1800 = vmatpush1.bf16.msra.mxu0 0
        %1801 = vmatprep.subr.bf16.mxu0 0
        %1802 = vmatpush1.bf16.msra.mxu0 0
        %1803 = vmatprep.subr.bf16.mxu0 0
        %1804 = vmatpush1.bf16.msra.mxu0 0
        %1805 = vmatprep.mubr.bf16.mxu0 0
        %1806 = vmatmul.mubr.bf16.gmra.mrb[0].mxu0 %v1239
        %v1807 = vpop.f32.mrb[0].mxu0
        %v1808 = vadd.f32 %v1759, %v1807
        %v1809 = vpop.f32.mrb[0].mxu0
        %v1810 = vpop.f32.mrb[0].mxu0
        %v1811 = vadd.f32 %v1759, %v1810
        %v1812 = vpop.f32.mrb[0].mxu0
        %1813 = vmatprep.mubr.bf16.mxu0 0
        %1814 = vmatmul.mubr.bf16.gmra.mrb[0].mxu0 %v1242
        %v1815 = vpop.f32.mrb[0].mxu0
        %v1816 = vadd.f32 %v1759, %v1815
        %v1817 = vpop.f32.mrb[0].mxu0
        %v1818 = vpop.f32.mrb[0].mxu0
        %v1819 = vpop.f32.mrb[0].mxu0
        %1820 = vdwg.mxu0
        %v1821 = vpack.c.bf16 %v1811, %v1808
        %v1822 = vpack.c.bf16 %v1816, %v1816
        %v1824 = vsel %vm1440, %v1671, 0
        %v1827 = vsel %vm1440, %v1672, 0
        %v1830 = vsel %vm1440, %v1746, 0
        %v1833 = vsel %vm1440, %v1747, 0
        %1835 = vmatprep.subr.bf16.mxu0 0
        %1836 = vmatpush1.bf16.xpose.msra.mxu0 %v1830
        %1837 = vmatprep.subr.bf16.mxu0 0
        %1838 = vmatpush1.bf16.xpose.msra.mxu0 %v1833
        %1839 = vmatprep.subr.bf16.mxu0 0
        %1840 = vmatpush1.bf16.xpose.msra.mxu0 0
        %1841 = vmatprep.subr.bf16.mxu0 0
        %1842 = vmatpush1.bf16.xpose.msra.mxu0 0
        %1843 = vmatprep.subr.bf16.mxu0 0
        %1844 = vmatpush1.bf16.xpose.msra.mxu0 0
        %1845 = vmatprep.subr.bf16.mxu0 0
        %1846 = vmatpush1.bf16.xpose.msra.mxu0 0
        %1847 = vmatprep.subr.bf16.mxu0 0
        %1848 = vmatpush1.bf16.xpose.msra.mxu0 0
        %1849 = vmatprep.subr.bf16.mxu0 0
        %1850 = vmatpush1.bf16.xpose.msra.mxu0 0
        %1851 = vmatprep.subr.bf16.mxu0 0
        %1852 = vmatpush1.bf16.xpose.msra.mxu0 0
        %1853 = vmatprep.subr.bf16.mxu0 0
        %1854 = vmatpush1.bf16.xpose.msra.mxu0 0
        %1855 = vmatprep.subr.bf16.mxu0 0
        %1856 = vmatpush1.bf16.xpose.msra.mxu0 0
        %1857 = vmatprep.subr.bf16.mxu0 0
        %1858 = vmatpush1.bf16.xpose.msra.mxu0 0
        %1859 = vmatprep.subr.bf16.mxu0 0
        %1860 = vmatpush1.bf16.xpose.msra.mxu0 0
        %1861 = vmatprep.subr.bf16.mxu0 0
        %1862 = vmatpush1.bf16.xpose.msra.mxu0 0
        %1863 = vmatprep.subr.bf16.mxu0 0
        %1864 = vmatpush1.bf16.xpose.msra.mxu0 0
        %1865 = vmatprep.subr.bf16.mxu0 0
        %1866 = vmatpush1.bf16.xpose.msra.mxu0 0
        %1867 = vmatprep.mubr.bf16.mxu0 0
        %1868 = vmatmul.mubr.bf16.gmra.mrb[0].mxu0 %v1824
        %v1869 = vpop.f32.mrb[0].mxu0
        %v1870 = vadd.f32 %v1214, %v1869
        %v1871 = vpop.f32.mrb[0].mxu0
        %v1872 = vpop.f32.mrb[0].mxu0
        %v1873 = vadd.f32 %v1214, %v1872
        %v1874 = vpop.f32.mrb[0].mxu0
        %1875 = vmatprep.mubr.bf16.mxu0 0
        %1876 = vmatmul.mubr.bf16.gmra.mrb[0].mxu0 %v1827
        %v1877 = vpop.f32.mrb[0].mxu0
        %v1878 = vadd.f32 %v1214, %v1877
        %v1879 = vpop.f32.mrb[0].mxu0
        %v1880 = vpop.f32.mrb[0].mxu0
        %v1881 = vpop.f32.mrb[0].mxu0
        %1882 = vdwg.mxu0
        %v1883 = vsel %vm1501, %v1870, -inf
        %1884 = vmax.xlane.f32.xlu0 %v1883
        %v1885 = vpop.xlane.xlu0 %1884
        %v1886 = vsel %vm1501, %v1873, -inf
        %1887 = vmax.xlane.f32.xlu0 %v1886
        %v1888 = vpop.xlane.xlu0 %1887
        %v1889 = vsel %vm1501, %v1878, -inf
        %1890 = vmax.xlane.f32.xlu0 %v1889
        %v1891 = vpop.xlane.xlu0 %1890
        %v1892 = vsub.f32 %v1870, %v1885
        %v1893 = vsub.f32 %v1873, %v1888
        %v1894 = vsub.f32 %v1878, %v1891
        %v1895 = vmul.f32 %v1892, 1.442695
        %v1896 = vpow.pop %v1895
        %v1897 = vmul.f32 %v1893, 1.442695
        %v1898 = vpow.pop %v1897
        %v1899 = vmul.f32 %v1894, 1.442695
        %v1900 = vpow.pop %v1899
        %v1901 = vsel %vm1501, %v1896, 0.0
        %1902 = vadd.xlane.f32.xlu0 %v1901
        %v1903 = vpop.xlane.xlu0 %1902
        %v1904 = vsel %vm1501, %v1898, 0.0
        %1905 = vadd.xlane.f32.xlu0 %v1904
        %v1906 = vpop.xlane.xlu0 %1905
        %v1907 = vsel %vm1501, %v1900, 0.0
        %1908 = vadd.xlane.f32.xlu0 %v1907
        %v1909 = vpop.xlane.xlu0 %1908
        %v1910 = vrcp.pop %v1903
        %v1911 = vrcp.pop %v1906
        %v1912 = vrcp.pop %v1909
        %v1913 = vmul.f32 %v1896, %v1910
        %v1914 = vmul.f32 %v1898, %v1911
        %v1915 = vmul.f32 %v1900, %v1912
        %v1916 = vpack.c.bf16 %v1914, %v1913
        %v1917 = vpack.c.bf16 %v1915, %v1915
        %v1919 = vsel %vm1501, %v1916, 0
        %v1922 = vsel %vm1501, %v1917, 0
        %v1925 = vsel %vm1543, %v1822, 0
        %1927 = vmatprep.subr.bf16.mxu0 0
        %1928 = vmatpush1.bf16.msra.mxu0 %v1821
        %1929 = vmatprep.subr.bf16.mxu0 0
        %1930 = vmatpush1.bf16.msra.mxu0 %v1925
        %1931 = vmatprep.subr.bf16.mxu0 0
        %1932 = vmatpush1.bf16.msra.mxu0 0
        %1933 = vmatprep.subr.bf16.mxu0 0
        %1934 = vmatpush1.bf16.msra.mxu0 0
        %1935 = vmatprep.subr.bf16.mxu0 0
        %1936 = vmatpush1.bf16.msra.mxu0 0
        %1937 = vmatprep.subr.bf16.mxu0 0
        %1938 = vmatpush1.bf16.msra.mxu0 0
        %1939 = vmatprep.subr.bf16.mxu0 0
        %1940 = vmatpush1.bf16.msra.mxu0 0
        %1941 = vmatprep.subr.bf16.mxu0 0
        %1942 = vmatpush1.bf16.msra.mxu0 0
        %1943 = vmatprep.subr.bf16.mxu0 0
        %1944 = vmatpush1.bf16.msra.mxu0 0
        %1945 = vmatprep.subr.bf16.mxu0 0
        %1946 = vmatpush1.bf16.msra.mxu0 0
        %1947 = vmatprep.subr.bf16.mxu0 0
        %1948 = vmatpush1.bf16.msra.mxu0 0
        %1949 = vmatprep.subr.bf16.mxu0 0
        %1950 = vmatpush1.bf16.msra.mxu0 0
        %1951 = vmatprep.subr.bf16.mxu0 0
        %1952 = vmatpush1.bf16.msra.mxu0 0
        %1953 = vmatprep.subr.bf16.mxu0 0
        %1954 = vmatpush1.bf16.msra.mxu0 0
        %1955 = vmatprep.subr.bf16.mxu0 0
        %1956 = vmatpush1.bf16.msra.mxu0 0
        %1957 = vmatprep.subr.bf16.mxu0 0
        %1958 = vmatpush1.bf16.msra.mxu0 0
        %1959 = vmatprep.mubr.bf16.mxu0 0
        %1960 = vmatmul.mubr.bf16.gmra.mrb[0].mxu0 %v1919
        %v1961 = vpop.f32.mrb[0].mxu0
        %v1962 = vadd.f32 0.0, %v1961
        %v1963 = vpop.f32.mrb[0].mxu0
        %v1964 = vpop.f32.mrb[0].mxu0
        %v1965 = vadd.f32 0.0, %v1964
        %v1966 = vpop.f32.mrb[0].mxu0
        %1967 = vmatprep.mubr.bf16.mxu0 0
        %1968 = vmatmul.mubr.bf16.gmra.mrb[0].mxu0 %v1922
        %v1969 = vpop.f32.mrb[0].mxu0
        %v1970 = vadd.f32 0.0, %v1969
        %v1971 = vpop.f32.mrb[0].mxu0
        %v1972 = vpop.f32.mrb[0].mxu0
        %v1973 = vpop.f32.mrb[0].mxu0
        %1974 = vdwg.mxu0
        %v1975 = vpack.c.bf16 %v1965, %v1962
        %v1976 = vpack.c.bf16 %v1970, %v1970
        %s1977 = scalar_lea.vmem %s1017, 4
        %v1978 = vld [vmem:[%s1977] sm:$0xf]
        %v1980 = vsel %vm1440, %v1975, 0
        %v1983 = vsel %vm1440, %v1976, 0
        %v1986 = vsel %vm1543, %v1978, 0
        %1988 = vmatprep.subr.bf16.mxu0 0
        %1989 = vmatpush1.bf16.msra.mxu0 %v1986
        %1990 = vmatprep.subr.bf16.mxu0 0
        %1991 = vmatpush1.bf16.msra.mxu0 0
        %1992 = vmatprep.subr.bf16.mxu0 0
        %1993 = vmatpush1.bf16.msra.mxu0 0
        %1994 = vmatprep.subr.bf16.mxu0 0
        %1995 = vmatpush1.bf16.msra.mxu0 0
        %1996 = vmatprep.subr.bf16.mxu0 0
        %1997 = vmatpush1.bf16.msra.mxu0 0
        %1998 = vmatprep.subr.bf16.mxu0 0
        %1999 = vmatpush1.bf16.msra.mxu0 0
        %2000 = vmatprep.subr.bf16.mxu0 0
        %2001 = vmatpush1.bf16.msra.mxu0 0
        %2002 = vmatprep.subr.bf16.mxu0 0
        %2003 = vmatpush1.bf16.msra.mxu0 0
        %2004 = vmatprep.subr.bf16.mxu0 0
        %2005 = vmatpush1.bf16.msra.mxu0 0
        %2006 = vmatprep.subr.bf16.mxu0 0
        %2007 = vmatpush1.bf16.msra.mxu0 0
        %2008 = vmatprep.subr.bf16.mxu0 0
        %2009 = vmatpush1.bf16.msra.mxu0 0
        %2010 = vmatprep.subr.bf16.mxu0 0
        %2011 = vmatpush1.bf16.msra.mxu0 0
        %2012 = vmatprep.subr.bf16.mxu0 0
        %2013 = vmatpush1.bf16.msra.mxu0 0
        %2014 = vmatprep.subr.bf16.mxu0 0
        %2015 = vmatpush1.bf16.msra.mxu0 0
        %2016 = vmatprep.subr.bf16.mxu0 0
        %2017 = vmatpush1.bf16.msra.mxu0 0
        %2018 = vmatprep.subr.bf16.mxu0 0
        %2019 = vmatpush1.bf16.msra.mxu0 0
        %2020 = vmatprep.mubr.bf16.mxu0 0
        %2021 = vmatmul.mubr.bf16.gmra.mrb[0].mxu0 %v1980
        %v2022 = vpop.f32.mrb[0].mxu0
        %v2023 = vadd.f32 0.0, %v2022
        %v2024 = vpop.f32.mrb[0].mxu0
        %v2025 = vpop.f32.mrb[0].mxu0
        %v2026 = vadd.f32 0.0, %v2025
        %v2027 = vpop.f32.mrb[0].mxu0
        %2028 = vmatprep.mubr.bf16.mxu0 0
        %2029 = vmatmul.mubr.bf16.gmra.mrb[0].mxu0 %v1983
        %v2030 = vpop.f32.mrb[0].mxu0
        %v2031 = vadd.f32 0.0, %v2030
        %v2032 = vpop.f32.mrb[0].mxu0
        %v2033 = vpop.f32.mrb[0].mxu0
        %v2034 = vpop.f32.mrb[0].mxu0
        %2035 = vdwg.mxu0
        %v2037 = vsel %vm1440, %v1595, 0
        %v2040 = vsel %vm1440, %v1596, 0
        %v2043 = vsel %vm1543, %v1597, 0
        %2045 = vmatprep.subr.bf16.mxu0 0
        %2046 = vmatpush1.bf16.msra.mxu0 %v2043
        %2047 = vmatprep.subr.bf16.mxu0 0
        %2048 = vmatpush1.bf16.msra.mxu0 0
        %2049 = vmatprep.subr.bf16.mxu0 0
        %2050 = vmatpush1.bf16.msra.mxu0 0
        %2051 = vmatprep.subr.bf16.mxu0 0
        %2052 = vmatpush1.bf16.msra.mxu0 0
        %2053 = vmatprep.subr.bf16.mxu0 0
        %2054 = vmatpush1.bf16.msra.mxu0 0
        %2055 = vmatprep.subr.bf16.mxu0 0
        %2056 = vmatpush1.bf16.msra.mxu0 0
        %2057 = vmatprep.subr.bf16.mxu0 0
        %2058 = vmatpush1.bf16.msra.mxu0 0
        %2059 = vmatprep.subr.bf16.mxu0 0
        %2060 = vmatpush1.bf16.msra.mxu0 0
        %2061 = vmatprep.subr.bf16.mxu0 0
        %2062 = vmatpush1.bf16.msra.mxu0 0
        %2063 = vmatprep.subr.bf16.mxu0 0
        %2064 = vmatpush1.bf16.msra.mxu0 0
        %2065 = vmatprep.subr.bf16.mxu0 0
        %2066 = vmatpush1.bf16.msra.mxu0 0
        %2067 = vmatprep.subr.bf16.mxu0 0
        %2068 = vmatpush1.bf16.msra.mxu0 0
        %2069 = vmatprep.subr.bf16.mxu0 0
        %2070 = vmatpush1.bf16.msra.mxu0 0
        %2071 = vmatprep.subr.bf16.mxu0 0
        %2072 = vmatpush1.bf16.msra.mxu0 0
        %2073 = vmatprep.subr.bf16.mxu0 0
        %2074 = vmatpush1.bf16.msra.mxu0 0
        %2075 = vmatprep.subr.bf16.mxu0 0
        %2076 = vmatpush1.bf16.msra.mxu0 0
        %2077 = vmatprep.mubr.bf16.mxu0 0
        %2078 = vmatmul.mubr.bf16.gmra.mrb[0].mxu0 %v2037
        %v2079 = vpop.f32.mrb[0].mxu0
        %v2080 = vadd.f32 %v2023, %v2079
        %v2081 = vpop.f32.mrb[0].mxu0
        %v2082 = vpop.f32.mrb[0].mxu0
        %v2083 = vadd.f32 %v2026, %v2082
        %v2084 = vpop.f32.mrb[0].mxu0
        %2085 = vmatprep.mubr.bf16.mxu0 0
        %2086 = vmatmul.mubr.bf16.gmra.mrb[0].mxu0 %v2040
        %v2087 = vpop.f32.mrb[0].mxu0
        %v2088 = vadd.f32 %v2031, %v2087
        %v2089 = vpop.f32.mrb[0].mxu0
        %v2090 = vpop.f32.mrb[0].mxu0
        %v2091 = vpop.f32.mrb[0].mxu0
        %2092 = vdwg.mxu0
        %s2093 = scalar_lea.vmem %s990, 32
        %v2094 = vld [vmem:[%s2093] sm:$0xf]
        %v2095 = vld [vmem:[%s2093 + $0x4] sm:$0xf]
        %v2096 = vld [vmem:[%s2093 + $0x8] sm:$0xf]
        %v2097 = vld [vmem:[%s2093 + $0xc] sm:$0xf]
        %s2098 = scalar_lea.vmem %s994, 2
        %v2099 = vld [vmem:[%s2098] sm:$0x1]
        %v2101 = vlaneseq
        %v2102 = vshrl.u32 %v2101, 7
        %v2103 = vsub.s32 0, %v2102
        %v2104 = vrot.slane %v2099, %v2103
        %v2110 = vunpack.c.l.b16 %v2094
        %v2111 = vunpack.c.l.b16 %v2095
        %v2112 = vunpack.c.l.b16 %v2096
        %v2113 = vunpack.c.l.b16 %v2097
        %v2114 = vpack.c.b16 %v2111, %v2110
        %v2115 = vpack.c.b16 %v2113, %v2112
        %2118 = vmatprep.subr.bf16.mxu0 0
        %2119 = vmatpush1.bf16.msra.mxu0 %v2114
        %2120 = vmatprep.subr.bf16.mxu0 0
        %2121 = vmatpush1.bf16.msra.mxu0 %v2115
        %2122 = vmatprep.subr.bf16.mxu0 0
        %2123 = vmatpush1.bf16.msra.mxu0 0
        %2124 = vmatprep.subr.bf16.mxu0 0
        %2125 = vmatpush1.bf16.msra.mxu0 0
        %2126 = vmatprep.subr.bf16.mxu0 0
        %2127 = vmatpush1.bf16.msra.mxu0 0
        %2128 = vmatprep.subr.bf16.mxu0 0
        %2129 = vmatpush1.bf16.msra.mxu0 0
        %2130 = vmatprep.subr.bf16.mxu0 0
        %2131 = vmatpush1.bf16.msra.mxu0 0
        %2132 = vmatprep.subr.bf16.mxu0 0
        %2133 = vmatpush1.bf16.msra.mxu0 0
        %2134 = vmatprep.subr.bf16.mxu0 0
        %2135 = vmatpush1.bf16.msra.mxu0 0
        %2136 = vmatprep.subr.bf16.mxu0 0
        %2137 = vmatpush1.bf16.msra.mxu0 0
        %2138 = vmatprep.subr.bf16.mxu0 0
        %2139 = vmatpush1.bf16.msra.mxu0 0
        %2140 = vmatprep.subr.bf16.mxu0 0
        %2141 = vmatpush1.bf16.msra.mxu0 0
        %2142 = vmatprep.subr.bf16.mxu0 0
        %2143 = vmatpush1.bf16.msra.mxu0 0
        %2144 = vmatprep.subr.bf16.mxu0 0
        %2145 = vmatpush1.bf16.msra.mxu0 0
        %2146 = vmatprep.subr.bf16.mxu0 0
        %2147 = vmatpush1.bf16.msra.mxu0 0
        %2148 = vmatprep.subr.bf16.mxu0 0
        %2149 = vmatpush1.bf16.msra.mxu0 0
        %2150 = vmatprep.mubr.bf16.mxu0 0
        %2151 = vmatmul.mubr.bf16.gmra.mrb[0].mxu0 %v1239
        %v2152 = vpop.f32.mrb[0].mxu0
        %v2153 = vadd.f32 %v2104, %v2152
        %v2154 = vpop.f32.mrb[0].mxu0
        %v2155 = vpop.f32.mrb[0].mxu0
        %v2156 = vadd.f32 %v2104, %v2155
        %v2157 = vpop.f32.mrb[0].mxu0
        %2158 = vmatprep.mubr.bf16.mxu0 0
        %2159 = vmatmul.mubr.bf16.gmra.mrb[0].mxu0 %v1242
        %v2160 = vpop.f32.mrb[0].mxu0
        %v2161 = vadd.f32 %v2104, %v2160
        %v2162 = vpop.f32.mrb[0].mxu0
        %v2163 = vpop.f32.mrb[0].mxu0
        %v2164 = vpop.f32.mrb[0].mxu0
        %2165 = vdwg.mxu0
        %v2166 = vpack.c.bf16 %v2156, %v2153
        %v2167 = vpack.c.bf16 %v2161, %v2161
        %s2168 = scalar_lea.vmem %s999, 32
        %v2169 = vld [vmem:[%s2168] sm:$0xf]
        %v2170 = vld [vmem:[%s2168 + $0x4] sm:$0xf]
        %v2171 = vld [vmem:[%s2168 + $0x8] sm:$0xf]
        %v2172 = vld [vmem:[%s2168 + $0xc] sm:$0xf]
        %s2173 = scalar_lea.vmem %s1003, 2
        %v2174 = vld [vmem:[%s2173] sm:$0x1]
        %v2176 = vlaneseq
        %v2177 = vshrl.u32 %v2176, 7
        %v2178 = vsub.s32 0, %v2177
        %v2179 = vrot.slane %v2174, %v2178
        %v2185 = vunpack.c.l.b16 %v2169
        %v2186 = vunpack.c.l.b16 %v2170
        %v2187 = vunpack.c.l.b16 %v2171
        %v2188 = vunpack.c.l.b16 %v2172
        %v2189 = vpack.c.b16 %v2186, %v2185
        %v2190 = vpack.c.b16 %v2188, %v2187
        %2193 = vmatprep.subr.bf16.mxu0 0
        %2194 = vmatpush1.bf16.msra.mxu0 %v2189
        %2195 = vmatprep.subr.bf16.mxu0 0
        %2196 = vmatpush1.bf16.msra.mxu0 %v2190
        %2197 = vmatprep.subr.bf16.mxu0 0
        %2198 = vmatpush1.bf16.msra.mxu0 0
        %2199 = vmatprep.subr.bf16.mxu0 0
        %2200 = vmatpush1.bf16.msra.mxu0 0
        %2201 = vmatprep.subr.bf16.mxu0 0
        %2202 = vmatpush1.bf16.msra.mxu0 0
        %2203 = vmatprep.subr.bf16.mxu0 0
        %2204 = vmatpush1.bf16.msra.mxu0 0
        %2205 = vmatprep.subr.bf16.mxu0 0
        %2206 = vmatpush1.bf16.msra.mxu0 0
        %2207 = vmatprep.subr.bf16.mxu0 0
        %2208 = vmatpush1.bf16.msra.mxu0 0
        %2209 = vmatprep.subr.bf16.mxu0 0
        %2210 = vmatpush1.bf16.msra.mxu0 0
        %2211 = vmatprep.subr.bf16.mxu0 0
        %2212 = vmatpush1.bf16.msra.mxu0 0
        %2213 = vmatprep.subr.bf16.mxu0 0
        %2214 = vmatpush1.bf16.msra.mxu0 0
        %2215 = vmatprep.subr.bf16.mxu0 0
        %2216 = vmatpush1.bf16.msra.mxu0 0
        %2217 = vmatprep.subr.bf16.mxu0 0
        %2218 = vmatpush1.bf16.msra.mxu0 0
        %2219 = vmatprep.subr.bf16.mxu0 0
        %2220 = vmatpush1.bf16.msra.mxu0 0
        %2221 = vmatprep.subr.bf16.mxu0 0
        %2222 = vmatpush1.bf16.msra.mxu0 0
        %2223 = vmatprep.subr.bf16.mxu0 0
        %2224 = vmatpush1.bf16.msra.mxu0 0
        %2225 = vmatprep.mubr.bf16.mxu0 0
        %2226 = vmatmul.mubr.bf16.gmra.mrb[0].mxu0 %v1239
        %v2227 = vpop.f32.mrb[0].mxu0
        %v2228 = vadd.f32 %v2179, %v2227
        %v2229 = vpop.f32.mrb[0].mxu0
        %v2230 = vpop.f32.mrb[0].mxu0
        %v2231 = vadd.f32 %v2179, %v2230
        %v2232 = vpop.f32.mrb[0].mxu0
        %2233 = vmatprep.mubr.bf16.mxu0 0
        %2234 = vmatmul.mubr.bf16.gmra.mrb[0].mxu0 %v1242
        %v2235 = vpop.f32.mrb[0].mxu0
        %v2236 = vadd.f32 %v2179, %v2235
        %v2237 = vpop.f32.mrb[0].mxu0
        %v2238 = vpop.f32.mrb[0].mxu0
        %v2239 = vpop.f32.mrb[0].mxu0
        %2240 = vdwg.mxu0
        %v2241 = vpack.c.bf16 %v2231, %v2228
        %v2242 = vpack.c.bf16 %v2236, %v2236
        %s2243 = scalar_lea.vmem %s1008, 32
        %v2244 = vld [vmem:[%s2243] sm:$0xf]
        %v2245 = vld [vmem:[%s2243 + $0x4] sm:$0xf]
        %v2246 = vld [vmem:[%s2243 + $0x8] sm:$0xf]
        %v2247 = vld [vmem:[%s2243 + $0xc] sm:$0xf]
        %s2248 = scalar_lea.vmem %s1012, 2
        %v2249 = vld [vmem:[%s2248] sm:$0x1]
        %v2251 = vlaneseq
        %v2252 = vshrl.u32 %v2251, 7
        %v2253 = vsub.s32 0, %v2252
        %v2254 = vrot.slane %v2249, %v2253
        %v2260 = vunpack.c.l.b16 %v2244
        %v2261 = vunpack.c.l.b16 %v2245
        %v2262 = vunpack.c.l.b16 %v2246
        %v2263 = vunpack.c.l.b16 %v2247
        %v2264 = vpack.c.b16 %v2261, %v2260
        %v2265 = vpack.c.b16 %v2263, %v2262
        %2268 = vmatprep.subr.bf16.mxu0 0
        %2269 = vmatpush1.bf16.msra.mxu0 %v2264
        %2270 = vmatprep.subr.bf16.mxu0 0
        %2271 = vmatpush1.bf16.msra.mxu0 %v2265
        %2272 = vmatprep.subr.bf16.mxu0 0
        %2273 = vmatpush1.bf16.msra.mxu0 0
        %2274 = vmatprep.subr.bf16.mxu0 0
        %2275 = vmatpush1.bf16.msra.mxu0 0
        %2276 = vmatprep.subr.bf16.mxu0 0
        %2277 = vmatpush1.bf16.msra.mxu0 0
        %2278 = vmatprep.subr.bf16.mxu0 0
        %2279 = vmatpush1.bf16.msra.mxu0 0
        %2280 = vmatprep.subr.bf16.mxu0 0
        %2281 = vmatpush1.bf16.msra.mxu0 0
        %2282 = vmatprep.subr.bf16.mxu0 0
        %2283 = vmatpush1.bf16.msra.mxu0 0
        %2284 = vmatprep.subr.bf16.mxu0 0
        %2285 = vmatpush1.bf16.msra.mxu0 0
        %2286 = vmatprep.subr.bf16.mxu0 0
        %2287 = vmatpush1.bf16.msra.mxu0 0
        %2288 = vmatprep.subr.bf16.mxu0 0
        %2289 = vmatpush1.bf16.msra.mxu0 0
        %2290 = vmatprep.subr.bf16.mxu0 0
        %2291 = vmatpush1.bf16.msra.mxu0 0
        %2292 = vmatprep.subr.bf16.mxu0 0
        %2293 = vmatpush1.bf16.msra.mxu0 0
        %2294 = vmatprep.subr.bf16.mxu0 0
        %2295 = vmatpush1.bf16.msra.mxu0 0
        %2296 = vmatprep.subr.bf16.mxu0 0
        %2297 = vmatpush1.bf16.msra.mxu0 0
        %2298 = vmatprep.subr.bf16.mxu0 0
        %2299 = vmatpush1.bf16.msra.mxu0 0
        %2300 = vmatprep.mubr.bf16.mxu0 0
        %2301 = vmatmul.mubr.bf16.gmra.mrb[0].mxu0 %v1239
        %v2302 = vpop.f32.mrb[0].mxu0
        %v2303 = vadd.f32 %v2254, %v2302
        %v2304 = vpop.f32.mrb[0].mxu0
        %v2305 = vpop.f32.mrb[0].mxu0
        %v2306 = vadd.f32 %v2254, %v2305
        %v2307 = vpop.f32.mrb[0].mxu0
        %2308 = vmatprep.mubr.bf16.mxu0 0
        %2309 = vmatmul.mubr.bf16.gmra.mrb[0].mxu0 %v1242
        %v2310 = vpop.f32.mrb[0].mxu0
        %v2311 = vadd.f32 %v2254, %v2310
        %v2312 = vpop.f32.mrb[0].mxu0
        %v2313 = vpop.f32.mrb[0].mxu0
        %v2314 = vpop.f32.mrb[0].mxu0
        %2315 = vdwg.mxu0
        %v2316 = vpack.c.bf16 %v2306, %v2303
        %v2317 = vpack.c.bf16 %v2311, %v2311
        %v2319 = vsel %vm1440, %v2166, 0
        %v2322 = vsel %vm1440, %v2167, 0
        %v2325 = vsel %vm1440, %v2241, 0
        %v2328 = vsel %vm1440, %v2242, 0
        %2330 = vmatprep.subr.bf16.mxu0 0
        %2331 = vmatpush1.bf16.xpose.msra.mxu0 %v2325
        %2332 = vmatprep.subr.bf16.mxu0 0
        %2333 = vmatpush1.bf16.xpose.msra.mxu0 %v2328
        %2334 = vmatprep.subr.bf16.mxu0 0
        %2335 = vmatpush1.bf16.xpose.msra.mxu0 0
        %2336 = vmatprep.subr.bf16.mxu0 0
        %2337 = vmatpush1.bf16.xpose.msra.mxu0 0
        %2338 = vmatprep.subr.bf16.mxu0 0
        %2339 = vmatpush1.bf16.xpose.msra.mxu0 0
        %2340 = vmatprep.subr.bf16.mxu0 0
        %2341 = vmatpush1.bf16.xpose.msra.mxu0 0
        %2342 = vmatprep.subr.bf16.mxu0 0
        %2343 = vmatpush1.bf16.xpose.msra.mxu0 0
        %2344 = vmatprep.subr.bf16.mxu0 0
        %2345 = vmatpush1.bf16.xpose.msra.mxu0 0
        %2346 = vmatprep.subr.bf16.mxu0 0
        %2347 = vmatpush1.bf16.xpose.msra.mxu0 0
        %2348 = vmatprep.subr.bf16.mxu0 0
        %2349 = vmatpush1.bf16.xpose.msra.mxu0 0
        %2350 = vmatprep.subr.bf16.mxu0 0
        %2351 = vmatpush1.bf16.xpose.msra.mxu0 0
        %2352 = vmatprep.subr.bf16.mxu0 0
        %2353 = vmatpush1.bf16.xpose.msra.mxu0 0
        %2354 = vmatprep.subr.bf16.mxu0 0
        %2355 = vmatpush1.bf16.xpose.msra.mxu0 0
        %2356 = vmatprep.subr.bf16.mxu0 0
        %2357 = vmatpush1.bf16.xpose.msra.mxu0 0
        %2358 = vmatprep.subr.bf16.mxu0 0
        %2359 = vmatpush1.bf16.xpose.msra.mxu0 0
        %2360 = vmatprep.subr.bf16.mxu0 0
        %2361 = vmatpush1.bf16.xpose.msra.mxu0 0
        %2362 = vmatprep.mubr.bf16.mxu0 0
        %2363 = vmatmul.mubr.bf16.gmra.mrb[0].mxu0 %v2319
        %v2364 = vpop.f32.mrb[0].mxu0
        %v2365 = vadd.f32 %v1214, %v2364
        %v2366 = vpop.f32.mrb[0].mxu0
        %v2367 = vpop.f32.mrb[0].mxu0
        %v2368 = vadd.f32 %v1214, %v2367
        %v2369 = vpop.f32.mrb[0].mxu0
        %2370 = vmatprep.mubr.bf16.mxu0 0
        %2371 = vmatmul.mubr.bf16.gmra.mrb[0].mxu0 %v2322
        %v2372 = vpop.f32.mrb[0].mxu0
        %v2373 = vadd.f32 %v1214, %v2372
        %v2374 = vpop.f32.mrb[0].mxu0
        %v2375 = vpop.f32.mrb[0].mxu0
        %v2376 = vpop.f32.mrb[0].mxu0
        %2377 = vdwg.mxu0
        %v2378 = vsel %vm1501, %v2365, -inf
        %2379 = vmax.xlane.f32.xlu0 %v2378
        %v2380 = vpop.xlane.xlu0 %2379
        %v2381 = vsel %vm1501, %v2368, -inf
        %2382 = vmax.xlane.f32.xlu0 %v2381
        %v2383 = vpop.xlane.xlu0 %2382
        %v2384 = vsel %vm1501, %v2373, -inf
        %2385 = vmax.xlane.f32.xlu0 %v2384
        %v2386 = vpop.xlane.xlu0 %2385
        %v2387 = vsub.f32 %v2365, %v2380
        %v2388 = vsub.f32 %v2368, %v2383
        %v2389 = vsub.f32 %v2373, %v2386
        %v2390 = vmul.f32 %v2387, 1.442695
        %v2391 = vpow.pop %v2390
        %v2392 = vmul.f32 %v2388, 1.442695
        %v2393 = vpow.pop %v2392
        %v2394 = vmul.f32 %v2389, 1.442695
        %v2395 = vpow.pop %v2394
        %v2396 = vsel %vm1501, %v2391, 0.0
        %2397 = vadd.xlane.f32.xlu0 %v2396
        %v2398 = vpop.xlane.xlu0 %2397
        %v2399 = vsel %vm1501, %v2393, 0.0
        %2400 = vadd.xlane.f32.xlu0 %v2399
        %v2401 = vpop.xlane.xlu0 %2400
        %v2402 = vsel %vm1501, %v2395, 0.0
        %2403 = vadd.xlane.f32.xlu0 %v2402
        %v2404 = vpop.xlane.xlu0 %2403
        %v2405 = vrcp.pop %v2398
        %v2406 = vrcp.pop %v2401
        %v2407 = vrcp.pop %v2404
        %v2408 = vmul.f32 %v2391, %v2405
        %v2409 = vmul.f32 %v2393, %v2406
        %v2410 = vmul.f32 %v2395, %v2407
        %v2411 = vpack.c.bf16 %v2409, %v2408
        %v2412 = vpack.c.bf16 %v2410, %v2410
        %v2414 = vsel %vm1501, %v2411, 0
        %v2417 = vsel %vm1501, %v2412, 0
        %v2420 = vsel %vm1543, %v2317, 0
        %2422 = vmatprep.subr.bf16.mxu0 0
        %2423 = vmatpush1.bf16.msra.mxu0 %v2316
        %2424 = vmatprep.subr.bf16.mxu0 0
        %2425 = vmatpush1.bf16.msra.mxu0 %v2420
        %2426 = vmatprep.subr.bf16.mxu0 0
        %2427 = vmatpush1.bf16.msra.mxu0 0
        %2428 = vmatprep.subr.bf16.mxu0 0
        %2429 = vmatpush1.bf16.msra.mxu0 0
        %2430 = vmatprep.subr.bf16.mxu0 0
        %2431 = vmatpush1.bf16.msra.mxu0 0
        %2432 = vmatprep.subr.bf16.mxu0 0
        %2433 = vmatpush1.bf16.msra.mxu0 0
        %2434 = vmatprep.subr.bf16.mxu0 0
        %2435 = vmatpush1.bf16.msra.mxu0 0
        %2436 = vmatprep.subr.bf16.mxu0 0
        %2437 = vmatpush1.bf16.msra.mxu0 0
        %2438 = vmatprep.subr.bf16.mxu0 0
        %2439 = vmatpush1.bf16.msra.mxu0 0
        %2440 = vmatprep.subr.bf16.mxu0 0
        %2441 = vmatpush1.bf16.msra.mxu0 0
        %2442 = vmatprep.subr.bf16.mxu0 0
        %2443 = vmatpush1.bf16.msra.mxu0 0
        %2444 = vmatprep.subr.bf16.mxu0 0
        %2445 = vmatpush1.bf16.msra.mxu0 0
        %2446 = vmatprep.subr.bf16.mxu0 0
        %2447 = vmatpush1.bf16.msra.mxu0 0
        %2448 = vmatprep.subr.bf16.mxu0 0
        %2449 = vmatpush1.bf16.msra.mxu0 0
        %2450 = vmatprep.subr.bf16.mxu0 0
        %2451 = vmatpush1.bf16.msra.mxu0 0
        %2452 = vmatprep.subr.bf16.mxu0 0
        %2453 = vmatpush1.bf16.msra.mxu0 0
        %2454 = vmatprep.mubr.bf16.mxu0 0
        %2455 = vmatmul.mubr.bf16.gmra.mrb[0].mxu0 %v2414
        %v2456 = vpop.f32.mrb[0].mxu0
        %v2457 = vadd.f32 0.0, %v2456
        %v2458 = vpop.f32.mrb[0].mxu0
        %v2459 = vpop.f32.mrb[0].mxu0
        %v2460 = vadd.f32 0.0, %v2459
        %v2461 = vpop.f32.mrb[0].mxu0
        %2462 = vmatprep.mubr.bf16.mxu0 0
        %2463 = vmatmul.mubr.bf16.gmra.mrb[0].mxu0 %v2417
        %v2464 = vpop.f32.mrb[0].mxu0
        %v2465 = vadd.f32 0.0, %v2464
        %v2466 = vpop.f32.mrb[0].mxu0
        %v2467 = vpop.f32.mrb[0].mxu0
        %v2468 = vpop.f32.mrb[0].mxu0
        %2469 = vdwg.mxu0
        %v2470 = vpack.c.bf16 %v2460, %v2457
        %v2471 = vpack.c.bf16 %v2465, %v2465
        %s2472 = scalar_lea.vmem %s1017, 8
        %v2473 = vld [vmem:[%s2472] sm:$0xf]
        %v2475 = vsel %vm1440, %v2470, 0
        %v2478 = vsel %vm1440, %v2471, 0
        %v2481 = vsel %vm1543, %v2473, 0
        %2483 = vmatprep.subr.bf16.mxu0 0
        %2484 = vmatpush1.bf16.msra.mxu0 %v2481
        %2485 = vmatprep.subr.bf16.mxu0 0
        %2486 = vmatpush1.bf16.msra.mxu0 0
        %2487 = vmatprep.subr.bf16.mxu0 0
        %2488 = vmatpush1.bf16.msra.mxu0 0
        %2489 = vmatprep.subr.bf16.mxu0 0
        %2490 = vmatpush1.bf16.msra.mxu0 0
        %2491 = vmatprep.subr.bf16.mxu0 0
        %2492 = vmatpush1.bf16.msra.mxu0 0
        %2493 = vmatprep.subr.bf16.mxu0 0
        %2494 = vmatpush1.bf16.msra.mxu0 0
        %2495 = vmatprep.subr.bf16.mxu0 0
        %2496 = vmatpush1.bf16.msra.mxu0 0
        %2497 = vmatprep.subr.bf16.mxu0 0
        %2498 = vmatpush1.bf16.msra.mxu0 0
        %2499 = vmatprep.subr.bf16.mxu0 0
        %2500 = vmatpush1.bf16.msra.mxu0 0
        %2501 = vmatprep.subr.bf16.mxu0 0
        %2502 = vmatpush1.bf16.msra.mxu0 0
        %2503 = vmatprep.subr.bf16.mxu0 0
        %2504 = vmatpush1.bf16.msra.mxu0 0
        %2505 = vmatprep.subr.bf16.mxu0 0
        %2506 = vmatpush1.bf16.msra.mxu0 0
        %2507 = vmatprep.subr.bf16.mxu0 0
        %2508 = vmatpush1.bf16.msra.mxu0 0
        %2509 = vmatprep.subr.bf16.mxu0 0
        %2510 = vmatpush1.bf16.msra.mxu0 0
        %2511 = vmatprep.subr.bf16.mxu0 0
        %2512 = vmatpush1.bf16.msra.mxu0 0
        %2513 = vmatprep.subr.bf16.mxu0 0
        %2514 = vmatpush1.bf16.msra.mxu0 0
        %2515 = vmatprep.mubr.bf16.mxu0 0
        %2516 = vmatmul.mubr.bf16.gmra.mrb[0].mxu0 %v2475
        %v2517 = vpop.f32.mrb[0].mxu0
        %v2518 = vadd.f32 0.0, %v2517
        %v2519 = vpop.f32.mrb[0].mxu0
        %v2520 = vpop.f32.mrb[0].mxu0
        %v2521 = vadd.f32 0.0, %v2520
        %v2522 = vpop.f32.mrb[0].mxu0
        %2523 = vmatprep.mubr.bf16.mxu0 0
        %2524 = vmatmul.mubr.bf16.gmra.mrb[0].mxu0 %v2478
        %v2525 = vpop.f32.mrb[0].mxu0
        %v2526 = vadd.f32 0.0, %v2525
        %v2527 = vpop.f32.mrb[0].mxu0
        %v2528 = vpop.f32.mrb[0].mxu0
        %v2529 = vpop.f32.mrb[0].mxu0
        %2530 = vdwg.mxu0
        %v2531 = vadd.f32 %v2080, %v2518
        %v2532 = vadd.f32 %v2083, %v2521
        %v2533 = vadd.f32 %v2088, %v2526
        %s2534 = scalar_lea.vmem %s990, 48
        %v2535 = vld [vmem:[%s2534] sm:$0xf]
        %v2536 = vld [vmem:[%s2534 + $0x4] sm:$0xf]
        %v2537 = vld [vmem:[%s2534 + $0x8] sm:$0xf]
        %v2538 = vld [vmem:[%s2534 + $0xc] sm:$0xf]
        %s2539 = scalar_lea.vmem %s994, 3
        %v2540 = vld [vmem:[%s2539] sm:$0x1]
        %v2542 = vlaneseq
        %v2543 = vshrl.u32 %v2542, 7
        %v2544 = vsub.s32 0, %v2543
        %v2545 = vrot.slane %v2540, %v2544
        %v2551 = vunpack.c.l.b16 %v2535
        %v2552 = vunpack.c.l.b16 %v2536
        %v2553 = vunpack.c.l.b16 %v2537
        %v2554 = vunpack.c.l.b16 %v2538
        %v2555 = vpack.c.b16 %v2552, %v2551
        %v2556 = vpack.c.b16 %v2554, %v2553
        %2559 = vmatprep.subr.bf16.mxu0 0
        %2560 = vmatpush1.bf16.msra.mxu0 %v2555
        %2561 = vmatprep.subr.bf16.mxu0 0
        %2562 = vmatpush1.bf16.msra.mxu0 %v2556
        %2563 = vmatprep.subr.bf16.mxu0 0
        %2564 = vmatpush1.bf16.msra.mxu0 0
        %2565 = vmatprep.subr.bf16.mxu0 0
        %2566 = vmatpush1.bf16.msra.mxu0 0
        %2567 = vmatprep.subr.bf16.mxu0 0
        %2568 = vmatpush1.bf16.msra.mxu0 0
        %2569 = vmatprep.subr.bf16.mxu0 0
        %2570 = vmatpush1.bf16.msra.mxu0 0
        %2571 = vmatprep.subr.bf16.mxu0 0
        %2572 = vmatpush1.bf16.msra.mxu0 0
        %2573 = vmatprep.subr.bf16.mxu0 0
        %2574 = vmatpush1.bf16.msra.mxu0 0
        %2575 = vmatprep.subr.bf16.mxu0 0
        %2576 = vmatpush1.bf16.msra.mxu0 0
        %2577 = vmatprep.subr.bf16.mxu0 0
        %2578 = vmatpush1.bf16.msra.mxu0 0
        %2579 = vmatprep.subr.bf16.mxu0 0
        %2580 = vmatpush1.bf16.msra.mxu0 0
        %2581 = vmatprep.subr.bf16.mxu0 0
        %2582 = vmatpush1.bf16.msra.mxu0 0
        %2583 = vmatprep.subr.bf16.mxu0 0
        %2584 = vmatpush1.bf16.msra.mxu0 0
        %2585 = vmatprep.subr.bf16.mxu0 0
        %2586 = vmatpush1.bf16.msra.mxu0 0
        %2587 = vmatprep.subr.bf16.mxu0 0
        %2588 = vmatpush1.bf16.msra.mxu0 0
        %2589 = vmatprep.subr.bf16.mxu0 0
        %2590 = vmatpush1.bf16.msra.mxu0 0
        %2591 = vmatprep.mubr.bf16.mxu0 0
        %2592 = vmatmul.mubr.bf16.gmra.mrb[0].mxu0 %v1239
        %v2593 = vpop.f32.mrb[0].mxu0
        %v2594 = vadd.f32 %v2545, %v2593
        %v2595 = vpop.f32.mrb[0].mxu0
        %v2596 = vpop.f32.mrb[0].mxu0
        %v2597 = vadd.f32 %v2545, %v2596
        %v2598 = vpop.f32.mrb[0].mxu0
        %2599 = vmatprep.mubr.bf16.mxu0 0
        %2600 = vmatmul.mubr.bf16.gmra.mrb[0].mxu0 %v1242
        %v2601 = vpop.f32.mrb[0].mxu0
        %v2602 = vadd.f32 %v2545, %v2601
        %v2603 = vpop.f32.mrb[0].mxu0
        %v2604 = vpop.f32.mrb[0].mxu0
        %v2605 = vpop.f32.mrb[0].mxu0
        %2606 = vdwg.mxu0
        %v2607 = vpack.c.bf16 %v2597, %v2594
        %v2608 = vpack.c.bf16 %v2602, %v2602
        %s2609 = scalar_lea.vmem %s999, 48
        %v2610 = vld [vmem:[%s2609] sm:$0xf]
        %v2611 = vld [vmem:[%s2609 + $0x4] sm:$0xf]
        %v2612 = vld [vmem:[%s2609 + $0x8] sm:$0xf]
        %v2613 = vld [vmem:[%s2609 + $0xc] sm:$0xf]
        %s2614 = scalar_lea.vmem %s1003, 3
        %v2615 = vld [vmem:[%s2614] sm:$0x1]
        %v2617 = vlaneseq
        %v2618 = vshrl.u32 %v2617, 7
        %v2619 = vsub.s32 0, %v2618
        %v2620 = vrot.slane %v2615, %v2619
        %v2626 = vunpack.c.l.b16 %v2610
        %v2627 = vunpack.c.l.b16 %v2611
        %v2628 = vunpack.c.l.b16 %v2612
        %v2629 = vunpack.c.l.b16 %v2613
        %v2630 = vpack.c.b16 %v2627, %v2626
        %v2631 = vpack.c.b16 %v2629, %v2628
        %2634 = vmatprep.subr.bf16.mxu0 0
        %2635 = vmatpush1.bf16.msra.mxu0 %v2630
        %2636 = vmatprep.subr.bf16.mxu0 0
        %2637 = vmatpush1.bf16.msra.mxu0 %v2631
        %2638 = vmatprep.subr.bf16.mxu0 0
        %2639 = vmatpush1.bf16.msra.mxu0 0
        %2640 = vmatprep.subr.bf16.mxu0 0
        %2641 = vmatpush1.bf16.msra.mxu0 0
        %2642 = vmatprep.subr.bf16.mxu0 0
        %2643 = vmatpush1.bf16.msra.mxu0 0
        %2644 = vmatprep.subr.bf16.mxu0 0
        %2645 = vmatpush1.bf16.msra.mxu0 0
        %2646 = vmatprep.subr.bf16.mxu0 0
        %2647 = vmatpush1.bf16.msra.mxu0 0
        %2648 = vmatprep.subr.bf16.mxu0 0
        %2649 = vmatpush1.bf16.msra.mxu0 0
        %2650 = vmatprep.subr.bf16.mxu0 0
        %2651 = vmatpush1.bf16.msra.mxu0 0
        %2652 = vmatprep.subr.bf16.mxu0 0
        %2653 = vmatpush1.bf16.msra.mxu0 0
        %2654 = vmatprep.subr.bf16.mxu0 0
        %2655 = vmatpush1.bf16.msra.mxu0 0
        %2656 = vmatprep.subr.bf16.mxu0 0
        %2657 = vmatpush1.bf16.msra.mxu0 0
        %2658 = vmatprep.subr.bf16.mxu0 0
        %2659 = vmatpush1.bf16.msra.mxu0 0
        %2660 = vmatprep.subr.bf16.mxu0 0
        %2661 = vmatpush1.bf16.msra.mxu0 0
        %2662 = vmatprep.subr.bf16.mxu0 0
        %2663 = vmatpush1.bf16.msra.mxu0 0
        %2664 = vmatprep.subr.bf16.mxu0 0
        %2665 = vmatpush1.bf16.msra.mxu0 0
        %2666 = vmatprep.mubr.bf16.mxu0 0
        %2667 = vmatmul.mubr.bf16.gmra.mrb[0].mxu0 %v1239
        %v2668 = vpop.f32.mrb[0].mxu0
        %v2669 = vadd.f32 %v2620, %v2668
        %v2670 = vpop.f32.mrb[0].mxu0
        %v2671 = vpop.f32.mrb[0].mxu0
        %v2672 = vadd.f32 %v2620, %v2671
        %v2673 = vpop.f32.mrb[0].mxu0
        %2674 = vmatprep.mubr.bf16.mxu0 0
        %2675 = vmatmul.mubr.bf16.gmra.mrb[0].mxu0 %v1242
        %v2676 = vpop.f32.mrb[0].mxu0
        %v2677 = vadd.f32 %v2620, %v2676
        %v2678 = vpop.f32.mrb[0].mxu0
        %v2679 = vpop.f32.mrb[0].mxu0
        %v2680 = vpop.f32.mrb[0].mxu0
        %2681 = vdwg.mxu0
        %v2682 = vpack.c.bf16 %v2672, %v2669
        %v2683 = vpack.c.bf16 %v2677, %v2677
        %s2684 = scalar_lea.vmem %s1008, 48
        %v2685 = vld [vmem:[%s2684] sm:$0xf]
        %v2686 = vld [vmem:[%s2684 + $0x4] sm:$0xf]
        %v2687 = vld [vmem:[%s2684 + $0x8] sm:$0xf]
        %v2688 = vld [vmem:[%s2684 + $0xc] sm:$0xf]
        %s2689 = scalar_lea.vmem %s1012, 3
        %v2690 = vld [vmem:[%s2689] sm:$0x1]
        %v2692 = vlaneseq
        %v2693 = vshrl.u32 %v2692, 7
        %v2694 = vsub.s32 0, %v2693
        %v2695 = vrot.slane %v2690, %v2694
        %v2701 = vunpack.c.l.b16 %v2685
        %v2702 = vunpack.c.l.b16 %v2686
        %v2703 = vunpack.c.l.b16 %v2687
        %v2704 = vunpack.c.l.b16 %v2688
        %v2705 = vpack.c.b16 %v2702, %v2701
        %v2706 = vpack.c.b16 %v2704, %v2703
        %2709 = vmatprep.subr.bf16.mxu0 0
        %2710 = vmatpush1.bf16.msra.mxu0 %v2705
        %2711 = vmatprep.subr.bf16.mxu0 0
        %2712 = vmatpush1.bf16.msra.mxu0 %v2706
        %2713 = vmatprep.subr.bf16.mxu0 0
        %2714 = vmatpush1.bf16.msra.mxu0 0
        %2715 = vmatprep.subr.bf16.mxu0 0
        %2716 = vmatpush1.bf16.msra.mxu0 0
        %2717 = vmatprep.subr.bf16.mxu0 0
        %2718 = vmatpush1.bf16.msra.mxu0 0
        %2719 = vmatprep.subr.bf16.mxu0 0
        %2720 = vmatpush1.bf16.msra.mxu0 0
        %2721 = vmatprep.subr.bf16.mxu0 0
        %2722 = vmatpush1.bf16.msra.mxu0 0
        %2723 = vmatprep.subr.bf16.mxu0 0
        %2724 = vmatpush1.bf16.msra.mxu0 0
        %2725 = vmatprep.subr.bf16.mxu0 0
        %2726 = vmatpush1.bf16.msra.mxu0 0
        %2727 = vmatprep.subr.bf16.mxu0 0
        %2728 = vmatpush1.bf16.msra.mxu0 0
        %2729 = vmatprep.subr.bf16.mxu0 0
        %2730 = vmatpush1.bf16.msra.mxu0 0
        %2731 = vmatprep.subr.bf16.mxu0 0
        %2732 = vmatpush1.bf16.msra.mxu0 0
        %2733 = vmatprep.subr.bf16.mxu0 0
        %2734 = vmatpush1.bf16.msra.mxu0 0
        %2735 = vmatprep.subr.bf16.mxu0 0
        %2736 = vmatpush1.bf16.msra.mxu0 0
        %2737 = vmatprep.subr.bf16.mxu0 0
        %2738 = vmatpush1.bf16.msra.mxu0 0
        %2739 = vmatprep.subr.bf16.mxu0 0
        %2740 = vmatpush1.bf16.msra.mxu0 0
        %2741 = vmatprep.mubr.bf16.mxu0 0
        %2742 = vmatmul.mubr.bf16.gmra.mrb[0].mxu0 %v1239
        %v2743 = vpop.f32.mrb[0].mxu0
        %v2744 = vadd.f32 %v2695, %v2743
        %v2745 = vpop.f32.mrb[0].mxu0
        %v2746 = vpop.f32.mrb[0].mxu0
        %v2747 = vadd.f32 %v2695, %v2746
        %v2748 = vpop.f32.mrb[0].mxu0
        %2749 = vmatprep.mubr.bf16.mxu0 0
        %2750 = vmatmul.mubr.bf16.gmra.mrb[0].mxu0 %v1242
        %v2751 = vpop.f32.mrb[0].mxu0
        %v2752 = vadd.f32 %v2695, %v2751
        %v2753 = vpop.f32.mrb[0].mxu0
        %v2754 = vpop.f32.mrb[0].mxu0
        %v2755 = vpop.f32.mrb[0].mxu0
        %2756 = vdwg.mxu0
        %v2757 = vpack.c.bf16 %v2747, %v2744
        %v2758 = vpack.c.bf16 %v2752, %v2752
        %v2760 = vsel %vm1440, %v2607, 0
        %v2763 = vsel %vm1440, %v2608, 0
        %v2766 = vsel %vm1440, %v2682, 0
        %v2769 = vsel %vm1440, %v2683, 0
        %2771 = vmatprep.subr.bf16.mxu0 0
        %2772 = vmatpush1.bf16.xpose.msra.mxu0 %v2766
        %2773 = vmatprep.subr.bf16.mxu0 0
        %2774 = vmatpush1.bf16.xpose.msra.mxu0 %v2769
        %2775 = vmatprep.subr.bf16.mxu0 0
        %2776 = vmatpush1.bf16.xpose.msra.mxu0 0
        %2777 = vmatprep.subr.bf16.mxu0 0
        %2778 = vmatpush1.bf16.xpose.msra.mxu0 0
        %2779 = vmatprep.subr.bf16.mxu0 0
        %2780 = vmatpush1.bf16.xpose.msra.mxu0 0
        %2781 = vmatprep.subr.bf16.mxu0 0
        %2782 = vmatpush1.bf16.xpose.msra.mxu0 0
        %2783 = vmatprep.subr.bf16.mxu0 0
        %2784 = vmatpush1.bf16.xpose.msra.mxu0 0
        %2785 = vmatprep.subr.bf16.mxu0 0
        %2786 = vmatpush1.bf16.xpose.msra.mxu0 0
        %2787 = vmatprep.subr.bf16.mxu0 0
        %2788 = vmatpush1.bf16.xpose.msra.mxu0 0
        %2789 = vmatprep.subr.bf16.mxu0 0
        %2790 = vmatpush1.bf16.xpose.msra.mxu0 0
        %2791 = vmatprep.subr.bf16.mxu0 0
        %2792 = vmatpush1.bf16.xpose.msra.mxu0 0
        %2793 = vmatprep.subr.bf16.mxu0 0
        %2794 = vmatpush1.bf16.xpose.msra.mxu0 0
        %2795 = vmatprep.subr.bf16.mxu0 0
        %2796 = vmatpush1.bf16.xpose.msra.mxu0 0
        %2797 = vmatprep.subr.bf16.mxu0 0
        %2798 = vmatpush1.bf16.xpose.msra.mxu0 0
        %2799 = vmatprep.subr.bf16.mxu0 0
        %2800 = vmatpush1.bf16.xpose.msra.mxu0 0
        %2801 = vmatprep.subr.bf16.mxu0 0
        %2802 = vmatpush1.bf16.xpose.msra.mxu0 0
        %2803 = vmatprep.mubr.bf16.mxu0 0
        %2804 = vmatmul.mubr.bf16.gmra.mrb[0].mxu0 %v2760
        %v2805 = vpop.f32.mrb[0].mxu0
        %v2806 = vadd.f32 %v1214, %v2805
        %v2807 = vpop.f32.mrb[0].mxu0
        %v2808 = vpop.f32.mrb[0].mxu0
        %v2809 = vadd.f32 %v1214, %v2808
        %v2810 = vpop.f32.mrb[0].mxu0
        %2811 = vmatprep.mubr.bf16.mxu0 0
        %2812 = vmatmul.mubr.bf16.gmra.mrb[0].mxu0 %v2763
        %v2813 = vpop.f32.mrb[0].mxu0
        %v2814 = vadd.f32 %v1214, %v2813
        %v2815 = vpop.f32.mrb[0].mxu0
        %v2816 = vpop.f32.mrb[0].mxu0
        %v2817 = vpop.f32.mrb[0].mxu0
        %2818 = vdwg.mxu0
        %v2819 = vsel %vm1501, %v2806, -inf
        %2820 = vmax.xlane.f32.xlu0 %v2819
        %v2821 = vpop.xlane.xlu0 %2820
        %v2822 = vsel %vm1501, %v2809, -inf
        %2823 = vmax.xlane.f32.xlu0 %v2822
        %v2824 = vpop.xlane.xlu0 %2823
        %v2825 = vsel %vm1501, %v2814, -inf
        %2826 = vmax.xlane.f32.xlu0 %v2825
        %v2827 = vpop.xlane.xlu0 %2826
        %v2828 = vsub.f32 %v2806, %v2821
        %v2829 = vsub.f32 %v2809, %v2824
        %v2830 = vsub.f32 %v2814, %v2827
        %v2831 = vmul.f32 %v2828, 1.442695
        %v2832 = vpow.pop %v2831
        %v2833 = vmul.f32 %v2829, 1.442695
        %v2834 = vpow.pop %v2833
        %v2835 = vmul.f32 %v2830, 1.442695
        %v2836 = vpow.pop %v2835
        %v2837 = vsel %vm1501, %v2832, 0.0
        %2838 = vadd.xlane.f32.xlu0 %v2837
        %v2839 = vpop.xlane.xlu0 %2838
        %v2840 = vsel %vm1501, %v2834, 0.0
        %2841 = vadd.xlane.f32.xlu0 %v2840
        %v2842 = vpop.xlane.xlu0 %2841
        %v2843 = vsel %vm1501, %v2836, 0.0
        %2844 = vadd.xlane.f32.xlu0 %v2843
        %v2845 = vpop.xlane.xlu0 %2844
        %v2846 = vrcp.pop %v2839
        %v2847 = vrcp.pop %v2842
        %v2848 = vrcp.pop %v2845
        %v2849 = vmul.f32 %v2832, %v2846
        %v2850 = vmul.f32 %v2834, %v2847
        %v2851 = vmul.f32 %v2836, %v2848
        %v2852 = vpack.c.bf16 %v2850, %v2849
        %v2853 = vpack.c.bf16 %v2851, %v2851
        %v2855 = vsel %vm1501, %v2852, 0
        %v2858 = vsel %vm1501, %v2853, 0
        %v2861 = vsel %vm1543, %v2758, 0
        %2863 = vmatprep.subr.bf16.mxu0 0
        %2864 = vmatpush1.bf16.msra.mxu0 %v2757
        %2865 = vmatprep.subr.bf16.mxu0 0
        %2866 = vmatpush1.bf16.msra.mxu0 %v2861
        %2867 = vmatprep.subr.bf16.mxu0 0
        %2868 = vmatpush1.bf16.msra.mxu0 0
        %2869 = vmatprep.subr.bf16.mxu0 0
        %2870 = vmatpush1.bf16.msra.mxu0 0
        %2871 = vmatprep.subr.bf16.mxu0 0
        %2872 = vmatpush1.bf16.msra.mxu0 0
        %2873 = vmatprep.subr.bf16.mxu0 0
        %2874 = vmatpush1.bf16.msra.mxu0 0
        %2875 = vmatprep.subr.bf16.mxu0 0
        %2876 = vmatpush1.bf16.msra.mxu0 0
        %2877 = vmatprep.subr.bf16.mxu0 0
        %2878 = vmatpush1.bf16.msra.mxu0 0
        %2879 = vmatprep.subr.bf16.mxu0 0
        %2880 = vmatpush1.bf16.msra.mxu0 0
        %2881 = vmatprep.subr.bf16.mxu0 0
        %2882 = vmatpush1.bf16.msra.mxu0 0
        %2883 = vmatprep.subr.bf16.mxu0 0
        %2884 = vmatpush1.bf16.msra.mxu0 0
        %2885 = vmatprep.subr.bf16.mxu0 0
        %2886 = vmatpush1.bf16.msra.mxu0 0
        %2887 = vmatprep.subr.bf16.mxu0 0
        %2888 = vmatpush1.bf16.msra.mxu0 0
        %2889 = vmatprep.subr.bf16.mxu0 0
        %2890 = vmatpush1.bf16.msra.mxu0 0
        %2891 = vmatprep.subr.bf16.mxu0 0
        %2892 = vmatpush1.bf16.msra.mxu0 0
        %2893 = vmatprep.subr.bf16.mxu0 0
        %2894 = vmatpush1.bf16.msra.mxu0 0
        %2895 = vmatprep.mubr.bf16.mxu0 0
        %2896 = vmatmul.mubr.bf16.gmra.mrb[0].mxu0 %v2855
        %v2897 = vpop.f32.mrb[0].mxu0
        %v2898 = vadd.f32 0.0, %v2897
        %v2899 = vpop.f32.mrb[0].mxu0
        %v2900 = vpop.f32.mrb[0].mxu0
        %v2901 = vadd.f32 0.0, %v2900
        %v2902 = vpop.f32.mrb[0].mxu0
        %2903 = vmatprep.mubr.bf16.mxu0 0
        %2904 = vmatmul.mubr.bf16.gmra.mrb[0].mxu0 %v2858
        %v2905 = vpop.f32.mrb[0].mxu0
        %v2906 = vadd.f32 0.0, %v2905
        %v2907 = vpop.f32.mrb[0].mxu0
        %v2908 = vpop.f32.mrb[0].mxu0
        %v2909 = vpop.f32.mrb[0].mxu0
        %2910 = vdwg.mxu0
        %v2911 = vpack.c.bf16 %v2901, %v2898
        %v2912 = vpack.c.bf16 %v2906, %v2906
        %s2913 = scalar_lea.vmem %s1017, 12
        %v2914 = vld [vmem:[%s2913] sm:$0xf]
        %v2916 = vsel %vm1440, %v2911, 0
        %v2919 = vsel %vm1440, %v2912, 0
        %v2922 = vsel %vm1543, %v2914, 0
        %2924 = vmatprep.subr.bf16.mxu0 0
        %2925 = vmatpush1.bf16.msra.mxu0 %v2922
        %2926 = vmatprep.subr.bf16.mxu0 0
        %2927 = vmatpush1.bf16.msra.mxu0 0
        %2928 = vmatprep.subr.bf16.mxu0 0
        %2929 = vmatpush1.bf16.msra.mxu0 0
        %2930 = vmatprep.subr.bf16.mxu0 0
        %2931 = vmatpush1.bf16.msra.mxu0 0
        %2932 = vmatprep.subr.bf16.mxu0 0
        %2933 = vmatpush1.bf16.msra.mxu0 0
        %2934 = vmatprep.subr.bf16.mxu0 0
        %2935 = vmatpush1.bf16.msra.mxu0 0
        %2936 = vmatprep.subr.bf16.mxu0 0
        %2937 = vmatpush1.bf16.msra.mxu0 0
        %2938 = vmatprep.subr.bf16.mxu0 0
        %2939 = vmatpush1.bf16.msra.mxu0 0
        %2940 = vmatprep.subr.bf16.mxu0 0
        %2941 = vmatpush1.bf16.msra.mxu0 0
        %2942 = vmatprep.subr.bf16.mxu0 0
        %2943 = vmatpush1.bf16.msra.mxu0 0
        %2944 = vmatprep.subr.bf16.mxu0 0
        %2945 = vmatpush1.bf16.msra.mxu0 0
        %2946 = vmatprep.subr.bf16.mxu0 0
        %2947 = vmatpush1.bf16.msra.mxu0 0
        %2948 = vmatprep.subr.bf16.mxu0 0
        %2949 = vmatpush1.bf16.msra.mxu0 0
        %2950 = vmatprep.subr.bf16.mxu0 0
        %2951 = vmatpush1.bf16.msra.mxu0 0
        %2952 = vmatprep.subr.bf16.mxu0 0
        %2953 = vmatpush1.bf16.msra.mxu0 0
        %2954 = vmatprep.subr.bf16.mxu0 0
        %2955 = vmatpush1.bf16.msra.mxu0 0
        %2956 = vmatprep.mubr.bf16.mxu0 0
        %2957 = vmatmul.mubr.bf16.gmra.mrb[0].mxu0 %v2916
        %v2958 = vpop.f32.mrb[0].mxu0
        %v2959 = vadd.f32 0.0, %v2958
        %v2960 = vpop.f32.mrb[0].mxu0
        %v2961 = vpop.f32.mrb[0].mxu0
        %v2962 = vadd.f32 0.0, %v2961
        %v2963 = vpop.f32.mrb[0].mxu0
        %2964 = vmatprep.mubr.bf16.mxu0 0
        %2965 = vmatmul.mubr.bf16.gmra.mrb[0].mxu0 %v2919
        %v2966 = vpop.f32.mrb[0].mxu0
        %v2967 = vadd.f32 0.0, %v2966
        %v2968 = vpop.f32.mrb[0].mxu0
        %v2969 = vpop.f32.mrb[0].mxu0
        %v2970 = vpop.f32.mrb[0].mxu0
        %2971 = vdwg.mxu0
        %v2972 = vadd.f32 %v2531, %v2959
        %v2973 = vadd.f32 %v2532, %v2962
        %v2974 = vadd.f32 %v2533, %v2967
        %v2975 = vadd.f32 %v1145, %v2972
        %v2976 = vadd.f32 %v1146, %v2973
        %v2977 = vadd.f32 %v1147, %v2974
        %v2978 = vld [vmem:[%s1020] sm:$0x1]
        %v2980 = vlaneseq
        %v2981 = vshrl.u32 %v2980, 7
        %v2982 = vsub.s32 0, %v2981
        %v2983 = vrot.slane %v2978, %v2982
        %v2985 = vadd.f32 %v2975, %v2983
        %v2986 = vadd.f32 %v2976, %v2983
        %v2987 = vadd.f32 %v2977, %v2983
        %v2988 = vld [vmem:[%s1023] sm:$0x1]
        %v2989 = vld [vmem:[%s1026] sm:$0x1]
        %v2990 = vsel %vm1150, %v2985, 0.0
        %2991 = vadd.xlane.f32.xlu0 %v2990
        %v2992 = vpop.xlane.xlu0 %2991
        %v2993 = vsel %vm1150, %v2986, 0.0
        %2994 = vadd.xlane.f32.xlu0 %v2993
        %v2995 = vpop.xlane.xlu0 %2994
        %v2996 = vsel %vm1150, %v2987, 0.0
        %2997 = vadd.xlane.f32.xlu0 %v2996
        %v2998 = vpop.xlane.xlu0 %2997
        %v2999 = vmul.f32 %v2992, %v1160
        %v3000 = vmul.f32 %v2995, %v1160
        %v3001 = vmul.f32 %v2998, %v1160
        %v3002 = vsub.f32 %v2985, %v2999
        %v3003 = vsub.f32 %v2986, %v3000
        %v3004 = vsub.f32 %v2987, %v3001
        %v3005 = vmul.f32 %v3002, %v3002
        %v3006 = vmul.f32 %v3003, %v3003
        %v3007 = vmul.f32 %v3004, %v3004
        %v3008 = vsel %vm1150, %v3005, 0.0
        %3009 = vadd.xlane.f32.xlu0 %v3008
        %v3010 = vpop.xlane.xlu0 %3009
        %v3011 = vsel %vm1150, %v3006, 0.0
        %3012 = vadd.xlane.f32.xlu0 %v3011
        %v3013 = vpop.xlane.xlu0 %3012
        %v3014 = vsel %vm1150, %v3007, 0.0
        %3015 = vadd.xlane.f32.xlu0 %v3014
        %v3016 = vpop.xlane.xlu0 %3015
        %v3017 = vmul.f32 %v3010, %v1160
        %v3018 = vmul.f32 %v3013, %v1160
        %v3019 = vmul.f32 %v3016, %v1160
        %v3020 = vadd.f32 %v3017, 1e-06
        %v3021 = vadd.f32 %v3018, 1e-06
        %v3022 = vadd.f32 %v3019, 1e-06
        %v3023 = vrsqrt.pop %v3020
        %v3024 = vrsqrt.pop %v3021
        %v3025 = vrsqrt.pop %v3022
        %v3026 = vmul.f32 %v3002, %v3023
        %v3027 = vmul.f32 %v3003, %v3024
        %v3028 = vmul.f32 %v3004, %v3025
        %v3030 = vlaneseq
        %v3031 = vshrl.u32 %v3030, 7
        %v3032 = vsub.s32 0, %v3031
        %v3033 = vrot.slane %v2988, %v3032
        %v3035 = vmul.f32 %v3026, %v3033
        %v3036 = vmul.f32 %v3027, %v3033
        %v3037 = vmul.f32 %v3028, %v3033
        %v3039 = vlaneseq
        %v3040 = vshrl.u32 %v3039, 7
        %v3041 = vsub.s32 0, %v3040
        %v3042 = vrot.slane %v2989, %v3041
        %v3044 = vadd.f32 %v3035, %v3042
        %v3045 = vadd.f32 %v3036, %v3042
        %v3046 = vadd.f32 %v3037, %v3042
        %v3047 = vpack.c.bf16 %v3045, %v3044
        %v3048 = vpack.c.bf16 %v3046, %v3046
        %v3049 = vld [vmem:[%s1031] sm:$0xf]
        %v3050 = vld [vmem:[%s1031 + $0x4] sm:$0xf]
        %v3051 = vld [vmem:[%s1031 + $0x8] sm:$0xf]
        %v3052 = vld [vmem:[%s1031 + $0xc] sm:$0xf]
        %v3053 = vld [vmem:[%s1034] sm:$0x1]
        %v3055 = vlaneseq
        %v3056 = vshrl.u32 %v3055, 7
        %v3057 = vsub.s32 0, %v3056
        %v3058 = vrot.slane %v3053, %v3057
        %v3064 = vunpack.c.l.b16 %v3049
        %v3065 = vunpack.c.l.b16 %v3050
        %v3066 = vunpack.c.l.b16 %v3051
        %v3067 = vunpack.c.l.b16 %v3052
        %v3068 = vpack.c.b16 %v3065, %v3064
        %v3069 = vpack.c.b16 %v3067, %v3066
        %v3073 = vsel %vm1150, %v3047, 0
        %v3076 = vsel %vm1150, %v3048, 0
        %3078 = vmatprep.subr.bf16.mxu0 0
        %3079 = vmatpush1.bf16.msra.mxu0 %v3068
        %3080 = vmatprep.subr.bf16.mxu0 0
        %3081 = vmatpush1.bf16.msra.mxu0 %v3069
        %3082 = vmatprep.subr.bf16.mxu0 0
        %3083 = vmatpush1.bf16.msra.mxu0 0
        %3084 = vmatprep.subr.bf16.mxu0 0
        %3085 = vmatpush1.bf16.msra.mxu0 0
        %3086 = vmatprep.subr.bf16.mxu0 0
        %3087 = vmatpush1.bf16.msra.mxu0 0
        %3088 = vmatprep.subr.bf16.mxu0 0
        %3089 = vmatpush1.bf16.msra.mxu0 0
        %3090 = vmatprep.subr.bf16.mxu0 0
        %3091 = vmatpush1.bf16.msra.mxu0 0
        %3092 = vmatprep.subr.bf16.mxu0 0
        %3093 = vmatpush1.bf16.msra.mxu0 0
        %3094 = vmatprep.subr.bf16.mxu0 0
        %3095 = vmatpush1.bf16.msra.mxu0 0
        %3096 = vmatprep.subr.bf16.mxu0 0
        %3097 = vmatpush1.bf16.msra.mxu0 0
        %3098 = vmatprep.subr.bf16.mxu0 0
        %3099 = vmatpush1.bf16.msra.mxu0 0
        %3100 = vmatprep.subr.bf16.mxu0 0
        %3101 = vmatpush1.bf16.msra.mxu0 0
        %3102 = vmatprep.subr.bf16.mxu0 0
        %3103 = vmatpush1.bf16.msra.mxu0 0
        %3104 = vmatprep.subr.bf16.mxu0 0
        %3105 = vmatpush1.bf16.msra.mxu0 0
        %3106 = vmatprep.subr.bf16.mxu0 0
        %3107 = vmatpush1.bf16.msra.mxu0 0
        %3108 = vmatprep.subr.bf16.mxu0 0
        %3109 = vmatpush1.bf16.msra.mxu0 0
        %3110 = vmatprep.mubr.bf16.mxu0 0
        %3111 = vmatmul.mubr.bf16.gmra.mrb[0].mxu0 %v3073
        %v3112 = vpop.f32.mrb[0].mxu0
        %v3113 = vadd.f32 %v3058, %v3112
        %v3114 = vpop.f32.mrb[0].mxu0
        %v3115 = vpop.f32.mrb[0].mxu0
        %v3116 = vadd.f32 %v3058, %v3115
        %v3117 = vpop.f32.mrb[0].mxu0
        %3118 = vmatprep.mubr.bf16.mxu0 0
        %3119 = vmatmul.mubr.bf16.gmra.mrb[0].mxu0 %v3076
        %v3120 = vpop.f32.mrb[0].mxu0
        %v3121 = vadd.f32 %v3058, %v3120
        %v3122 = vpop.f32.mrb[0].mxu0
        %v3123 = vpop.f32.mrb[0].mxu0
        %v3124 = vpop.f32.mrb[0].mxu0
        %3125 = vdwg.mxu0
        %v3126 = vmul.f32 %v3113, 0.5
        %v3127 = vmul.f32 %v3116, 0.5
        %v3128 = vmul.f32 %v3121, 0.5
        %v3129 = vmul.f32 %v3113, 0.044715
        %v3130 = vmul.f32 %v3116, 0.044715
        %v3131 = vmul.f32 %v3121, 0.044715
        %v3132 = vmul.f32 %v3129, %v3113
        %v3133 = vmul.f32 %v3130, %v3116
        %v3134 = vmul.f32 %v3131, %v3121
        %v3135 = vmul.f32 %v3132, %v3113
        %v3136 = vmul.f32 %v3133, %v3116
        %v3137 = vmul.f32 %v3134, %v3121
        %v3138 = vadd.f32 %v3113, %v3135
        %v3139 = vadd.f32 %v3116, %v3136
        %v3140 = vadd.f32 %v3121, %v3137
        %v3141 = vmul.f32 %v3138, 0.7978846
        %v3142 = vmul.f32 %v3139, 0.7978846
        %v3143 = vmul.f32 %v3140, 0.7978846
        %v3144 = vtanh.pop %v3141
        %v3145 = vtanh.pop %v3142
        %v3146 = vtanh.pop %v3143
        %v3147 = vadd.f32 %v3144, 1.0
        %v3148 = vadd.f32 %v3145, 1.0
        %v3149 = vadd.f32 %v3146, 1.0
        %v3150 = vmul.f32 %v3126, %v3147
        %v3151 = vmul.f32 %v3127, %v3148
        %v3152 = vmul.f32 %v3128, %v3149
        %v3153 = vpack.c.bf16 %v3151, %v3150
        %v3154 = vpack.c.bf16 %v3152, %v3152
        %v3155 = vld [vmem:[%s1039] sm:$0xf]
        %v3156 = vld [vmem:[%s1039 + $0x4] sm:$0xf]
        %v3157 = vld [vmem:[%s1039 + $0x8] sm:$0xf]
        %v3158 = vld [vmem:[%s1039 + $0xc] sm:$0xf]
        %v3159 = vld [vmem:[%s1039 + $0x10] sm:$0xf]
        %v3160 = vld [vmem:[%s1039 + $0x14] sm:$0xf]
        %v3161 = vld [vmem:[%s1039 + $0x18] sm:$0xf]
        %v3162 = vld [vmem:[%s1039 + $0x1c] sm:$0xf]
        %v3163 = vld [vmem:[%s1039 + $0x20] sm:$0xf]
        %v3164 = vld [vmem:[%s1039 + $0x24] sm:$0xf]
        %v3165 = vld [vmem:[%s1039 + $0x28] sm:$0xf]
        %v3166 = vld [vmem:[%s1039 + $0x2c] sm:$0xf]
        %v3167 = vld [vmem:[%s1039 + $0x30] sm:$0xf]
        %v3168 = vld [vmem:[%s1039 + $0x34] sm:$0xf]
        %v3169 = vld [vmem:[%s1039 + $0x38] sm:$0xf]
        %v3170 = vld [vmem:[%s1039 + $0x3c] sm:$0xf]
        %v3171 = vld [vmem:[%s1042] sm:$0x1]
        %v3173 = vlaneseq
        %v3174 = vshrl.u32 %v3173, 7
        %v3175 = vsub.s32 0, %v3174
        %v3176 = vrot.slane %v3171, %v3175
        %v3194 = vunpack.c.l.b16 %v3155
        %v3195 = vunpack.c.l.b16 %v3156
        %v3196 = vunpack.c.l.b16 %v3157
        %v3197 = vunpack.c.l.b16 %v3158
        %v3198 = vunpack.c.l.b16 %v3159
        %v3199 = vunpack.c.l.b16 %v3160
        %v3200 = vunpack.c.l.b16 %v3161
        %v3201 = vunpack.c.l.b16 %v3162
        %v3202 = vunpack.c.l.b16 %v3163
        %v3203 = vunpack.c.l.b16 %v3164
        %v3204 = vunpack.c.l.b16 %v3165
        %v3205 = vunpack.c.l.b16 %v3166
        %v3206 = vunpack.c.l.b16 %v3167
        %v3207 = vunpack.c.l.b16 %v3168
        %v3208 = vunpack.c.l.b16 %v3169
        %v3209 = vunpack.c.l.b16 %v3170
        %v3210 = vpack.c.b16 %v3195, %v3194
        %v3211 = vpack.c.b16 %v3197, %v3196
        %v3212 = vpack.c.b16 %v3199, %v3198
        %v3213 = vpack.c.b16 %v3201, %v3200
        %v3214 = vpack.c.b16 %v3203, %v3202
        %v3215 = vpack.c.b16 %v3205, %v3204
        %v3216 = vpack.c.b16 %v3207, %v3206
        %v3217 = vpack.c.b16 %v3209, %v3208
        %3226 = vmatprep.subr.bf16.mxu0 0
        %3227 = vmatpush1.bf16.msra.mxu0 %v3210
        %3228 = vmatprep.subr.bf16.mxu0 0
        %3229 = vmatpush1.bf16.msra.mxu0 %v3211
        %3230 = vmatprep.subr.bf16.mxu0 0
        %3231 = vmatpush1.bf16.msra.mxu0 %v3212
        %3232 = vmatprep.subr.bf16.mxu0 0
        %3233 = vmatpush1.bf16.msra.mxu0 %v3213
        %3234 = vmatprep.subr.bf16.mxu0 0
        %3235 = vmatpush1.bf16.msra.mxu0 %v3214
        %3236 = vmatprep.subr.bf16.mxu0 0
        %3237 = vmatpush1.bf16.msra.mxu0 %v3215
        %3238 = vmatprep.subr.bf16.mxu0 0
        %3239 = vmatpush1.bf16.msra.mxu0 %v3216
        %3240 = vmatprep.subr.bf16.mxu0 0
        %3241 = vmatpush1.bf16.msra.mxu0 %v3217
        %3242 = vmatprep.subr.bf16.mxu0 0
        %3243 = vmatpush1.bf16.msra.mxu0 0
        %3244 = vmatprep.subr.bf16.mxu0 0
        %3245 = vmatpush1.bf16.msra.mxu0 0
        %3246 = vmatprep.subr.bf16.mxu0 0
        %3247 = vmatpush1.bf16.msra.mxu0 0
        %3248 = vmatprep.subr.bf16.mxu0 0
        %3249 = vmatpush1.bf16.msra.mxu0 0
        %3250 = vmatprep.subr.bf16.mxu0 0
        %3251 = vmatpush1.bf16.msra.mxu0 0
        %3252 = vmatprep.subr.bf16.mxu0 0
        %3253 = vmatpush1.bf16.msra.mxu0 0
        %3254 = vmatprep.subr.bf16.mxu0 0
        %3255 = vmatpush1.bf16.msra.mxu0 0
        %3256 = vmatprep.subr.bf16.mxu0 0
        %3257 = vmatpush1.bf16.msra.mxu0 0
        %3258 = vmatprep.mubr.bf16.mxu0 0
        %3259 = vmatmul.mubr.bf16.gmra.mrb[0].mxu0 %v3153
        %v3260 = vpop.f32.mrb[0].mxu0
        %v3261 = vadd.f32 %v3176, %v3260
        %v3262 = vpop.f32.mrb[0].mxu0
        %v3263 = vpop.f32.mrb[0].mxu0
        %v3264 = vadd.f32 %v3176, %v3263
        %v3265 = vpop.f32.mrb[0].mxu0
        %3266 = vmatprep.mubr.bf16.mxu0 0
        %3267 = vmatmul.mubr.bf16.gmra.mrb[0].mxu0 %v3154
        %v3268 = vpop.f32.mrb[0].mxu0
        %v3269 = vadd.f32 %v3176, %v3268
        %v3270 = vpop.f32.mrb[0].mxu0
        %v3271 = vpop.f32.mrb[0].mxu0
        %v3272 = vpop.f32.mrb[0].mxu0
        %3273 = vdwg.mxu0
        %v3274 = vadd.f32 %v2985, %v3261
        %v3275 = vadd.f32 %v2986, %v3264
        %v3276 = vadd.f32 %v2987, %v3269
        %3277 = vst.msk [vmem:[#allocation2] sm:$0xff] %vm1150, %v3274
        %3278 = vst.msk [vmem:[#allocation2 + $0x8] sm:$0xff] %vm1150, %v3275
        %3279 = vst.msk [vmem:[#allocation2 + $0x10] sm:$0xff] %vm1150, %v3276
        %p3280 = scmp.eq.s32.totalorder %s44, 1
        // Predicated region
        $region125: #{vit_forward.1} parent=119 // pred_check
          %p3281 = pneg %p3280
        $region126: #{vit_forward.1} parent=119 // pred_check_branch
          %3283 = sbr.rel (%p3281) target = $region128
        $region127: #{vit_forward.1} parent=119 // pred_region
          %v3284 = vld [vmem:[%s21] sm:$0x1]
          %v3285 = vld [vmem:[%s22] sm:$0x1]
          %vm3286 = vcmask 253952
          %v3287 = vsel %vm3286, %v3274, 0.0
          %3288 = vadd.xlane.f32.xlu0 %v3287
          %v3289 = vpop.xlane.xlu0 %3288
          %v3290 = vmul.f32 %v3289, %v1160
          %v3291 = vsub.f32 %v3274, %v3290
          %v3292 = vmul.f32 %v3291, %v3291
          %v3293 = vsel %vm3286, %v3292, 0.0
          %3294 = vadd.xlane.f32.xlu0 %v3293
          %v3295 = vpop.xlane.xlu0 %3294
          %v3296 = vmul.f32 %v3295, %v1160
          %v3297 = vadd.f32 %v3296, 1e-06
          %v3298 = vrsqrt.pop %v3297
          %v3299 = vmul.f32 %v3291, %v3298
          %v3300 = vmul.f32 %v3299, %v3284
          %v3301 = vadd.f32 %v3300, %v3285
          %v3302 = vpack.c.bf16 %v3301, %v3301
          %v3303 = vld [vmem:[%s23] sm:$0xf]
          %v3304 = vld [vmem:[%s23 + $0x4] sm:$0xf]
          %v3305 = vld [vmem:[%s23 + $0x8] sm:$0xf]
          %v3306 = vld [vmem:[%s23 + $0xc] sm:$0xf]
          %v3307 = vld [vmem:[%s24] sm:$0x1]
          %v3312 = vunpack.c.l.b16 %v3303
          %v3313 = vunpack.c.l.b16 %v3304
          %v3314 = vunpack.c.l.b16 %v3305
          %v3315 = vunpack.c.l.b16 %v3306
          %v3316 = vpack.c.b16 %v3313, %v3312
          %v3317 = vpack.c.b16 %v3315, %v3314
          %v3321 = vsel %vm1150, %v3302, 0
          %3323 = vmatprep.subr.bf16.mxu0 0
          %3324 = vmatpush1.bf16.msra.mxu0 %v3316
          %3325 = vmatprep.subr.bf16.mxu0 0
          %3326 = vmatpush1.bf16.msra.mxu0 %v3317
          %3327 = vmatprep.subr.bf16.mxu0 0
          %3328 = vmatpush1.bf16.msra.mxu0 0
          %3329 = vmatprep.subr.bf16.mxu0 0
          %3330 = vmatpush1.bf16.msra.mxu0 0
          %3331 = vmatprep.subr.bf16.mxu0 0
          %3332 = vmatpush1.bf16.msra.mxu0 0
          %3333 = vmatprep.subr.bf16.mxu0 0
          %3334 = vmatpush1.bf16.msra.mxu0 0
          %3335 = vmatprep.subr.bf16.mxu0 0
          %3336 = vmatpush1.bf16.msra.mxu0 0
          %3337 = vmatprep.subr.bf16.mxu0 0
          %3338 = vmatpush1.bf16.msra.mxu0 0
          %3339 = vmatprep.subr.bf16.mxu0 0
          %3340 = vmatpush1.bf16.msra.mxu0 0
          %3341 = vmatprep.subr.bf16.mxu0 0
          %3342 = vmatpush1.bf16.msra.mxu0 0
          %3343 = vmatprep.subr.bf16.mxu0 0
          %3344 = vmatpush1.bf16.msra.mxu0 0
          %3345 = vmatprep.subr.bf16.mxu0 0
          %3346 = vmatpush1.bf16.msra.mxu0 0
          %3347 = vmatprep.subr.bf16.mxu0 0
          %3348 = vmatpush1.bf16.msra.mxu0 0
          %3349 = vmatprep.subr.bf16.mxu0 0
          %3350 = vmatpush1.bf16.msra.mxu0 0
          %3351 = vmatprep.subr.bf16.mxu0 0
          %3352 = vmatpush1.bf16.msra.mxu0 0
          %3353 = vmatprep.subr.bf16.mxu0 0
          %3354 = vmatpush1.bf16.msra.mxu0 0
          %3355 = vmatprep.mubr.bf16.mxu0 0
          %3356 = vmatmul.mubr.bf16.gmra.mrb[0].mxu0 %v3321
          %v3357 = vpop.f32.mrb[0].mxu0
          %v3358 = vadd.f32 %v3307, %v3357
          %v3359 = vpop.f32.mrb[0].mxu0
          %v3360 = vpop.f32.mrb[0].mxu0
          %v3361 = vpop.f32.mrb[0].mxu0
          %3362 = vdwg.mxu0
          %3363 = vst [vmem:[%s974] sm:$0x1] %v3358
        $region128: #{vit_forward.1} parent=119 // pred_fallthru
          _
        %s3364 = sand.u32 %s669, 1
        %s3365 = scalar_lea.sflag [#allocation4], %s3364
        %s3366 = sand.u32 %s669, 1
        %s3367 = scalar_lea.vmem [#allocation3], %s3366
        // Predicated region
        $region129: #{vit_forward.1} parent=119 // pred_check
          %p3368 = pneg %p679
        $region130: #{vit_forward.1} parent=119 // pred_check_branch
          %3370 = sbr.rel (%p3368) target = $region132
        $region131: #{vit_forward.1} parent=119 // pred_region
          %s3372 = ssub.s32 16, 16
          %3373 = vsyncadd %s3365, %s3372
          %s3374 = smul.addr %s43, 16
          %s3375 = scalar_lea.hbm %s25, %s3374
          %s3377 = sshll.u32 %s3367, 4
          %s3378 = int_to_ptr.vmem [resolvable:$true] %s3377
          %3380 = dma.vmem_to_hbm [thread:$0]  %s3378, 16, %s3375, %s3365
        $region132: #{vit_forward.1} parent=119 // pred_fallthru
          _
      $region120: #{vit_forward.1} parent=5 // pred_fallthru
        _
      %p3381 = scmp.le.s32.totalorder 2, %s34
      // Predicated region
      $region133: #{vit_forward.1} parent=5 // pred_check
        %p3382 = pneg %p3381
      $region134: #{vit_forward.1} parent=5 // pred_check_branch
        %3384 = sbr.rel (%p3382) target = $region136
      $region135: #{vit_forward.1} parent=5 // pred_region
        %s3385 = ssub.s32 %s34, 2
        // Predicated region
        $region137: #{vit_forward.1} parent=135 // pred_check
          %p3386 = pneg %p685
        $region138: #{vit_forward.1} parent=135 // pred_check_branch
          %3388 = sbr.rel (%p3386) target = $region140
        $region139: #{vit_forward.1} parent=135 // pred_region
          %s3389 = sand.u32 %s670, 1
          %s3390 = scalar_lea.sflag [#allocation4], %s3389
          %s3391 = sand.u32 %s670, 1
          %s3392 = scalar_lea.vmem [#allocation3], %s3391
          %3393 = dma.done %s3390, 16
        $region140: #{vit_forward.1} parent=135 // pred_fallthru
          _
      $region136: #{vit_forward.1} parent=5 // pred_fallthru
        _
    $region6: #{vit_forward.1} parent=1 // loop_footer
      %s38 = sadd.s32 1, %s34
    $region7: #{vit_forward.1} parent=1 // loop_footer_branch
      %33 = sbr.rel target = $region3
    $region8: #{vit_forward.1} parent=1 // loop_exit
      _
    %3394 = vsyncpa [#allocation4], 1
    %s3395 = scalar_lea.sflag [#allocation4], 1
    %3396 = vsyncpa %s3395, 1

</llo_original>
